<compile_context>
chip_gen: v7x
topology: tpu7x:2x2x1
jax: 0.10.0
libtpu: 0.0.40
codegen_flags: <defaults>
</compile_context>

<pallas_src>
import functools
import math

import jax
import jax.numpy as jnp
from jax.experimental import pallas as pl
from jax.experimental.pallas import tpu as pltpu


# ----------------------------- helpers --------------------------------------
def _dot(a, b):
    return jnp.dot(a, b, preferred_element_type=jnp.float32)


def _silu(x):
    # f32 elementwise math (v5e VPU/EUP have no bf16); reciprocal on the EUP.
    return x * pl.reciprocal(1.0 + jnp.exp(-x), approx=True)


# ----------------------------- fused kernel ---------------------------------
def _egnn_fused_kernel(
    # inputs
    h_in_ref, x_ref, grc_ref, s_ref, eattr_ref, pt_ref,
    emb_w_ref, emb_b_ref,
    we1s_ref, we1t_ref, we1ra_ref, be1_ref, we2_ref, be2_ref,
    wn1_ref, bn1_ref, wn2_ref, bn2_ref,
    wc1_ref, bc1_ref, wc2_ref,
    wg1_ref, bg1_ref, wg2_ref, bg2_ref,
    # outputs
    pred_ref, dy_ref,
    # scratch
    h_scr, ra_scr, cdiff_scr,
    *, mean, std):
    l = pl.program_id(0)
    last = pl.num_programs(0) - 1

    @pl.when(l == 0)
    def _init():
        # input embedding: h = h_in @ W + b
        h_scr[...] = _dot(h_in_ref[...], emb_w_ref[...]) + emb_b_ref[...]
        # coord2radial -- constant across layers (coords only update at the
        # last layer), so compute once and cache.
        coord = x_ref[...]                                          # [N, 3] f32
        cstack = jnp.concatenate([coord, -coord], axis=0)           # [2N, 3]
        # [Gr|Gc] @ [coord; -coord] == coord[row] - coord[col]  (done in f32)
        cdiff = _dot(grc_ref[...].astype(jnp.float32), cstack)      # [E, 3]
        cdiff_scr[...] = cdiff
        radial = jnp.sum(cdiff * cdiff, axis=-1, keepdims=True)     # [E, 1]
        ra_scr[...] = jnp.concatenate([radial, eattr_ref[...]], axis=1)

    h = h_scr[...]                                                  # [N, H] f32

    # ------------------------------ edge MLP --------------------------------
    # (Gr@h)@We1s + (Gc@h)@We1t  re-associated:  [Gr|Gc] @ concat(h@We1s, h@We1t)
    y = jnp.concatenate([_dot(h, we1s_ref[...]),
                         _dot(h, we1t_ref[...])], axis=0).astype(jnp.bfloat16)
    m1 = _dot(grc_ref[...], y)                                      # [E, H] f32 acc
    m1 = m1 + _dot(ra_scr[...], we1ra_ref[...]) + be1_ref[...]      # + [radial|eattr]@W
    m1 = _silu(m1)
    m = _silu(_dot(m1, we2_ref[...]) + be2_ref[...])                # edge_feat [E, H]

    # ------------------------------ node MLP --------------------------------
    agg = _dot(s_ref[...], m.astype(jnp.bfloat16))                  # segment_sum -> [N, H]
    ha = jnp.concatenate([h, agg], axis=1)                          # [N, 2H]
    n1 = _silu(_dot(ha, wn1_ref[...]) + bn1_ref[...])
    h_new = h + _dot(n1, wn2_ref[...]) + bn2_ref[...]               # residual
    h_scr[...] = h_new

    # ---------------- last layer only: coord update + decoder ---------------
    @pl.when(l == last)
    def _finalize():
        # coord MLP -> phi, trans = coord_diff * phi
        c1 = _silu(_dot(m, wc1_ref[...]) + bc1_ref[...])
        phi = _dot(c1, wc2_ref[...])                                # [E, 1]
        trans = cdiff_scr[...] * phi                                # [E, 3]
        # fused scatter: S @ [trans | ones] -> [segment_sum(trans) | count]
        to = jnp.concatenate([trans, jnp.ones_like(phi)], axis=1)   # [E, 4]
        sc = _dot(s_ref[...].astype(jnp.float32), to)               # [N, 4]
        cnt = jnp.maximum(sc[:, 3:4], 1.0)
        # dy = (x + mean_agg) - x = mean_agg
        dy_ref[...] = sc[:, :3] * pl.reciprocal(cnt, approx=True)

        # graph decoder + per-graph pooling (scatter_add over batch via PT)
        d = _silu(_dot(h_new, wg1_ref[...]) + bg1_ref[...])
        d = _dot(d, wg2_ref[...]) + bg2_ref[...]                    # [N, 1]
        pred_ref[...] = _dot(pt_ref[...], d) * std + mean           # [B, 1]


# ----------------------------- wrapper ---------------------------------------
def egnn_md_last_forward(params, h_in, x, grc, s, pt, edge_attr,
                         mean=0.0, std=1.0):
    """md_type='predict' forward. Returns (pred [B], dy [N,3])."""
    N, fin = h_in.shape
    E, fe = edge_attr.shape
    B = pt.shape[0]
    H = params['emb_w'].shape[1]
    L = params['we1s'].shape[0]
    fe1 = params['we1ra'].shape[1]          # 1 + fe

    def res(shape):                         # resident across all layer steps
        return pl.BlockSpec(shape, lambda l, _s=shape: (0,) * len(_s))

    def per_layer(shape):                   # stacked [L, ...]; slice per layer
        return pl.BlockSpec((None,) + shape,
                            lambda l, _s=shape: (l,) + (0,) * len(_s))

    kernel = functools.partial(_egnn_fused_kernel,
                               mean=float(mean), std=float(std))

    in_specs = [
        res((N, fin)), res((N, 3)), res((E, 2 * N)), res((N, E)),
        res((E, fe)), res((B, N)),
        res((fin, H)), res((1, H)),
        per_layer((H, H)), per_layer((H, H)), per_layer((fe1, H)),
        per_layer((1, H)), per_layer((H, H)), per_layer((1, H)),
        per_layer((2 * H, H)), per_layer((1, H)), per_layer((H, H)),
        per_layer((1, H)),
        per_layer((H, H)), per_layer((1, H)), per_layer((H, 1)),
        res((H, H)), res((1, H)), res((H, 1)), res((1, 1)),
    ]
    out_specs = (res((B, 1)), res((N, 3)))
    out_shape = (jax.ShapeDtypeStruct((B, 1), jnp.float32),
                 jax.ShapeDtypeStruct((N, 3), jnp.float32))

    pred, dy = pl.pallas_call(
        kernel,
        grid=(L,),
        in_specs=in_specs,
        out_specs=out_specs,
        out_shape=out_shape,
        scratch_shapes=[pltpu.VMEM((N, H), jnp.float32),     # h (resident state)
                        pltpu.VMEM((E, fe1), jnp.float32),   # [radial | edge_attr]
                        pltpu.VMEM((E, 3), jnp.float32)],    # coord_diff
        compiler_params=pltpu.CompilerParams(
            dimension_semantics=("arbitrary",),               # layers are sequential
            vmem_limit_bytes=32 * 1024 * 1024),
    )(h_in, x, grc, s, edge_attr, pt,
      params['emb_w'], params['emb_b'],
      params['we1s'], params['we1t'], params['we1ra'], params['be1'],
      params['we2'], params['be2'],
      params['wn1'], params['bn1'], params['wn2'], params['bn2'],
      params['wc1'], params['bc1'], params['wc2'],
      params['wg1'], params['bg1'], params['wg2'], params['bg2'])
    # TODO(synk): md_type='gradient' (autograd of pred w.r.t. coords) not implemented in-kernel.
    return pred[:, 0], dy


# ----------------------------- parameters -----------------------------------
def init_params(key, in_node_nf, hidden_nf, in_edge_nf, n_layers):
    H, fe, L = hidden_nf, in_edge_nf, n_layers
    edge_in = 2 * H + 1 + fe
    keys = iter(jax.random.split(key, 64))

    def kaiming(k, fan_in, shape):
        bound = math.sqrt(6.0 / fan_in)
        return jax.random.uniform(k, shape, jnp.float32, -bound, bound)

    def bias(k, fan_in, shape):
        bound = 1.0 / math.sqrt(fan_in)
        return jax.random.uniform(k, shape, jnp.float32, -bound, bound)

    p = {
        'emb_w': kaiming(next(keys), in_node_nf, (in_node_nf, H)),
        'emb_b': bias(next(keys), in_node_nf, (1, H)),
        # per-layer E_GCL weights stacked on a leading layer dimension
        'we1s': kaiming(next(keys), edge_in, (L, H, H)),     # edge_mlp lin1 (source rows)
        'we1t': kaiming(next(keys), edge_in, (L, H, H)),     # edge_mlp lin1 (target rows)
        'we1ra': kaiming(next(keys), edge_in, (L, 1 + fe, H)),  # (radial | edge_attr rows)
        'be1': bias(next(keys), edge_in, (L, 1, H)),
        'we2': kaiming(next(keys), H, (L, H, H)),
        'be2': bias(next(keys), H, (L, 1, H)),
        'wn1': kaiming(next(keys), 2 * H, (L, 2 * H, H)),    # node_mlp lin1 on [h | agg]
        'bn1': bias(next(keys), 2 * H, (L, 1, H)),
        'wn2': kaiming(next(keys), H, (L, H, H)),
        'bn2': bias(next(keys), H, (L, 1, H)),
        'wc1': kaiming(next(keys), H, (L, H, H)),            # coord_mlp
        'bc1': bias(next(keys), H, (L, 1, H)),
        'wc2': kaiming(next(keys), H, (L, H, 1)),            # no bias
        # graph decoder
        'wg1': kaiming(next(keys), H, (H, H)),
        'bg1': bias(next(keys), H, (1, H)),
        'wg2': kaiming(next(keys), H, (H, 1)),
        'bg2': bias(next(keys), H, (1, 1)),
    }
    # TODO(synk): node_dec is instantiated in EGNN_md_last.__init__ but never used in forward; omitted.
    return p


# ----------------------------- main -----------------------------------------
if __name__ == "__main__":
    key = jax.random.PRNGKey(0)

    # Small shapes: 2 graphs x 4 nodes, fully connected (no self loops).
    N, B, H = 8, 2, 32
    in_node_nf, in_edge_nf, n_layers = 5, 2, 4
    npg = N // B

    rows, cols, batch = [], [], []
    for g in range(B):
        base = g * npg
        for i in range(npg):
            batch.append(g)
            for j in range(npg):
                if i != j:
                    rows.append(base + i)
                    cols.append(base + j)
    row = jnp.array(rows, jnp.int32)
    col = jnp.array(cols, jnp.int32)
    batch_idx = jnp.array(batch, jnp.int32)
    E = int(row.shape[0])

    k_h, k_x, k_e, k_p = jax.random.split(key, 4)
    h_in = jax.random.normal(k_h, (N, in_node_nf), jnp.float32)
    x = jax.random.normal(k_x, (N, 3), jnp.float32)
    edge_attr = jax.random.normal(k_e, (E, in_edge_nf), jnp.float32)

    # Graph-structure glue (host side). One-hot matrices contain only 0/1 so
    # bf16 is exact; matmuls accumulate in f32 inside the kernel.
    gr = jax.nn.one_hot(row, N, dtype=jnp.float32)                 # [E, N]
    gc = jax.nn.one_hot(col, N, dtype=jnp.float32)                 # [E, N]
    grc = jnp.concatenate([gr, gc], axis=1).astype(jnp.bfloat16)   # [E, 2N] fused gather
    s = gr.T.astype(jnp.bfloat16)                                  # [N, E]  scatter (Gr^T)
    pt = jax.nn.one_hot(batch_idx, B, dtype=jnp.float32).T         # [B, N]  graph pooling

    params = init_params(k_p, in_node_nf, H, in_edge_nf, n_layers)

    pred, dy = egnn_md_last_forward(params, h_in, x, grc, s, pt, edge_attr,
                                    mean=0.0, std=1.0)
    pred, dy = jax.block_until_ready((pred, dy))

    assert pred.shape == (B,), pred.shape
    assert dy.shape == (N, 3), dy.shape
    assert bool(jnp.all(jnp.isfinite(pred))) and bool(jnp.all(jnp.isfinite(dy)))
    print("KERNEL_OK")
</pallas_src>

<mosaic_0001>
module attributes {stable_mosaic.version = 11 : i64} {
  func.func @_egnn_fused_kernel(%arg0: i32, %arg1: memref<8x5xf32, #tpu.memory_space<vmem>>, %arg2: memref<8x3xf32, #tpu.memory_space<vmem>>, %arg3: memref<24x16xbf16, #tpu.memory_space<vmem>>, %arg4: memref<8x24xbf16, #tpu.memory_space<vmem>>, %arg5: memref<24x2xf32, #tpu.memory_space<vmem>>, %arg6: memref<2x8xf32, #tpu.memory_space<vmem>>, %arg7: memref<5x32xf32, #tpu.memory_space<vmem>>, %arg8: memref<1x32xf32, #tpu.memory_space<vmem>>, %arg9: memref<1x32x32xf32, #tpu.memory_space<vmem>>, %arg10: memref<1x32x32xf32, #tpu.memory_space<vmem>>, %arg11: memref<1x3x32xf32, #tpu.memory_space<vmem>>, %arg12: memref<1x1x32xf32, #tpu.memory_space<vmem>>, %arg13: memref<1x32x32xf32, #tpu.memory_space<vmem>>, %arg14: memref<1x1x32xf32, #tpu.memory_space<vmem>>, %arg15: memref<1x64x32xf32, #tpu.memory_space<vmem>>, %arg16: memref<1x1x32xf32, #tpu.memory_space<vmem>>, %arg17: memref<1x32x32xf32, #tpu.memory_space<vmem>>, %arg18: memref<1x1x32xf32, #tpu.memory_space<vmem>>, %arg19: memref<1x32x32xf32, #tpu.memory_space<vmem>>, %arg20: memref<1x1x32xf32, #tpu.memory_space<vmem>>, %arg21: memref<1x32x1xf32, #tpu.memory_space<vmem>>, %arg22: memref<32x32xf32, #tpu.memory_space<vmem>>, %arg23: memref<1x32xf32, #tpu.memory_space<vmem>>, %arg24: memref<32x1xf32, #tpu.memory_space<vmem>>, %arg25: memref<1x1xf32, #tpu.memory_space<vmem>>, %arg26: memref<2x1xf32, #tpu.memory_space<vmem>>, %arg27: memref<8x3xf32, #tpu.memory_space<vmem>>, %arg28: memref<8x32xf32, #tpu.memory_space<vmem>>, %arg29: memref<24x3xf32, #tpu.memory_space<vmem>>, %arg30: memref<24x3xf32, #tpu.memory_space<vmem>>) attributes {dimension_semantics = [#tpu.dimension_semantics<arbitrary>], iteration_bounds = array<i64: 4>, scalar_prefetch = 0 : i64, scratch_operands = 3 : i64, tpu.core_type = #tpu.core_type<tc>, window_params = [{pipeline_mode = #tpu.pipeline_mode<synchronous>, transform_indices = @transform_0, window_bounds = array<i64: 8, 5>}, {pipeline_mode = #tpu.pipeline_mode<synchronous>, transform_indices = @transform_1, window_bounds = array<i64: 8, 3>}, {pipeline_mode = #tpu.pipeline_mode<synchronous>, transform_indices = @transform_2, window_bounds = array<i64: 24, 16>}, {pipeline_mode = #tpu.pipeline_mode<synchronous>, transform_indices = @transform_3, window_bounds = array<i64: 8, 24>}, {pipeline_mode = #tpu.pipeline_mode<synchronous>, transform_indices = @transform_4, window_bounds = array<i64: 24, 2>}, {pipeline_mode = #tpu.pipeline_mode<synchronous>, transform_indices = @transform_5, window_bounds = array<i64: 2, 8>}, {pipeline_mode = #tpu.pipeline_mode<synchronous>, transform_indices = @transform_6, window_bounds = array<i64: 5, 32>}, {pipeline_mode = #tpu.pipeline_mode<synchronous>, transform_indices = @transform_7, window_bounds = array<i64: 1, 32>}, {transform_indices = @transform_8, window_bounds = array<i64: 1, 32, 32>}, {transform_indices = @transform_9, window_bounds = array<i64: 1, 32, 32>}, {transform_indices = @transform_10, window_bounds = array<i64: 1, 3, 32>}, {transform_indices = @transform_11, window_bounds = array<i64: 1, 1, 32>}, {transform_indices = @transform_12, window_bounds = array<i64: 1, 32, 32>}, {transform_indices = @transform_13, window_bounds = array<i64: 1, 1, 32>}, {transform_indices = @transform_14, window_bounds = array<i64: 1, 64, 32>}, {transform_indices = @transform_15, window_bounds = array<i64: 1, 1, 32>}, {transform_indices = @transform_16, window_bounds = array<i64: 1, 32, 32>}, {transform_indices = @transform_17, window_bounds = array<i64: 1, 1, 32>}, {transform_indices = @transform_18, window_bounds = array<i64: 1, 32, 32>}, {transform_indices = @transform_19, window_bounds = array<i64: 1, 1, 32>}, {transform_indices = @transform_20, window_bounds = array<i64: 1, 32, 1>}, {pipeline_mode = #tpu.pipeline_mode<synchronous>, transform_indices = @transform_21, window_bounds = array<i64: 32, 32>}, {pipeline_mode = #tpu.pipeline_mode<synchronous>, transform_indices = @transform_22, window_bounds = array<i64: 1, 32>}, {pipeline_mode = #tpu.pipeline_mode<synchronous>, transform_indices = @transform_23, window_bounds = array<i64: 32, 1>}, {pipeline_mode = #tpu.pipeline_mode<synchronous>, transform_indices = @transform_24, window_bounds = array<i64: 1, 1>}, {pipeline_mode = #tpu.pipeline_mode<synchronous>, transform_indices = @transform_25, window_bounds = array<i64: 2, 1>}, {pipeline_mode = #tpu.pipeline_mode<synchronous>, transform_indices = @transform_26, window_bounds = array<i64: 8, 3>}]} {
    %c0_i32 = arith.constant 0 : i32
    %0 = arith.cmpi eq, %arg0, %c0_i32 : i32
    %1 = arith.extui %0 : i1 to i32
    %c0_i32_0 = arith.constant 0 : i32
    %2 = arith.cmpi ne, %1, %c0_i32_0 : i32
    scf.if %2 {
      %c0_54 = arith.constant 0 : index
      %c0_55 = arith.constant 0 : index
      %74 = vector.load %arg1[%c0_54, %c0_55] : memref<8x5xf32, #tpu.memory_space<vmem>>, vector<8x5xf32>
      %c0_56 = arith.constant 0 : index
      %c0_57 = arith.constant 0 : index
      %75 = vector.load %arg7[%c0_56, %c0_57] : memref<5x32xf32, #tpu.memory_space<vmem>>, vector<5x32xf32>
      %cst_58 = arith.constant dense<0.000000e+00> : vector<8x32xf32>
      %76 = tpu.matmul %74, %75, %cst_58 {dimension_numbers = #tpu.dot_dimension_numbers<[1], [0], [0], [1], [0, 0, 1, 1], [], []>} : vector<8x5xf32>, vector<5x32xf32>, vector<8x32xf32> -> vector<8x32xf32>
      %c0_59 = arith.constant 0 : index
      %c0_60 = arith.constant 0 : index
      %77 = vector.load %arg8[%c0_59, %c0_60] : memref<1x32xf32, #tpu.memory_space<vmem>>, vector<1x32xf32>
      %78 = vector.broadcast %77 : vector<1x32xf32> to vector<8x32xf32>
      %79 = arith.addf %76, %78 : vector<8x32xf32>
      %c0_61 = arith.constant 0 : index
      %c0_62 = arith.constant 0 : index
      %80 = vector.load %arg28[%c0_61, %c0_62] : memref<8x32xf32, #tpu.memory_space<vmem>>, vector<8x32xf32>
      tpu.vector_store %arg28[%c0_61, %c0_62], %79 {strides = array<i32>} : memref<8x32xf32, #tpu.memory_space<vmem>>, vector<8x32xf32>,
      %c0_63 = arith.constant 0 : index
      %c0_64 = arith.constant 0 : index
      %81 = vector.load %arg2[%c0_63, %c0_64] : memref<8x3xf32, #tpu.memory_space<vmem>>, vector<8x3xf32>
      %cst_65 = arith.constant 0.000000e+00 : f32
      %82 = vector.broadcast %cst_65 : f32 to vector<8x3xf32>
      %83 = arith.subf %82, %81 : vector<8x3xf32>
      %84 = tpu.concatenate %81, %83 in 0 : vector<8x3xf32>, vector<8x3xf32> -> vector<16x3xf32>
      %c0_66 = arith.constant 0 : index
      %c0_67 = arith.constant 0 : index
      %85 = vector.load %arg3[%c0_66, %c0_67] : memref<24x16xbf16, #tpu.memory_space<vmem>>, vector<24x16xbf16>
      %86 = arith.extf %85 : vector<24x16xbf16> to vector<24x16xf32>
      %cst_68 = arith.constant dense<0.000000e+00> : vector<24x3xf32>
      %87 = tpu.matmul %86, %84, %cst_68 {dimension_numbers = #tpu.dot_dimension_numbers<[1], [0], [0], [1], [0, 0, 1, 1], [], []>} : vector<24x16xf32>, vector<16x3xf32>, vector<24x3xf32> -> vector<24x3xf32>
      %c0_69 = arith.constant 0 : index
      %c0_70 = arith.constant 0 : index
      %88 = vector.load %arg30[%c0_69, %c0_70] : memref<24x3xf32, #tpu.memory_space<vmem>>, vector<24x3xf32>
      tpu.vector_store %arg30[%c0_69, %c0_70], %87 {strides = array<i32>} : memref<24x3xf32, #tpu.memory_space<vmem>>, vector<24x3xf32>,
      %89 = arith.mulf %87, %87 : vector<24x3xf32>
      %cst_71 = arith.constant dense<0.000000e+00> : vector<24xf32>
      %90 = vector.multi_reduction <add>, %89, %cst_71 [1] : vector<24x3xf32> to vector<24xf32>
      %91 = vector.shape_cast %90 : vector<24xf32> to vector<24x1xf32>
      %c0_72 = arith.constant 0 : index
      %c0_73 = arith.constant 0 : index
      %92 = vector.load %arg5[%c0_72, %c0_73] : memref<24x2xf32, #tpu.memory_space<vmem>>, vector<24x2xf32>
      %93 = tpu.concatenate %91, %92 in 1 : vector<24x1xf32>, vector<24x2xf32> -> vector<24x3xf32>
      %c0_74 = arith.constant 0 : index
      %c0_75 = arith.constant 0 : index
      %94 = vector.load %arg29[%c0_74, %c0_75] : memref<24x3xf32, #tpu.memory_space<vmem>>, vector<24x3xf32>
      tpu.vector_store %arg29[%c0_74, %c0_75], %93 {strides = array<i32>} : memref<24x3xf32, #tpu.memory_space<vmem>>, vector<24x3xf32>,
    } else {
    }
    %c0 = arith.constant 0 : index
    %c0_1 = arith.constant 0 : index
    %3 = vector.load %arg28[%c0, %c0_1] : memref<8x32xf32, #tpu.memory_space<vmem>>, vector<8x32xf32>
    %c0_2 = arith.constant 0 : index
    %c0_3 = arith.constant 0 : index
    %c0_4 = arith.constant 0 : index
    %4 = vector.load %arg9[%c0_2, %c0_3, %c0_4] : memref<1x32x32xf32, #tpu.memory_space<vmem>>, vector<1x32x32xf32>
    %5 = vector.shape_cast %4 : vector<1x32x32xf32> to vector<32x32xf32>
    %cst = arith.constant dense<0.000000e+00> : vector<8x32xf32>
    %6 = tpu.matmul %3, %5, %cst {dimension_numbers = #tpu.dot_dimension_numbers<[1], [0], [0], [1], [0, 0, 1, 1], [], []>} : vector<8x32xf32>, vector<32x32xf32>, vector<8x32xf32> -> vector<8x32xf32>
    %c0_5 = arith.constant 0 : index
    %c0_6 = arith.constant 0 : index
    %c0_7 = arith.constant 0 : index
    %7 = vector.load %arg10[%c0_5, %c0_6, %c0_7] : memref<1x32x32xf32, #tpu.memory_space<vmem>>, vector<1x32x32xf32>
    %8 = vector.shape_cast %7 : vector<1x32x32xf32> to vector<32x32xf32>
    %cst_8 = arith.constant dense<0.000000e+00> : vector<8x32xf32>
    %9 = tpu.matmul %3, %8, %cst_8 {dimension_numbers = #tpu.dot_dimension_numbers<[1], [0], [0], [1], [0, 0, 1, 1], [], []>} : vector<8x32xf32>, vector<32x32xf32>, vector<8x32xf32> -> vector<8x32xf32>
    %10 = tpu.concatenate %6, %9 in 0 : vector<8x32xf32>, vector<8x32xf32> -> vector<16x32xf32>
    %11 = arith.truncf %10 : vector<16x32xf32> to vector<16x32xbf16>
    %c0_9 = arith.constant 0 : index
    %c0_10 = arith.constant 0 : index
    %12 = vector.load %arg3[%c0_9, %c0_10] : memref<24x16xbf16, #tpu.memory_space<vmem>>, vector<24x16xbf16>
    %cst_11 = arith.constant dense<0.000000e+00> : vector<24x32xf32>
    %13 = tpu.matmul %12, %11, %cst_11 {dimension_numbers = #tpu.dot_dimension_numbers<[1], [0], [0], [1], [0, 0, 1, 1], [], []>} : vector<24x16xbf16>, vector<16x32xbf16>, vector<24x32xf32> -> vector<24x32xf32>
    %c0_12 = arith.constant 0 : index
    %c0_13 = arith.constant 0 : index
    %14 = vector.load %arg29[%c0_12, %c0_13] : memref<24x3xf32, #tpu.memory_space<vmem>>, vector<24x3xf32>
    %c0_14 = arith.constant 0 : index
    %c0_15 = arith.constant 0 : index
    %c0_16 = arith.constant 0 : index
    %15 = vector.load %arg11[%c0_14, %c0_15, %c0_16] : memref<1x3x32xf32, #tpu.memory_space<vmem>>, vector<1x3x32xf32>
    %16 = vector.shape_cast %15 : vector<1x3x32xf32> to vector<3x32xf32>
    %cst_17 = arith.constant dense<0.000000e+00> : vector<24x32xf32>
    %17 = tpu.matmul %14, %16, %cst_17 {dimension_numbers = #tpu.dot_dimension_numbers<[1], [0], [0], [1], [0, 0, 1, 1], [], []>} : vector<24x3xf32>, vector<3x32xf32>, vector<24x32xf32> -> vector<24x32xf32>
    %18 = arith.addf %13, %17 : vector<24x32xf32>
    %c0_18 = arith.constant 0 : index
    %c0_19 = arith.constant 0 : index
    %c0_20 = arith.constant 0 : index
    %19 = vector.load %arg12[%c0_18, %c0_19, %c0_20] : memref<1x1x32xf32, #tpu.memory_space<vmem>>, vector<1x1x32xf32>
    %20 = vector.shape_cast %19 : vector<1x1x32xf32> to vector<1x32xf32>
    %21 = vector.broadcast %20 : vector<1x32xf32> to vector<24x32xf32>
    %22 = arith.addf %18, %21 : vector<24x32xf32>
    %cst_21 = arith.constant 0.000000e+00 : f32
    %23 = vector.broadcast %cst_21 : f32 to vector<24x32xf32>
    %24 = arith.subf %23, %22 : vector<24x32xf32>
    %25 = math.exp %24 : vector<24x32xf32>
    %cst_22 = arith.constant 1.000000e+00 : f32
    %26 = vector.broadcast %cst_22 : f32 to vector<24x32xf32>
    %27 = arith.addf %26, %25 : vector<24x32xf32>
    %28 = tpu.reciprocal %27 {approx = true} : vector<24x32xf32> -> vector<24x32xf32>
    %29 = arith.mulf %22, %28 : vector<24x32xf32>
    %c0_23 = arith.constant 0 : index
    %c0_24 = arith.constant 0 : index
    %c0_25 = arith.constant 0 : index
    %30 = vector.load %arg13[%c0_23, %c0_24, %c0_25] : memref<1x32x32xf32, #tpu.memory_space<vmem>>, vector<1x32x32xf32>
    %31 = vector.shape_cast %30 : vector<1x32x32xf32> to vector<32x32xf32>
    %cst_26 = arith.constant dense<0.000000e+00> : vector<24x32xf32>
    %32 = tpu.matmul %29, %31, %cst_26 {dimension_numbers = #tpu.dot_dimension_numbers<[1], [0], [0], [1], [0, 0, 1, 1], [], []>} : vector<24x32xf32>, vector<32x32xf32>, vector<24x32xf32> -> vector<24x32xf32>
    %c0_27 = arith.constant 0 : index
    %c0_28 = arith.constant 0 : index
    %c0_29 = arith.constant 0 : index
    %33 = vector.load %arg14[%c0_27, %c0_28, %c0_29] : memref<1x1x32xf32, #tpu.memory_space<vmem>>, vector<1x1x32xf32>
    %34 = vector.shape_cast %33 : vector<1x1x32xf32> to vector<1x32xf32>
    %35 = vector.broadcast %34 : vector<1x32xf32> to vector<24x32xf32>
    %36 = arith.addf %32, %35 : vector<24x32xf32>
    %cst_30 = arith.constant 0.000000e+00 : f32
    %37 = vector.broadcast %cst_30 : f32 to vector<24x32xf32>
    %38 = arith.subf %37, %36 : vector<24x32xf32>
    %39 = math.exp %38 : vector<24x32xf32>
    %cst_31 = arith.constant 1.000000e+00 : f32
    %40 = vector.broadcast %cst_31 : f32 to vector<24x32xf32>
    %41 = arith.addf %40, %39 : vector<24x32xf32>
    %42 = tpu.reciprocal %41 {approx = true} : vector<24x32xf32> -> vector<24x32xf32>
    %43 = arith.mulf %36, %42 : vector<24x32xf32>
    %c0_32 = arith.constant 0 : index
    %c0_33 = arith.constant 0 : index
    %44 = vector.load %arg4[%c0_32, %c0_33] : memref<8x24xbf16, #tpu.memory_space<vmem>>, vector<8x24xbf16>
    %45 = arith.truncf %43 : vector<24x32xf32> to vector<24x32xbf16>
    %cst_34 = arith.constant dense<0.000000e+00> : vector<8x32xf32>
    %46 = tpu.matmul %44, %45, %cst_34 {dimension_numbers = #tpu.dot_dimension_numbers<[1], [0], [0], [1], [0, 0, 1, 1], [], []>} : vector<8x24xbf16>, vector<24x32xbf16>, vector<8x32xf32> -> vector<8x32xf32>
    %47 = tpu.concatenate %3, %46 in 1 : vector<8x32xf32>, vector<8x32xf32> -> vector<8x64xf32>
    %c0_35 = arith.constant 0 : index
    %c0_36 = arith.constant 0 : index
    %c0_37 = arith.constant 0 : index
    %48 = vector.load %arg15[%c0_35, %c0_36, %c0_37] : memref<1x64x32xf32, #tpu.memory_space<vmem>>, vector<1x64x32xf32>
    %49 = vector.shape_cast %48 : vector<1x64x32xf32> to vector<64x32xf32>
    %cst_38 = arith.constant dense<0.000000e+00> : vector<8x32xf32>
    %50 = tpu.matmul %47, %49, %cst_38 {dimension_numbers = #tpu.dot_dimension_numbers<[1], [0], [0], [1], [0, 0, 1, 1], [], []>} : vector<8x64xf32>, vector<64x32xf32>, vector<8x32xf32> -> vector<8x32xf32>
    %c0_39 = arith.constant 0 : index
    %c0_40 = arith.constant 0 : index
    %c0_41 = arith.constant 0 : index
    %51 = vector.load %arg16[%c0_39, %c0_40, %c0_41] : memref<1x1x32xf32, #tpu.memory_space<vmem>>, vector<1x1x32xf32>
    %52 = vector.shape_cast %51 : vector<1x1x32xf32> to vector<1x32xf32>
    %53 = vector.broadcast %52 : vector<1x32xf32> to vector<8x32xf32>
    %54 = arith.addf %50, %53 : vector<8x32xf32>
    %cst_42 = arith.constant 0.000000e+00 : f32
    %55 = vector.broadcast %cst_42 : f32 to vector<8x32xf32>
    %56 = arith.subf %55, %54 : vector<8x32xf32>
    %57 = math.exp %56 : vector<8x32xf32>
    %cst_43 = arith.constant 1.000000e+00 : f32
    %58 = vector.broadcast %cst_43 : f32 to vector<8x32xf32>
    %59 = arith.addf %58, %57 : vector<8x32xf32>
    %60 = tpu.reciprocal %59 {approx = true} : vector<8x32xf32> -> vector<8x32xf32>
    %61 = arith.mulf %54, %60 : vector<8x32xf32>
    %c0_44 = arith.constant 0 : index
    %c0_45 = arith.constant 0 : index
    %c0_46 = arith.constant 0 : index
    %62 = vector.load %arg17[%c0_44, %c0_45, %c0_46] : memref<1x32x32xf32, #tpu.memory_space<vmem>>, vector<1x32x32xf32>
    %63 = vector.shape_cast %62 : vector<1x32x32xf32> to vector<32x32xf32>
    %cst_47 = arith.constant dense<0.000000e+00> : vector<8x32xf32>
    %64 = tpu.matmul %61, %63, %cst_47 {dimension_numbers = #tpu.dot_dimension_numbers<[1], [0], [0], [1], [0, 0, 1, 1], [], []>} : vector<8x32xf32>, vector<32x32xf32>, vector<8x32xf32> -> vector<8x32xf32>
    %65 = arith.addf %3, %64 : vector<8x32xf32>
    %c0_48 = arith.constant 0 : index
    %c0_49 = arith.constant 0 : index
    %c0_50 = arith.constant 0 : index
    %66 = vector.load %arg18[%c0_48, %c0_49, %c0_50] : memref<1x1x32xf32, #tpu.memory_space<vmem>>, vector<1x1x32xf32>
    %67 = vector.shape_cast %66 : vector<1x1x32xf32> to vector<1x32xf32>
    %68 = vector.broadcast %67 : vector<1x32xf32> to vector<8x32xf32>
    %69 = arith.addf %65, %68 : vector<8x32xf32>
    %c0_51 = arith.constant 0 : index
    %c0_52 = arith.constant 0 : index
    %70 = vector.load %arg28[%c0_51, %c0_52] : memref<8x32xf32, #tpu.memory_space<vmem>>, vector<8x32xf32>
    tpu.vector_store %arg28[%c0_51, %c0_52], %69 {strides = array<i32>} : memref<8x32xf32, #tpu.memory_space<vmem>>, vector<8x32xf32>,
    %c3_i32 = arith.constant 3 : i32
    %71 = arith.cmpi eq, %arg0, %c3_i32 : i32
    %72 = arith.extui %71 : i1 to i32
    %c0_i32_53 = arith.constant 0 : i32
    %73 = arith.cmpi ne, %72, %c0_i32_53 : i32
    scf.if %73 {
      %c0_54 = arith.constant 0 : index
      %c0_55 = arith.constant 0 : index
      %c0_56 = arith.constant 0 : index
      %74 = vector.load %arg19[%c0_54, %c0_55, %c0_56] : memref<1x32x32xf32, #tpu.memory_space<vmem>>, vector<1x32x32xf32>
      %75 = vector.shape_cast %74 : vector<1x32x32xf32> to vector<32x32xf32>
      %cst_57 = arith.constant dense<0.000000e+00> : vector<24x32xf32>
      %76 = tpu.matmul %43, %75, %cst_57 {dimension_numbers = #tpu.dot_dimension_numbers<[1], [0], [0], [1], [0, 0, 1, 1], [], []>} : vector<24x32xf32>, vector<32x32xf32>, vector<24x32xf32> -> vector<24x32xf32>
      %c0_58 = arith.constant 0 : index
      %c0_59 = arith.constant 0 : index
      %c0_60 = arith.constant 0 : index
      %77 = vector.load %arg20[%c0_58, %c0_59, %c0_60] : memref<1x1x32xf32, #tpu.memory_space<vmem>>, vector<1x1x32xf32>
      %78 = vector.shape_cast %77 : vector<1x1x32xf32> to vector<1x32xf32>
      %79 = vector.broadcast %78 : vector<1x32xf32> to vector<24x32xf32>
      %80 = arith.addf %76, %79 : vector<24x32xf32>
      %cst_61 = arith.constant 0.000000e+00 : f32
      %81 = vector.broadcast %cst_61 : f32 to vector<24x32xf32>
      %82 = arith.subf %81, %80 : vector<24x32xf32>
      %83 = math.exp %82 : vector<24x32xf32>
      %cst_62 = arith.constant 1.000000e+00 : f32
      %84 = vector.broadcast %cst_62 : f32 to vector<24x32xf32>
      %85 = arith.addf %84, %83 : vector<24x32xf32>
      %86 = tpu.reciprocal %85 {approx = true} : vector<24x32xf32> -> vector<24x32xf32>
      %87 = arith.mulf %80, %86 : vector<24x32xf32>
      %c0_63 = arith.constant 0 : index
      %c0_64 = arith.constant 0 : index
      %c0_65 = arith.constant 0 : index
      %88 = vector.load %arg21[%c0_63, %c0_64, %c0_65] : memref<1x32x1xf32, #tpu.memory_space<vmem>>, vector<1x32x1xf32>
      %89 = vector.shape_cast %88 : vector<1x32x1xf32> to vector<32x1xf32>
      %cst_66 = arith.constant dense<0.000000e+00> : vector<24x1xf32>
      %90 = tpu.matmul %87, %89, %cst_66 {dimension_numbers = #tpu.dot_dimension_numbers<[1], [0], [0], [1], [0, 0, 1, 1], [], []>} : vector<24x32xf32>, vector<32x1xf32>, vector<24x1xf32> -> vector<24x1xf32>
      %c0_67 = arith.constant 0 : index
      %c0_68 = arith.constant 0 : index
      %91 = vector.load %arg30[%c0_67, %c0_68] : memref<24x3xf32, #tpu.memory_space<vmem>>, vector<24x3xf32>
      %92 = vector.broadcast %90 : vector<24x1xf32> to vector<24x3xf32>
      %93 = arith.mulf %91, %92 : vector<24x3xf32>
      %cst_69 = arith.constant 1.000000e+00 : f32
      %94 = vector.broadcast %cst_69 : f32 to vector<24x1xf32>
      %95 = tpu.concatenate %93, %94 in 1 : vector<24x3xf32>, vector<24x1xf32> -> vector<24x4xf32>
      %c0_70 = arith.constant 0 : index
      %c0_71 = arith.constant 0 : index
      %96 = vector.load %arg4[%c0_70, %c0_71] : memref<8x24xbf16, #tpu.memory_space<vmem>>, vector<8x24xbf16>
      %97 = arith.extf %96 : vector<8x24xbf16> to vector<8x24xf32>
      %cst_72 = arith.constant dense<0.000000e+00> : vector<8x4xf32>
      %98 = tpu.matmul %97, %95, %cst_72 {dimension_numbers = #tpu.dot_dimension_numbers<[1], [0], [0], [1], [0, 0, 1, 1], [], []>} : vector<8x24xf32>, vector<24x4xf32>, vector<8x4xf32> -> vector<8x4xf32>
      %99 = vector.extract_strided_slice %98 {offsets = [0, 3], sizes = [8, 1], strides = [1, 1]} : vector<8x4xf32> to vector<8x1xf32>
      %cst_73 = arith.constant 1.000000e+00 : f32
      %100 = vector.broadcast %cst_73 : f32 to vector<8x1xf32>
      %101 = arith.maximumf %99, %100 : vector<8x1xf32>
      %102 = vector.extract_strided_slice %98 {offsets = [0, 0], sizes = [8, 3], strides = [1, 1]} : vector<8x4xf32> to vector<8x3xf32>
      %103 = tpu.reciprocal %101 {approx = true} : vector<8x1xf32> -> vector<8x1xf32>
      %104 = vector.broadcast %103 : vector<8x1xf32> to vector<8x3xf32>
      %105 = arith.mulf %102, %104 : vector<8x3xf32>
      %c0_74 = arith.constant 0 : index
      %c0_75 = arith.constant 0 : index
      %106 = vector.load %arg27[%c0_74, %c0_75] : memref<8x3xf32, #tpu.memory_space<vmem>>, vector<8x3xf32>
      tpu.vector_store %arg27[%c0_74, %c0_75], %105 {strides = array<i32>} : memref<8x3xf32, #tpu.memory_space<vmem>>, vector<8x3xf32>,
      %c0_76 = arith.constant 0 : index
      %c0_77 = arith.constant 0 : index
      %107 = vector.load %arg22[%c0_76, %c0_77] : memref<32x32xf32, #tpu.memory_space<vmem>>, vector<32x32xf32>
      %cst_78 = arith.constant dense<0.000000e+00> : vector<8x32xf32>
      %108 = tpu.matmul %69, %107, %cst_78 {dimension_numbers = #tpu.dot_dimension_numbers<[1], [0], [0], [1], [0, 0, 1, 1], [], []>} : vector<8x32xf32>, vector<32x32xf32>, vector<8x32xf32> -> vector<8x32xf32>
      %c0_79 = arith.constant 0 : index
      %c0_80 = arith.constant 0 : index
      %109 = vector.load %arg23[%c0_79, %c0_80] : memref<1x32xf32, #tpu.memory_space<vmem>>, vector<1x32xf32>
      %110 = vector.broadcast %109 : vector<1x32xf32> to vector<8x32xf32>
      %111 = arith.addf %108, %110 : vector<8x32xf32>
      %cst_81 = arith.constant 0.000000e+00 : f32
      %112 = vector.broadcast %cst_81 : f32 to vector<8x32xf32>
      %113 = arith.subf %112, %111 : vector<8x32xf32>
      %114 = math.exp %113 : vector<8x32xf32>
      %cst_82 = arith.constant 1.000000e+00 : f32
      %115 = vector.broadcast %cst_82 : f32 to vector<8x32xf32>
      %116 = arith.addf %115, %114 : vector<8x32xf32>
      %117 = tpu.reciprocal %116 {approx = true} : vector<8x32xf32> -> vector<8x32xf32>
      %118 = arith.mulf %111, %117 : vector<8x32xf32>
      %c0_83 = arith.constant 0 : index
      %c0_84 = arith.constant 0 : index
      %119 = vector.load %arg24[%c0_83, %c0_84] : memref<32x1xf32, #tpu.memory_space<vmem>>, vector<32x1xf32>
      %cst_85 = arith.constant dense<0.000000e+00> : vector<8x1xf32>
      %120 = tpu.matmul %118, %119, %cst_85 {dimension_numbers = #tpu.dot_dimension_numbers<[1], [0], [0], [1], [0, 0, 1, 1], [], []>} : vector<8x32xf32>, vector<32x1xf32>, vector<8x1xf32> -> vector<8x1xf32>
      %c0_86 = arith.constant 0 : index
      %c0_87 = arith.constant 0 : index
      %121 = vector.load %arg25[%c0_86, %c0_87] : memref<1x1xf32, #tpu.memory_space<vmem>>, vector<1x1xf32>
      %122 = vector.broadcast %121 : vector<1x1xf32> to vector<8x1xf32>
      %123 = arith.addf %120, %122 : vector<8x1xf32>
      %c0_88 = arith.constant 0 : index
      %c0_89 = arith.constant 0 : index
      %124 = vector.load %arg6[%c0_88, %c0_89] : memref<2x8xf32, #tpu.memory_space<vmem>>, vector<2x8xf32>
      %cst_90 = arith.constant dense<0.000000e+00> : vector<2x1xf32>
      %125 = tpu.matmul %124, %123, %cst_90 {dimension_numbers = #tpu.dot_dimension_numbers<[1], [0], [0], [1], [0, 0, 1, 1], [], []>} : vector<2x8xf32>, vector<8x1xf32>, vector<2x1xf32> -> vector<2x1xf32>
      %cst_91 = arith.constant 1.000000e+00 : f32
      %126 = vector.broadcast %cst_91 : f32 to vector<2x1xf32>
      %127 = arith.mulf %125, %126 : vector<2x1xf32>
      %cst_92 = arith.constant 0.000000e+00 : f32
      %128 = vector.broadcast %cst_92 : f32 to vector<2x1xf32>
      %129 = arith.addf %127, %128 : vector<2x1xf32>
      %c0_93 = arith.constant 0 : index
      %c0_94 = arith.constant 0 : index
      %130 = vector.load %arg26[%c0_93, %c0_94] : memref<2x1xf32, #tpu.memory_space<vmem>>, vector<2x1xf32>
      tpu.vector_store %arg26[%c0_93, %c0_94], %129 {strides = array<i32>} : memref<2x1xf32, #tpu.memory_space<vmem>>, vector<2x1xf32>,
    } else {
    }
    return
  }
  func.func @transform_0(%arg0: i32) -> (i32, i32) {
    %c0_i32 = arith.constant 0 : i32
    %c0_i32_0 = arith.constant 0 : i32
    %c0_i32_1 = arith.constant 0 : i32
    return %c0_i32, %c0_i32_0 : i32, i32
  }
  func.func @transform_1(%arg0: i32) -> (i32, i32) {
    %c0_i32 = arith.constant 0 : i32
    %c0_i32_0 = arith.constant 0 : i32
    %c0_i32_1 = arith.constant 0 : i32
    return %c0_i32, %c0_i32_0 : i32, i32
  }
  func.func @transform_2(%arg0: i32) -> (i32, i32) {
    %c0_i32 = arith.constant 0 : i32
    %c0_i32_0 = arith.constant 0 : i32
    %c0_i32_1 = arith.constant 0 : i32
    return %c0_i32, %c0_i32_0 : i32, i32
  }
  func.func @transform_3(%arg0: i32) -> (i32, i32) {
    %c0_i32 = arith.constant 0 : i32
    %c0_i32_0 = arith.constant 0 : i32
    %c0_i32_1 = arith.constant 0 : i32
    return %c0_i32, %c0_i32_0 : i32, i32
  }
  func.func @transform_4(%arg0: i32) -> (i32, i32) {
    %c0_i32 = arith.constant 0 : i32
    %c0_i32_0 = arith.constant 0 : i32
    %c0_i32_1 = arith.constant 0 : i32
    return %c0_i32, %c0_i32_0 : i32, i32
  }
  func.func @transform_5(%arg0: i32) -> (i32, i32) {
    %c0_i32 = arith.constant 0 : i32
    %c0_i32_0 = arith.constant 0 : i32
    %c0_i32_1 = arith.constant 0 : i32
    return %c0_i32, %c0_i32_0 : i32, i32
  }
  func.func @transform_6(%arg0: i32) -> (i32, i32) {
    %c0_i32 = arith.constant 0 : i32
    %c0_i32_0 = arith.constant 0 : i32
    %c0_i32_1 = arith.constant 0 : i32
    return %c0_i32, %c0_i32_0 : i32, i32
  }
  func.func @transform_7(%arg0: i32) -> (i32, i32) {
    %c0_i32 = arith.constant 0 : i32
    %c0_i32_0 = arith.constant 0 : i32
    %c0_i32_1 = arith.constant 0 : i32
    return %c0_i32, %c0_i32_0 : i32, i32
  }
  func.func @transform_8(%arg0: i32) -> (i32, i32, i32) {
    %c0_i32 = arith.constant 0 : i32
    %c0_i32_0 = arith.constant 0 : i32
    %c0_i32_1 = arith.constant 0 : i32
    return %arg0, %c0_i32, %c0_i32_0 : i32, i32, i32
  }
  func.func @transform_9(%arg0: i32) -> (i32, i32, i32) {
    %c0_i32 = arith.constant 0 : i32
    %c0_i32_0 = arith.constant 0 : i32
    %c0_i32_1 = arith.constant 0 : i32
    return %arg0, %c0_i32, %c0_i32_0 : i32, i32, i32
  }
  func.func @transform_10(%arg0: i32) -> (i32, i32, i32) {
    %c0_i32 = arith.constant 0 : i32
    %c0_i32_0 = arith.constant 0 : i32
    %c0_i32_1 = arith.constant 0 : i32
    return %arg0, %c0_i32, %c0_i32_0 : i32, i32, i32
  }
  func.func @transform_11(%arg0: i32) -> (i32, i32, i32) {
    %c0_i32 = arith.constant 0 : i32
    %c0_i32_0 = arith.constant 0 : i32
    %c0_i32_1 = arith.constant 0 : i32
    return %arg0, %c0_i32, %c0_i32_0 : i32, i32, i32
  }
  func.func @transform_12(%arg0: i32) -> (i32, i32, i32) {
    %c0_i32 = arith.constant 0 : i32
    %c0_i32_0 = arith.constant 0 : i32
    %c0_i32_1 = arith.constant 0 : i32
    return %arg0, %c0_i32, %c0_i32_0 : i32, i32, i32
  }
  func.func @transform_13(%arg0: i32) -> (i32, i32, i32) {
    %c0_i32 = arith.constant 0 : i32
    %c0_i32_0 = arith.constant 0 : i32
    %c0_i32_1 = arith.constant 0 : i32
    return %arg0, %c0_i32, %c0_i32_0 : i32, i32, i32
  }
  func.func @transform_14(%arg0: i32) -> (i32, i32, i32) {
    %c0_i32 = arith.constant 0 : i32
    %c0_i32_0 = arith.constant 0 : i32
    %c0_i32_1 = arith.constant 0 : i32
    return %arg0, %c0_i32, %c0_i32_0 : i32, i32, i32
  }
  func.func @transform_15(%arg0: i32) -> (i32, i32, i32) {
    %c0_i32 = arith.constant 0 : i32
    %c0_i32_0 = arith.constant 0 : i32
    %c0_i32_1 = arith.constant 0 : i32
    return %arg0, %c0_i32, %c0_i32_0 : i32, i32, i32
  }
  func.func @transform_16(%arg0: i32) -> (i32, i32, i32) {
    %c0_i32 = arith.constant 0 : i32
    %c0_i32_0 = arith.constant 0 : i32
    %c0_i32_1 = arith.constant 0 : i32
    return %arg0, %c0_i32, %c0_i32_0 : i32, i32, i32
  }
  func.func @transform_17(%arg0: i32) -> (i32, i32, i32) {
    %c0_i32 = arith.constant 0 : i32
    %c0_i32_0 = arith.constant 0 : i32
    %c0_i32_1 = arith.constant 0 : i32
    return %arg0, %c0_i32, %c0_i32_0 : i32, i32, i32
  }
  func.func @transform_18(%arg0: i32) -> (i32, i32, i32) {
    %c0_i32 = arith.constant 0 : i32
    %c0_i32_0 = arith.constant 0 : i32
    %c0_i32_1 = arith.constant 0 : i32
    return %arg0, %c0_i32, %c0_i32_0 : i32, i32, i32
  }
  func.func @transform_19(%arg0: i32) -> (i32, i32, i32) {
    %c0_i32 = arith.constant 0 : i32
    %c0_i32_0 = arith.constant 0 : i32
    %c0_i32_1 = arith.constant 0 : i32
    return %arg0, %c0_i32, %c0_i32_0 : i32, i32, i32
  }
  func.func @transform_20(%arg0: i32) -> (i32, i32, i32) {
    %c0_i32 = arith.constant 0 : i32
    %c0_i32_0 = arith.constant 0 : i32
    %c0_i32_1 = arith.constant 0 : i32
    return %arg0, %c0_i32, %c0_i32_0 : i32, i32, i32
  }
  func.func @transform_21(%arg0: i32) -> (i32, i32) {
    %c0_i32 = arith.constant 0 : i32
    %c0_i32_0 = arith.constant 0 : i32
    %c0_i32_1 = arith.constant 0 : i32
    return %c0_i32, %c0_i32_0 : i32, i32
  }
  func.func @transform_22(%arg0: i32) -> (i32, i32) {
    %c0_i32 = arith.constant 0 : i32
    %c0_i32_0 = arith.constant 0 : i32
    %c0_i32_1 = arith.constant 0 : i32
    return %c0_i32, %c0_i32_0 : i32, i32
  }
  func.func @transform_23(%arg0: i32) -> (i32, i32) {
    %c0_i32 = arith.constant 0 : i32
    %c0_i32_0 = arith.constant 0 : i32
    %c0_i32_1 = arith.constant 0 : i32
    return %c0_i32, %c0_i32_0 : i32, i32
  }
  func.func @transform_24(%arg0: i32) -> (i32, i32) {
    %c0_i32 = arith.constant 0 : i32
    %c0_i32_0 = arith.constant 0 : i32
    %c0_i32_1 = arith.constant 0 : i32
    return %c0_i32, %c0_i32_0 : i32, i32
  }
  func.func @transform_25(%arg0: i32) -> (i32, i32) {
    %c0_i32 = arith.constant 0 : i32
    %c0_i32_0 = arith.constant 0 : i32
    %c0_i32_1 = arith.constant 0 : i32
    return %c0_i32, %c0_i32_0 : i32, i32
  }
  func.func @transform_26(%arg0: i32) -> (i32, i32) {
    %c0_i32 = arith.constant 0 : i32
    %c0_i32_0 = arith.constant 0 : i32
    %c0_i32_1 = arith.constant 0 : i32
    return %c0_i32, %c0_i32_0 : i32, i32
  }
}

</mosaic_0001>

<llo_original>
// kernel: tpu_custom_call.1
$region0: #{tpu_custom_call.1}
  #allocation0 [shape = 'u32[]', space=smem, size = 0x4, offset = 0x4, fixed_abs, tag = 'smem constant byte address 0x4 - core index']
  #allocation1 [shape = 'u32[144,128]{1,0:T(1,128)}', space=vmem, size = 0x12000, scoped, tag = 'internal scratch']
  #allocation2 [shape = 'f32[8,32]{1,0:T(8,128)}', space=vmem, size = 0x1000, scoped, tag = 'scratch operand']
  #allocation3 [shape = 'f32[24,3]{1,0:T(8,128)}', space=vmem, size = 0x3000, scoped, tag = 'scratch operand']
  #allocation4 [shape = 'f32[24,3]{1,0:T(8,128)}', space=vmem, size = 0x3000, scoped, tag = 'scratch operand']
  #allocation5 [shape = 'f32[1,1]{1,0:T(1,128)S(1)}', space=vmem, size = 0x200, scoped, tag = 'scoped memory for tpu_custom_call.1']
  %s0 = inlined_call_operand.hbm [shape: f32[8,5], index: 0, kind: input, shape index: {}]
  %s1 = inlined_call_operand.vmem [shape: f32[8,3], index: 1, kind: input, shape index: {}]
  %s2 = inlined_call_operand.vmem [shape: bf16[24,16], index: 2, kind: input, shape index: {}]
  %s3 = inlined_call_operand.hbm [shape: bf16[8,24], index: 3, kind: input, shape index: {}]
  %s4 = inlined_call_operand.vmem [shape: f32[24,2], index: 4, kind: input, shape index: {}]
  %s5 = inlined_call_operand.hbm [shape: f32[2,8], index: 5, kind: input, shape index: {}]
  %s6 = inlined_call_operand.hbm [shape: f32[5,32], index: 6, kind: input, shape index: {}]
  %s7 = inlined_call_operand.hbm [shape: f32[1,32], index: 7, kind: input, shape index: {}]
  %s8 = inlined_call_operand.vmem [shape: f32[4,32,32], index: 8, kind: input, shape index: {}]
  %s9 = inlined_call_operand.vmem [shape: f32[4,32,32], index: 9, kind: input, shape index: {}]
  %s10 = inlined_call_operand.vmem [shape: f32[4,3,32], index: 10, kind: input, shape index: {}]
  %s11 = inlined_call_operand.vmem [shape: f32[4,1,32], index: 11, kind: input, shape index: {}]
  %s12 = inlined_call_operand.vmem [shape: f32[4,32,32], index: 12, kind: input, shape index: {}]
  %s13 = inlined_call_operand.vmem [shape: f32[4,1,32], index: 13, kind: input, shape index: {}]
  %s14 = inlined_call_operand.vmem [shape: f32[4,64,32], index: 14, kind: input, shape index: {}]
  %s15 = inlined_call_operand.vmem [shape: f32[4,1,32], index: 15, kind: input, shape index: {}]
  %s16 = inlined_call_operand.vmem [shape: f32[4,32,32], index: 16, kind: input, shape index: {}]
  %s17 = inlined_call_operand.vmem [shape: f32[4,1,32], index: 17, kind: input, shape index: {}]
  %s18 = inlined_call_operand.hbm [shape: f32[4,32,32], index: 18, kind: input, shape index: {}]
  %s19 = inlined_call_operand.vmem [shape: f32[4,1,32], index: 19, kind: input, shape index: {}]
  %s20 = inlined_call_operand.vmem [shape: f32[4,32,1], index: 20, kind: input, shape index: {}]
  %s21 = inlined_call_operand.vmem [shape: f32[32,32], index: 21, kind: input, shape index: {}]
  %s22 = inlined_call_operand.vmem [shape: f32[1,32], index: 22, kind: input, shape index: {}]
  %s23 = inlined_call_operand.vmem [shape: f32[32,1], index: 23, kind: input, shape index: {}]
  %s24 = inlined_call_operand.<no memory space> [shape: f32[1,1], index: 24, kind: input, shape index: {}]
  %s25 = inlined_call_operand.vmem [shape: f32[2,1], index: 25, kind: output, shape index: {0}]
  %s26 = inlined_call_operand.vmem [shape: f32[8,3], index: 26, kind: output, shape index: {1}]
  %27 = xla_tuple %s25, %s26
  %s28 = sld [smem:[#allocation0]]
  $region173: #{tpu_custom_call.1} parent=0
    _
  %s30 = ssub.s32 1, %s28
  %s31 = scalar_select 0, %s30, %s28
  %v32 = vstv %s24
  %33 = vst [vmem:[#allocation5] sm:$0x1] %v32
  $region1: #{tpu_custom_call.1} parent=0
    #allocation6 [shape = 'u8[4096]{0}', space=vmem, size = 0x1000, scoped, tag = 'input window, operand 0, single buffered']
    #allocation7 [shape = 's32[2]{0}', space=sflag, size = 0x8, scoped, tag = 'scoped memory for tpu_custom_call.1']
    #allocation8 [shape = 'u8[2048]{0}', space=vmem, size = 0x800, scoped, tag = 'input window, operand 3, single buffered']
    #allocation9 [shape = 's32[1]{0}', space=sflag, size = 0x4, scoped, tag = 'scoped memory for tpu_custom_call.1']
    #allocation10 [shape = 'u8[1024]{0}', space=vmem, size = 0x400, scoped, tag = 'input window, operand 5, single buffered']
    #allocation11 [shape = 'u8[4096]{0}', space=vmem, size = 0x1000, scoped, tag = 'input window, operand 6, single buffered']
    #allocation12 [shape = 's32[1]{0}', space=sflag, size = 0x4, scoped, tag = 'scoped memory for tpu_custom_call.1']
    #allocation13 [shape = 'u8[512]{0}', space=vmem, size = 0x400, scoped, tag = 'input window, operand 7, single buffered']
    #allocation14 [shape = 'u8[32768]{0}', space=vmem, size = 0x8000, scoped, tag = 'input window, operand 18']
    #allocation15 [shape = 's32[2]{0}', space=sflag, size = 0x8, scoped, tag = 'scoped memory for tpu_custom_call.1']
    %34 = vsyncpa [#allocation7], 0
    %35 = vsyncpa [#allocation9], 0
    %36 = vsyncpa [#allocation12], 0
    %37 = vsyncpa [#allocation15], 0
    %s38 = scalar_lea.sflag [#allocation15], 1
    %39 = vsyncpa %s38, 0
    loop: start=0, step=1, limit=6
    $region2: #{tpu_custom_call.1} parent=1 // loop_pre_header
      _
    $region3: #{tpu_custom_call.1} parent=1 // loop_header
      %s41 = sphi 0, %s45
      %p42 = scmp.ge.s32.totalorder %s41, 6
      %s49 = sphi 0, %s49
      %s51 = sphi 0, %s49
      %s52 = sphi 0, %s51
      %s66 = sphi 0, %s52
      %s70 = sphi 0, %s70
      %s72 = sphi 0, %s70
      %s73 = sphi 0, %s72
      %s87 = sphi 0, %s73
      %s91 = sphi 0, %s91
      %s93 = sphi 0, %s91
      %s94 = sphi 0, %s93
      %s108 = sphi 0, %s94
      %s112 = sphi 0, %s112
      %s114 = sphi 0, %s112
      %s115 = sphi 0, %s114
      %s129 = sphi 0, %s115
      %s133 = sphi 0, %s133
      %s135 = sphi 0, %s133
      %s136 = sphi 0, %s135
      %s150 = sphi 0, %s136
      %s154 = sphi 0, %s154
      %s156 = sphi 0, %s154
      %s157 = sphi 0, %s156
      %s171 = sphi 0, %s157
      %s175 = sphi 0, %s175
      %s177 = sphi 0, %s175
      %s178 = sphi 0, %s177
      %s192 = sphi 0, %s178
      %s196 = sphi 0, %s196
      %s198 = sphi 0, %s196
      %s199 = sphi 0, %s198
      %s213 = sphi 0, %s199
      %s219 = sphi 0, %s221
      %s222 = sphi 0, %s219
      %s223 = sphi 0, %s222
      %s239 = sphi 0, %s223
      %s245 = sphi 0, %s247
      %s248 = sphi 0, %s245
      %s249 = sphi 0, %s248
      %s265 = sphi 0, %s249
      %s271 = sphi 0, %s273
      %s274 = sphi 0, %s271
      %s275 = sphi 0, %s274
      %s291 = sphi 0, %s275
      %s297 = sphi 0, %s299
      %s300 = sphi 0, %s297
      %s301 = sphi 0, %s300
      %s317 = sphi 0, %s301
      %s323 = sphi 0, %s325
      %s326 = sphi 0, %s323
      %s327 = sphi 0, %s326
      %s343 = sphi 0, %s327
      %s349 = sphi 0, %s351
      %s352 = sphi 0, %s349
      %s353 = sphi 0, %s352
      %s369 = sphi 0, %s353
      %s375 = sphi 0, %s377
      %s378 = sphi 0, %s375
      %s379 = sphi 0, %s378
      %s395 = sphi 0, %s379
      %s401 = sphi 0, %s403
      %s404 = sphi 0, %s401
      %s405 = sphi 0, %s404
      %s421 = sphi 0, %s405
      %s427 = sphi 0, %s429
      %s430 = sphi 0, %s427
      %s431 = sphi 0, %s430
      %s447 = sphi 0, %s431
      %s453 = sphi 0, %s455
      %s456 = sphi 0, %s453
      %s457 = sphi 0, %s456
      %s473 = sphi 0, %s457
      %s479 = sphi 0, %s481
      %s482 = sphi 0, %s479
      %s483 = sphi 0, %s482
      %s499 = sphi 0, %s483
      %s505 = sphi 0, %s507
      %s508 = sphi 0, %s505
      %s509 = sphi 0, %s508
      %s525 = sphi 0, %s509
      %s531 = sphi 0, %s533
      %s534 = sphi 0, %s531
      %s535 = sphi 0, %s534
      %s551 = sphi 0, %s535
      %s555 = sphi 0, %s555
      %s557 = sphi 0, %s555
      %s558 = sphi 0, %s557
      %s572 = sphi 0, %s558
      %s576 = sphi 0, %s576
      %s578 = sphi 0, %s576
      %s579 = sphi 0, %s578
      %s593 = sphi 0, %s579
      %s597 = sphi 0, %s597
      %s599 = sphi 0, %s597
      %s600 = sphi 0, %s599
      %s614 = sphi 0, %s600
      %s618 = sphi 0, %s618
      %s620 = sphi 0, %s618
      %s621 = sphi 0, %s620
      %s635 = sphi 0, %s621
      %s639 = sphi 0, %s639
      %s641 = sphi 0, %s639
      %s642 = sphi 0, %s641
      %s656 = sphi 0, %s642
      %s660 = sphi 0, %s660
      %s662 = sphi 0, %s660
      %s663 = sphi 0, %s662
      %s677 = sphi 0, %s663
    $region4: #{tpu_custom_call.1} parent=1 // loop_header_branch
      %44 = sbr.rel (%p42) target = $region8
    $region5: #{tpu_custom_call.1} parent=1 // loop_body
      %s46 = ssub.s32 %s41, 1
      %s47 = ssub.s32 %s41, 2
      %s48 = sadd.s32 %s41, 1
      %s50 = sadd.s32 %s49, 1
      %p53 = scmp.eq.s32.totalorder %s41, 3
      %p54 = scmp.ne.s32.totalorder %s49, %s51
      %p55 = scmp.eq.s32.totalorder %s41, 0
      %p56 = por %p54, %p55
      %p57 = scmp.ne.s32.totalorder %s49, %s51
      %p58 = scmp.eq.s32.totalorder %s46, 3
      %p59 = por %p57, %p58
      %p60 = scmp.ne.s32.totalorder %s51, %s52
      %p61 = scmp.eq.s32.totalorder %s46, 0
      %p62 = por %p60, %p61
      %p63 = scmp.ne.s32.totalorder %s51, %s52
      %p64 = scmp.eq.s32.totalorder %s47, 3
      %p65 = por %p63, %p64
      %p67 = scmp.ne.s32.totalorder %s52, %s66
      %p68 = scmp.eq.s32.totalorder %s47, 0
      %p69 = por %p67, %p68
      %s71 = sadd.s32 %s70, 1
      %p74 = scmp.eq.s32.totalorder %s41, 3
      %p75 = scmp.ne.s32.totalorder %s70, %s72
      %p76 = scmp.eq.s32.totalorder %s41, 0
      %p77 = por %p75, %p76
      %p78 = scmp.ne.s32.totalorder %s70, %s72
      %p79 = scmp.eq.s32.totalorder %s46, 3
      %p80 = por %p78, %p79
      %p81 = scmp.ne.s32.totalorder %s72, %s73
      %p82 = scmp.eq.s32.totalorder %s46, 0
      %p83 = por %p81, %p82
      %p84 = scmp.ne.s32.totalorder %s72, %s73
      %p85 = scmp.eq.s32.totalorder %s47, 3
      %p86 = por %p84, %p85
      %p88 = scmp.ne.s32.totalorder %s73, %s87
      %p89 = scmp.eq.s32.totalorder %s47, 0
      %p90 = por %p88, %p89
      %s92 = sadd.s32 %s91, 1
      %p95 = scmp.eq.s32.totalorder %s41, 3
      %p96 = scmp.ne.s32.totalorder %s91, %s93
      %p97 = scmp.eq.s32.totalorder %s41, 0
      %p98 = por %p96, %p97
      %p99 = scmp.ne.s32.totalorder %s91, %s93
      %p100 = scmp.eq.s32.totalorder %s46, 3
      %p101 = por %p99, %p100
      %p102 = scmp.ne.s32.totalorder %s93, %s94
      %p103 = scmp.eq.s32.totalorder %s46, 0
      %p104 = por %p102, %p103
      %p105 = scmp.ne.s32.totalorder %s93, %s94
      %p106 = scmp.eq.s32.totalorder %s47, 3
      %p107 = por %p105, %p106
      %p109 = scmp.ne.s32.totalorder %s94, %s108
      %p110 = scmp.eq.s32.totalorder %s47, 0
      %p111 = por %p109, %p110
      %s113 = sadd.s32 %s112, 1
      %p116 = scmp.eq.s32.totalorder %s41, 3
      %p117 = scmp.ne.s32.totalorder %s112, %s114
      %p118 = scmp.eq.s32.totalorder %s41, 0
      %p119 = por %p117, %p118
      %p120 = scmp.ne.s32.totalorder %s112, %s114
      %p121 = scmp.eq.s32.totalorder %s46, 3
      %p122 = por %p120, %p121
      %p123 = scmp.ne.s32.totalorder %s114, %s115
      %p124 = scmp.eq.s32.totalorder %s46, 0
      %p125 = por %p123, %p124
      %p126 = scmp.ne.s32.totalorder %s114, %s115
      %p127 = scmp.eq.s32.totalorder %s47, 3
      %p128 = por %p126, %p127
      %p130 = scmp.ne.s32.totalorder %s115, %s129
      %p131 = scmp.eq.s32.totalorder %s47, 0
      %p132 = por %p130, %p131
      %s134 = sadd.s32 %s133, 1
      %p137 = scmp.eq.s32.totalorder %s41, 3
      %p138 = scmp.ne.s32.totalorder %s133, %s135
      %p139 = scmp.eq.s32.totalorder %s41, 0
      %p140 = por %p138, %p139
      %p141 = scmp.ne.s32.totalorder %s133, %s135
      %p142 = scmp.eq.s32.totalorder %s46, 3
      %p143 = por %p141, %p142
      %p144 = scmp.ne.s32.totalorder %s135, %s136
      %p145 = scmp.eq.s32.totalorder %s46, 0
      %p146 = por %p144, %p145
      %p147 = scmp.ne.s32.totalorder %s135, %s136
      %p148 = scmp.eq.s32.totalorder %s47, 3
      %p149 = por %p147, %p148
      %p151 = scmp.ne.s32.totalorder %s136, %s150
      %p152 = scmp.eq.s32.totalorder %s47, 0
      %p153 = por %p151, %p152
      %s155 = sadd.s32 %s154, 1
      %p158 = scmp.eq.s32.totalorder %s41, 3
      %p159 = scmp.ne.s32.totalorder %s154, %s156
      %p160 = scmp.eq.s32.totalorder %s41, 0
      %p161 = por %p159, %p160
      %p162 = scmp.ne.s32.totalorder %s154, %s156
      %p163 = scmp.eq.s32.totalorder %s46, 3
      %p164 = por %p162, %p163
      %p165 = scmp.ne.s32.totalorder %s156, %s157
      %p166 = scmp.eq.s32.totalorder %s46, 0
      %p167 = por %p165, %p166
      %p168 = scmp.ne.s32.totalorder %s156, %s157
      %p169 = scmp.eq.s32.totalorder %s47, 3
      %p170 = por %p168, %p169
      %p172 = scmp.ne.s32.totalorder %s157, %s171
      %p173 = scmp.eq.s32.totalorder %s47, 0
      %p174 = por %p172, %p173
      %s176 = sadd.s32 %s175, 1
      %p179 = scmp.eq.s32.totalorder %s41, 3
      %p180 = scmp.ne.s32.totalorder %s175, %s177
      %p181 = scmp.eq.s32.totalorder %s41, 0
      %p182 = por %p180, %p181
      %p183 = scmp.ne.s32.totalorder %s175, %s177
      %p184 = scmp.eq.s32.totalorder %s46, 3
      %p185 = por %p183, %p184
      %p186 = scmp.ne.s32.totalorder %s177, %s178
      %p187 = scmp.eq.s32.totalorder %s46, 0
      %p188 = por %p186, %p187
      %p189 = scmp.ne.s32.totalorder %s177, %s178
      %p190 = scmp.eq.s32.totalorder %s47, 3
      %p191 = por %p189, %p190
      %p193 = scmp.ne.s32.totalorder %s178, %s192
      %p194 = scmp.eq.s32.totalorder %s47, 0
      %p195 = por %p193, %p194
      %s197 = sadd.s32 %s196, 1
      %p200 = scmp.eq.s32.totalorder %s41, 3
      %p201 = scmp.ne.s32.totalorder %s196, %s198
      %p202 = scmp.eq.s32.totalorder %s41, 0
      %p203 = por %p201, %p202
      %p204 = scmp.ne.s32.totalorder %s196, %s198
      %p205 = scmp.eq.s32.totalorder %s46, 3
      %p206 = por %p204, %p205
      %p207 = scmp.ne.s32.totalorder %s198, %s199
      %p208 = scmp.eq.s32.totalorder %s46, 0
      %p209 = por %p207, %p208
      %p210 = scmp.ne.s32.totalorder %s198, %s199
      %p211 = scmp.eq.s32.totalorder %s47, 3
      %p212 = por %p210, %p211
      %p214 = scmp.ne.s32.totalorder %s199, %s213
      %p215 = scmp.eq.s32.totalorder %s47, 0
      %p216 = por %p214, %p215
      %s217 = ssub.s32 %s41, %s48
      %p218 = scmp.eq.s32.totalorder %s217, 0
      %s220 = sadd.s32 %s219, 1
      %s221 = scalar_select %p218, %s219, %s220
      %p224 = pneg %p218
      %p225 = scmp.eq.s32.totalorder %s41, 3
      %p226 = por %p224, %p225
      %p227 = scmp.ne.s32.totalorder %s219, %s222
      %p228 = scmp.eq.s32.totalorder %s41, 0
      %p229 = por %p227, %p228
      %p230 = scmp.ne.s32.totalorder %s219, %s222
      %p231 = scmp.eq.s32.totalorder %s46, 3
      %p232 = por %p230, %p231
      %p233 = scmp.ne.s32.totalorder %s222, %s223
      %p234 = scmp.eq.s32.totalorder %s46, 0
      %p235 = por %p233, %p234
      %p236 = scmp.ne.s32.totalorder %s222, %s223
      %p237 = scmp.eq.s32.totalorder %s47, 3
      %p238 = por %p236, %p237
      %p240 = scmp.ne.s32.totalorder %s223, %s239
      %p241 = scmp.eq.s32.totalorder %s47, 0
      %p242 = por %p240, %p241
      %s243 = ssub.s32 %s41, %s48
      %p244 = scmp.eq.s32.totalorder %s243, 0
      %s246 = sadd.s32 %s245, 1
      %s247 = scalar_select %p244, %s245, %s246
      %p250 = pneg %p244
      %p251 = scmp.eq.s32.totalorder %s41, 3
      %p252 = por %p250, %p251
      %p253 = scmp.ne.s32.totalorder %s245, %s248
      %p254 = scmp.eq.s32.totalorder %s41, 0
      %p255 = por %p253, %p254
      %p256 = scmp.ne.s32.totalorder %s245, %s248
      %p257 = scmp.eq.s32.totalorder %s46, 3
      %p258 = por %p256, %p257
      %p259 = scmp.ne.s32.totalorder %s248, %s249
      %p260 = scmp.eq.s32.totalorder %s46, 0
      %p261 = por %p259, %p260
      %p262 = scmp.ne.s32.totalorder %s248, %s249
      %p263 = scmp.eq.s32.totalorder %s47, 3
      %p264 = por %p262, %p263
      %p266 = scmp.ne.s32.totalorder %s249, %s265
      %p267 = scmp.eq.s32.totalorder %s47, 0
      %p268 = por %p266, %p267
      %s269 = ssub.s32 %s41, %s48
      %p270 = scmp.eq.s32.totalorder %s269, 0
      %s272 = sadd.s32 %s271, 1
      %s273 = scalar_select %p270, %s271, %s272
      %p276 = pneg %p270
      %p277 = scmp.eq.s32.totalorder %s41, 3
      %p278 = por %p276, %p277
      %p279 = scmp.ne.s32.totalorder %s271, %s274
      %p280 = scmp.eq.s32.totalorder %s41, 0
      %p281 = por %p279, %p280
      %p282 = scmp.ne.s32.totalorder %s271, %s274
      %p283 = scmp.eq.s32.totalorder %s46, 3
      %p284 = por %p282, %p283
      %p285 = scmp.ne.s32.totalorder %s274, %s275
      %p286 = scmp.eq.s32.totalorder %s46, 0
      %p287 = por %p285, %p286
      %p288 = scmp.ne.s32.totalorder %s274, %s275
      %p289 = scmp.eq.s32.totalorder %s47, 3
      %p290 = por %p288, %p289
      %p292 = scmp.ne.s32.totalorder %s275, %s291
      %p293 = scmp.eq.s32.totalorder %s47, 0
      %p294 = por %p292, %p293
      %s295 = ssub.s32 %s41, %s48
      %p296 = scmp.eq.s32.totalorder %s295, 0
      %s298 = sadd.s32 %s297, 1
      %s299 = scalar_select %p296, %s297, %s298
      %p302 = pneg %p296
      %p303 = scmp.eq.s32.totalorder %s41, 3
      %p304 = por %p302, %p303
      %p305 = scmp.ne.s32.totalorder %s297, %s300
      %p306 = scmp.eq.s32.totalorder %s41, 0
      %p307 = por %p305, %p306
      %p308 = scmp.ne.s32.totalorder %s297, %s300
      %p309 = scmp.eq.s32.totalorder %s46, 3
      %p310 = por %p308, %p309
      %p311 = scmp.ne.s32.totalorder %s300, %s301
      %p312 = scmp.eq.s32.totalorder %s46, 0
      %p313 = por %p311, %p312
      %p314 = scmp.ne.s32.totalorder %s300, %s301
      %p315 = scmp.eq.s32.totalorder %s47, 3
      %p316 = por %p314, %p315
      %p318 = scmp.ne.s32.totalorder %s301, %s317
      %p319 = scmp.eq.s32.totalorder %s47, 0
      %p320 = por %p318, %p319
      %s321 = ssub.s32 %s41, %s48
      %p322 = scmp.eq.s32.totalorder %s321, 0
      %s324 = sadd.s32 %s323, 1
      %s325 = scalar_select %p322, %s323, %s324
      %p328 = pneg %p322
      %p329 = scmp.eq.s32.totalorder %s41, 3
      %p330 = por %p328, %p329
      %p331 = scmp.ne.s32.totalorder %s323, %s326
      %p332 = scmp.eq.s32.totalorder %s41, 0
      %p333 = por %p331, %p332
      %p334 = scmp.ne.s32.totalorder %s323, %s326
      %p335 = scmp.eq.s32.totalorder %s46, 3
      %p336 = por %p334, %p335
      %p337 = scmp.ne.s32.totalorder %s326, %s327
      %p338 = scmp.eq.s32.totalorder %s46, 0
      %p339 = por %p337, %p338
      %p340 = scmp.ne.s32.totalorder %s326, %s327
      %p341 = scmp.eq.s32.totalorder %s47, 3
      %p342 = por %p340, %p341
      %p344 = scmp.ne.s32.totalorder %s327, %s343
      %p345 = scmp.eq.s32.totalorder %s47, 0
      %p346 = por %p344, %p345
      %s347 = ssub.s32 %s41, %s48
      %p348 = scmp.eq.s32.totalorder %s347, 0
      %s350 = sadd.s32 %s349, 1
      %s351 = scalar_select %p348, %s349, %s350
      %p354 = pneg %p348
      %p355 = scmp.eq.s32.totalorder %s41, 3
      %p356 = por %p354, %p355
      %p357 = scmp.ne.s32.totalorder %s349, %s352
      %p358 = scmp.eq.s32.totalorder %s41, 0
      %p359 = por %p357, %p358
      %p360 = scmp.ne.s32.totalorder %s349, %s352
      %p361 = scmp.eq.s32.totalorder %s46, 3
      %p362 = por %p360, %p361
      %p363 = scmp.ne.s32.totalorder %s352, %s353
      %p364 = scmp.eq.s32.totalorder %s46, 0
      %p365 = por %p363, %p364
      %p366 = scmp.ne.s32.totalorder %s352, %s353
      %p367 = scmp.eq.s32.totalorder %s47, 3
      %p368 = por %p366, %p367
      %p370 = scmp.ne.s32.totalorder %s353, %s369
      %p371 = scmp.eq.s32.totalorder %s47, 0
      %p372 = por %p370, %p371
      %s373 = ssub.s32 %s41, %s48
      %p374 = scmp.eq.s32.totalorder %s373, 0
      %s376 = sadd.s32 %s375, 1
      %s377 = scalar_select %p374, %s375, %s376
      %p380 = pneg %p374
      %p381 = scmp.eq.s32.totalorder %s41, 3
      %p382 = por %p380, %p381
      %p383 = scmp.ne.s32.totalorder %s375, %s378
      %p384 = scmp.eq.s32.totalorder %s41, 0
      %p385 = por %p383, %p384
      %p386 = scmp.ne.s32.totalorder %s375, %s378
      %p387 = scmp.eq.s32.totalorder %s46, 3
      %p388 = por %p386, %p387
      %p389 = scmp.ne.s32.totalorder %s378, %s379
      %p390 = scmp.eq.s32.totalorder %s46, 0
      %p391 = por %p389, %p390
      %p392 = scmp.ne.s32.totalorder %s378, %s379
      %p393 = scmp.eq.s32.totalorder %s47, 3
      %p394 = por %p392, %p393
      %p396 = scmp.ne.s32.totalorder %s379, %s395
      %p397 = scmp.eq.s32.totalorder %s47, 0
      %p398 = por %p396, %p397
      %s399 = ssub.s32 %s41, %s48
      %p400 = scmp.eq.s32.totalorder %s399, 0
      %s402 = sadd.s32 %s401, 1
      %s403 = scalar_select %p400, %s401, %s402
      %p406 = pneg %p400
      %p407 = scmp.eq.s32.totalorder %s41, 3
      %p408 = por %p406, %p407
      %p409 = scmp.ne.s32.totalorder %s401, %s404
      %p410 = scmp.eq.s32.totalorder %s41, 0
      %p411 = por %p409, %p410
      %p412 = scmp.ne.s32.totalorder %s401, %s404
      %p413 = scmp.eq.s32.totalorder %s46, 3
      %p414 = por %p412, %p413
      %p415 = scmp.ne.s32.totalorder %s404, %s405
      %p416 = scmp.eq.s32.totalorder %s46, 0
      %p417 = por %p415, %p416
      %p418 = scmp.ne.s32.totalorder %s404, %s405
      %p419 = scmp.eq.s32.totalorder %s47, 3
      %p420 = por %p418, %p419
      %p422 = scmp.ne.s32.totalorder %s405, %s421
      %p423 = scmp.eq.s32.totalorder %s47, 0
      %p424 = por %p422, %p423
      %s425 = ssub.s32 %s41, %s48
      %p426 = scmp.eq.s32.totalorder %s425, 0
      %s428 = sadd.s32 %s427, 1
      %s429 = scalar_select %p426, %s427, %s428
      %p432 = pneg %p426
      %p433 = scmp.eq.s32.totalorder %s41, 3
      %p434 = por %p432, %p433
      %p435 = scmp.ne.s32.totalorder %s427, %s430
      %p436 = scmp.eq.s32.totalorder %s41, 0
      %p437 = por %p435, %p436
      %p438 = scmp.ne.s32.totalorder %s427, %s430
      %p439 = scmp.eq.s32.totalorder %s46, 3
      %p440 = por %p438, %p439
      %p441 = scmp.ne.s32.totalorder %s430, %s431
      %p442 = scmp.eq.s32.totalorder %s46, 0
      %p443 = por %p441, %p442
      %p444 = scmp.ne.s32.totalorder %s430, %s431
      %p445 = scmp.eq.s32.totalorder %s47, 3
      %p446 = por %p444, %p445
      %p448 = scmp.ne.s32.totalorder %s431, %s447
      %p449 = scmp.eq.s32.totalorder %s47, 0
      %p450 = por %p448, %p449
      %s451 = ssub.s32 %s41, %s48
      %p452 = scmp.eq.s32.totalorder %s451, 0
      %s454 = sadd.s32 %s453, 1
      %s455 = scalar_select %p452, %s453, %s454
      %p458 = pneg %p452
      %p459 = scmp.eq.s32.totalorder %s41, 3
      %p460 = por %p458, %p459
      %p461 = scmp.ne.s32.totalorder %s453, %s456
      %p462 = scmp.eq.s32.totalorder %s41, 0
      %p463 = por %p461, %p462
      %p464 = scmp.ne.s32.totalorder %s453, %s456
      %p465 = scmp.eq.s32.totalorder %s46, 3
      %p466 = por %p464, %p465
      %p467 = scmp.ne.s32.totalorder %s456, %s457
      %p468 = scmp.eq.s32.totalorder %s46, 0
      %p469 = por %p467, %p468
      %p470 = scmp.ne.s32.totalorder %s456, %s457
      %p471 = scmp.eq.s32.totalorder %s47, 3
      %p472 = por %p470, %p471
      %p474 = scmp.ne.s32.totalorder %s457, %s473
      %p475 = scmp.eq.s32.totalorder %s47, 0
      %p476 = por %p474, %p475
      %s477 = ssub.s32 %s41, %s48
      %p478 = scmp.eq.s32.totalorder %s477, 0
      %s480 = sadd.s32 %s479, 1
      %s481 = scalar_select %p478, %s479, %s480
      %p484 = pneg %p478
      %p485 = scmp.eq.s32.totalorder %s41, 3
      %p486 = por %p484, %p485
      %p487 = scmp.ne.s32.totalorder %s479, %s482
      %p488 = scmp.eq.s32.totalorder %s41, 0
      %p489 = por %p487, %p488
      %p490 = scmp.ne.s32.totalorder %s479, %s482
      %p491 = scmp.eq.s32.totalorder %s46, 3
      %p492 = por %p490, %p491
      %p493 = scmp.ne.s32.totalorder %s482, %s483
      %p494 = scmp.eq.s32.totalorder %s46, 0
      %p495 = por %p493, %p494
      %p496 = scmp.ne.s32.totalorder %s482, %s483
      %p497 = scmp.eq.s32.totalorder %s47, 3
      %p498 = por %p496, %p497
      %p500 = scmp.ne.s32.totalorder %s483, %s499
      %p501 = scmp.eq.s32.totalorder %s47, 0
      %p502 = por %p500, %p501
      %s503 = ssub.s32 %s41, %s48
      %p504 = scmp.eq.s32.totalorder %s503, 0
      %s506 = sadd.s32 %s505, 1
      %s507 = scalar_select %p504, %s505, %s506
      %p510 = pneg %p504
      %p511 = scmp.eq.s32.totalorder %s41, 3
      %p512 = por %p510, %p511
      %p513 = scmp.ne.s32.totalorder %s505, %s508
      %p514 = scmp.eq.s32.totalorder %s41, 0
      %p515 = por %p513, %p514
      %p516 = scmp.ne.s32.totalorder %s505, %s508
      %p517 = scmp.eq.s32.totalorder %s46, 3
      %p518 = por %p516, %p517
      %p519 = scmp.ne.s32.totalorder %s508, %s509
      %p520 = scmp.eq.s32.totalorder %s46, 0
      %p521 = por %p519, %p520
      %p522 = scmp.ne.s32.totalorder %s508, %s509
      %p523 = scmp.eq.s32.totalorder %s47, 3
      %p524 = por %p522, %p523
      %p526 = scmp.ne.s32.totalorder %s509, %s525
      %p527 = scmp.eq.s32.totalorder %s47, 0
      %p528 = por %p526, %p527
      %s529 = ssub.s32 %s41, %s48
      %p530 = scmp.eq.s32.totalorder %s529, 0
      %s532 = sadd.s32 %s531, 1
      %s533 = scalar_select %p530, %s531, %s532
      %p536 = pneg %p530
      %p537 = scmp.eq.s32.totalorder %s41, 3
      %p538 = por %p536, %p537
      %p539 = scmp.ne.s32.totalorder %s531, %s534
      %p540 = scmp.eq.s32.totalorder %s41, 0
      %p541 = por %p539, %p540
      %p542 = scmp.ne.s32.totalorder %s531, %s534
      %p543 = scmp.eq.s32.totalorder %s46, 3
      %p544 = por %p542, %p543
      %p545 = scmp.ne.s32.totalorder %s534, %s535
      %p546 = scmp.eq.s32.totalorder %s46, 0
      %p547 = por %p545, %p546
      %p548 = scmp.ne.s32.totalorder %s534, %s535
      %p549 = scmp.eq.s32.totalorder %s47, 3
      %p550 = por %p548, %p549
      %p552 = scmp.ne.s32.totalorder %s535, %s551
      %p553 = scmp.eq.s32.totalorder %s47, 0
      %p554 = por %p552, %p553
      %s556 = sadd.s32 %s555, 1
      %p559 = scmp.eq.s32.totalorder %s41, 3
      %p560 = scmp.ne.s32.totalorder %s555, %s557
      %p561 = scmp.eq.s32.totalorder %s41, 0
      %p562 = por %p560, %p561
      %p563 = scmp.ne.s32.totalorder %s555, %s557
      %p564 = scmp.eq.s32.totalorder %s46, 3
      %p565 = por %p563, %p564
      %p566 = scmp.ne.s32.totalorder %s557, %s558
      %p567 = scmp.eq.s32.totalorder %s46, 0
      %p568 = por %p566, %p567
      %p569 = scmp.ne.s32.totalorder %s557, %s558
      %p570 = scmp.eq.s32.totalorder %s47, 3
      %p571 = por %p569, %p570
      %p573 = scmp.ne.s32.totalorder %s558, %s572
      %p574 = scmp.eq.s32.totalorder %s47, 0
      %p575 = por %p573, %p574
      %s577 = sadd.s32 %s576, 1
      %p580 = scmp.eq.s32.totalorder %s41, 3
      %p581 = scmp.ne.s32.totalorder %s576, %s578
      %p582 = scmp.eq.s32.totalorder %s41, 0
      %p583 = por %p581, %p582
      %p584 = scmp.ne.s32.totalorder %s576, %s578
      %p585 = scmp.eq.s32.totalorder %s46, 3
      %p586 = por %p584, %p585
      %p587 = scmp.ne.s32.totalorder %s578, %s579
      %p588 = scmp.eq.s32.totalorder %s46, 0
      %p589 = por %p587, %p588
      %p590 = scmp.ne.s32.totalorder %s578, %s579
      %p591 = scmp.eq.s32.totalorder %s47, 3
      %p592 = por %p590, %p591
      %p594 = scmp.ne.s32.totalorder %s579, %s593
      %p595 = scmp.eq.s32.totalorder %s47, 0
      %p596 = por %p594, %p595
      %s598 = sadd.s32 %s597, 1
      %p601 = scmp.eq.s32.totalorder %s41, 3
      %p602 = scmp.ne.s32.totalorder %s597, %s599
      %p603 = scmp.eq.s32.totalorder %s41, 0
      %p604 = por %p602, %p603
      %p605 = scmp.ne.s32.totalorder %s597, %s599
      %p606 = scmp.eq.s32.totalorder %s46, 3
      %p607 = por %p605, %p606
      %p608 = scmp.ne.s32.totalorder %s599, %s600
      %p609 = scmp.eq.s32.totalorder %s46, 0
      %p610 = por %p608, %p609
      %p611 = scmp.ne.s32.totalorder %s599, %s600
      %p612 = scmp.eq.s32.totalorder %s47, 3
      %p613 = por %p611, %p612
      %p615 = scmp.ne.s32.totalorder %s600, %s614
      %p616 = scmp.eq.s32.totalorder %s47, 0
      %p617 = por %p615, %p616
      %s619 = sadd.s32 %s618, 1
      %p622 = scmp.eq.s32.totalorder %s41, 3
      %p623 = scmp.ne.s32.totalorder %s618, %s620
      %p624 = scmp.eq.s32.totalorder %s41, 0
      %p625 = por %p623, %p624
      %p626 = scmp.ne.s32.totalorder %s618, %s620
      %p627 = scmp.eq.s32.totalorder %s46, 3
      %p628 = por %p626, %p627
      %p629 = scmp.ne.s32.totalorder %s620, %s621
      %p630 = scmp.eq.s32.totalorder %s46, 0
      %p631 = por %p629, %p630
      %p632 = scmp.ne.s32.totalorder %s620, %s621
      %p633 = scmp.eq.s32.totalorder %s47, 3
      %p634 = por %p632, %p633
      %p636 = scmp.ne.s32.totalorder %s621, %s635
      %p637 = scmp.eq.s32.totalorder %s47, 0
      %p638 = por %p636, %p637
      %s640 = sadd.s32 %s639, 1
      %p643 = scmp.eq.s32.totalorder %s41, 3
      %p644 = scmp.ne.s32.totalorder %s639, %s641
      %p645 = scmp.eq.s32.totalorder %s41, 0
      %p646 = por %p644, %p645
      %p647 = scmp.ne.s32.totalorder %s639, %s641
      %p648 = scmp.eq.s32.totalorder %s46, 3
      %p649 = por %p647, %p648
      %p650 = scmp.ne.s32.totalorder %s641, %s642
      %p651 = scmp.eq.s32.totalorder %s46, 0
      %p652 = por %p650, %p651
      %p653 = scmp.ne.s32.totalorder %s641, %s642
      %p654 = scmp.eq.s32.totalorder %s47, 3
      %p655 = por %p653, %p654
      %p657 = scmp.ne.s32.totalorder %s642, %s656
      %p658 = scmp.eq.s32.totalorder %s47, 0
      %p659 = por %p657, %p658
      %s661 = sadd.s32 %s660, 1
      %p664 = scmp.eq.s32.totalorder %s41, 3
      %p665 = scmp.ne.s32.totalorder %s660, %s662
      %p666 = scmp.eq.s32.totalorder %s41, 0
      %p667 = por %p665, %p666
      %p668 = scmp.ne.s32.totalorder %s660, %s662
      %p669 = scmp.eq.s32.totalorder %s46, 3
      %p670 = por %p668, %p669
      %p671 = scmp.ne.s32.totalorder %s662, %s663
      %p672 = scmp.eq.s32.totalorder %s46, 0
      %p673 = por %p671, %p672
      %p674 = scmp.ne.s32.totalorder %s662, %s663
      %p675 = scmp.eq.s32.totalorder %s47, 3
      %p676 = por %p674, %p675
      %p678 = scmp.ne.s32.totalorder %s663, %s677
      %p679 = scmp.eq.s32.totalorder %s47, 0
      %p680 = por %p678, %p679
      %p681 = scmp.le.s32.totalorder 1, %s41
      %p682 = scmp.lt.s32.totalorder %s41, 5
      %p683 = pnand %p681, %p682
      %p684 = pneg %p683
      // Predicated region
      $region9: #{tpu_custom_call.1} parent=5 // pred_check
        _
      $region10: #{tpu_custom_call.1} parent=5 // pred_check_branch
        %686 = sbr.rel (%p683) target = $region12
      $region11: #{tpu_custom_call.1} parent=5 // pred_region
        %s687 = ssub.s32 %s41, 1
        // Predicated region
        $region13: #{tpu_custom_call.1} parent=11 // pred_check
          %p688 = pneg %p62
        $region14: #{tpu_custom_call.1} parent=11 // pred_check_branch
          %690 = sbr.rel (%p688) target = $region16
        $region15: #{tpu_custom_call.1} parent=11 // pred_region
          %s692 = ssub.s32 128, 128
          %693 = vsyncadd [#allocation7], %s692
          %s695 = sshll.u32 [#allocation6], 4
          %s696 = int_to_ptr.vmem [resolvable:$true] %s695
          %698 = dma.hbm_to_vmem [thread:$0]  %s0, 128, %s696, [#allocation7]
        $region16: #{tpu_custom_call.1} parent=11 // pred_fallthru
          _
        // Predicated region
        $region17: #{tpu_custom_call.1} parent=11 // pred_check
          %p699 = pneg %p83
        $region18: #{tpu_custom_call.1} parent=11 // pred_check_branch
          %701 = sbr.rel (%p699) target = $region20
        $region19: #{tpu_custom_call.1} parent=11 // pred_region
          _
        $region20: #{tpu_custom_call.1} parent=11 // pred_fallthru
          _
        // Predicated region
        $region21: #{tpu_custom_call.1} parent=11 // pred_check
          %p702 = pneg %p104
        $region22: #{tpu_custom_call.1} parent=11 // pred_check_branch
          %704 = sbr.rel (%p702) target = $region24
        $region23: #{tpu_custom_call.1} parent=11 // pred_region
          _
        $region24: #{tpu_custom_call.1} parent=11 // pred_fallthru
          _
        // Predicated region
        $region25: #{tpu_custom_call.1} parent=11 // pred_check
          %p705 = pneg %p125
        $region26: #{tpu_custom_call.1} parent=11 // pred_check_branch
          %707 = sbr.rel (%p705) target = $region28
        $region27: #{tpu_custom_call.1} parent=11 // pred_region
          %s709 = ssub.s32 64, 64
          %710 = vsyncadd [#allocation9], %s709
          %s712 = sshll.u32 [#allocation8], 4
          %s713 = int_to_ptr.vmem [resolvable:$true] %s712
          %715 = dma.hbm_to_vmem [thread:$0]  %s3, 64, %s713, [#allocation9]
        $region28: #{tpu_custom_call.1} parent=11 // pred_fallthru
          _
        // Predicated region
        $region29: #{tpu_custom_call.1} parent=11 // pred_check
          %p716 = pneg %p146
        $region30: #{tpu_custom_call.1} parent=11 // pred_check_branch
          %718 = sbr.rel (%p716) target = $region32
        $region31: #{tpu_custom_call.1} parent=11 // pred_region
          _
        $region32: #{tpu_custom_call.1} parent=11 // pred_fallthru
          _
        // Predicated region
        $region33: #{tpu_custom_call.1} parent=11 // pred_check
          %p719 = pneg %p167
        $region34: #{tpu_custom_call.1} parent=11 // pred_check_branch
          %721 = sbr.rel (%p719) target = $region36
        $region35: #{tpu_custom_call.1} parent=11 // pred_region
          %s723 = ssub.s32 32, 32
          %724 = vsyncadd [#allocation9], %s723
          %s726 = sshll.u32 [#allocation10], 4
          %s727 = int_to_ptr.vmem [resolvable:$true] %s726
          %729 = dma.hbm_to_vmem [thread:$0]  %s5, 32, %s727, [#allocation9]
        $region36: #{tpu_custom_call.1} parent=11 // pred_fallthru
          _
        // Predicated region
        $region37: #{tpu_custom_call.1} parent=11 // pred_check
          %p730 = pneg %p188
        $region38: #{tpu_custom_call.1} parent=11 // pred_check_branch
          %732 = sbr.rel (%p730) target = $region40
        $region39: #{tpu_custom_call.1} parent=11 // pred_region
          %s734 = ssub.s32 128, 128
          %735 = vsyncadd [#allocation12], %s734
          %s737 = sshll.u32 [#allocation11], 4
          %s738 = int_to_ptr.vmem [resolvable:$true] %s737
          %740 = dma.hbm_to_vmem [thread:$0]  %s6, 128, %s738, [#allocation12]
        $region40: #{tpu_custom_call.1} parent=11 // pred_fallthru
          _
        // Predicated region
        $region41: #{tpu_custom_call.1} parent=11 // pred_check
          %p741 = pneg %p209
        $region42: #{tpu_custom_call.1} parent=11 // pred_check_branch
          %743 = sbr.rel (%p741) target = $region44
        $region43: #{tpu_custom_call.1} parent=11 // pred_region
          %s745 = ssub.s32 16, 16
          %746 = vsyncadd [#allocation12], %s745
          %s748 = sshll.u32 [#allocation13], 4
          %s749 = int_to_ptr.vmem [resolvable:$true] %s748
          %751 = dma.hbm_to_vmem [thread:$0]  %s7, 16, %s749, [#allocation12]
        $region44: #{tpu_custom_call.1} parent=11 // pred_fallthru
          _
        // Predicated region
        $region45: #{tpu_custom_call.1} parent=11 // pred_check
          %p752 = pneg %p568
        $region46: #{tpu_custom_call.1} parent=11 // pred_check_branch
          %754 = sbr.rel (%p752) target = $region48
        $region47: #{tpu_custom_call.1} parent=11 // pred_region
          _
        $region48: #{tpu_custom_call.1} parent=11 // pred_fallthru
          _
        // Predicated region
        $region49: #{tpu_custom_call.1} parent=11 // pred_check
          %p755 = pneg %p589
        $region50: #{tpu_custom_call.1} parent=11 // pred_check_branch
          %757 = sbr.rel (%p755) target = $region52
        $region51: #{tpu_custom_call.1} parent=11 // pred_region
          _
        $region52: #{tpu_custom_call.1} parent=11 // pred_fallthru
          _
        // Predicated region
        $region53: #{tpu_custom_call.1} parent=11 // pred_check
          %p758 = pneg %p610
        $region54: #{tpu_custom_call.1} parent=11 // pred_check_branch
          %760 = sbr.rel (%p758) target = $region56
        $region55: #{tpu_custom_call.1} parent=11 // pred_region
          _
        $region56: #{tpu_custom_call.1} parent=11 // pred_fallthru
          _
        // Predicated region
        $region57: #{tpu_custom_call.1} parent=11 // pred_check
          %p761 = pneg %p631
        $region58: #{tpu_custom_call.1} parent=11 // pred_check_branch
          %763 = sbr.rel (%p761) target = $region60
        $region59: #{tpu_custom_call.1} parent=11 // pred_region
          _
        $region60: #{tpu_custom_call.1} parent=11 // pred_fallthru
          _
      $region12: #{tpu_custom_call.1} parent=5 // pred_fallthru
        _
      %p764 = scmp.lt.s32.totalorder %s41, 4
      // Predicated region
      $region61: #{tpu_custom_call.1} parent=5 // pred_check
        %p765 = pneg %p764
      $region62: #{tpu_custom_call.1} parent=5 // pred_check_branch
        %767 = sbr.rel (%p765) target = $region64
      $region63: #{tpu_custom_call.1} parent=5 // pred_region
        // Predicated region
        $region65: #{tpu_custom_call.1} parent=63 // pred_check
          %p768 = pneg %p229
        $region66: #{tpu_custom_call.1} parent=63 // pred_check_branch
          %770 = sbr.rel (%p768) target = $region68
        $region67: #{tpu_custom_call.1} parent=63 // pred_region
          %p771 = scmp.lt.s32.totalorder %s41, 3
          %s772 = scalar_select %p771, %s41, 3
          %s773 = smul.addr %s772, 4
          %s774 = smul.addr %s773, 8
          %s775 = scalar_lea.vmem %s8, %s774
        $region68: #{tpu_custom_call.1} parent=63 // pred_fallthru
          _
        // Predicated region
        $region69: #{tpu_custom_call.1} parent=63 // pred_check
          %p776 = pneg %p255
        $region70: #{tpu_custom_call.1} parent=63 // pred_check_branch
          %778 = sbr.rel (%p776) target = $region72
        $region71: #{tpu_custom_call.1} parent=63 // pred_region
          %p779 = scmp.lt.s32.totalorder %s41, 3
          %s780 = scalar_select %p779, %s41, 3
          %s781 = smul.addr %s780, 4
          %s782 = smul.addr %s781, 8
          %s783 = scalar_lea.vmem %s9, %s782
        $region72: #{tpu_custom_call.1} parent=63 // pred_fallthru
          _
        // Predicated region
        $region73: #{tpu_custom_call.1} parent=63 // pred_check
          %p784 = pneg %p281
        $region74: #{tpu_custom_call.1} parent=63 // pred_check_branch
          %786 = sbr.rel (%p784) target = $region76
        $region75: #{tpu_custom_call.1} parent=63 // pred_region
          %p787 = scmp.lt.s32.totalorder %s41, 3
          %s788 = scalar_select %p787, %s41, 3
          %s789 = smul.addr %s788, 4
          %s790 = scalar_lea.vmem %s10, %s789
        $region76: #{tpu_custom_call.1} parent=63 // pred_fallthru
          _
        // Predicated region
        $region77: #{tpu_custom_call.1} parent=63 // pred_check
          %p791 = pneg %p307
        $region78: #{tpu_custom_call.1} parent=63 // pred_check_branch
          %793 = sbr.rel (%p791) target = $region80
        $region79: #{tpu_custom_call.1} parent=63 // pred_region
          %p794 = scmp.lt.s32.totalorder %s41, 3
          %s795 = scalar_select %p794, %s41, 3
          %s796 = scalar_lea.vmem %s11, %s795
        $region80: #{tpu_custom_call.1} parent=63 // pred_fallthru
          _
        // Predicated region
        $region81: #{tpu_custom_call.1} parent=63 // pred_check
          %p797 = pneg %p333
        $region82: #{tpu_custom_call.1} parent=63 // pred_check_branch
          %799 = sbr.rel (%p797) target = $region84
        $region83: #{tpu_custom_call.1} parent=63 // pred_region
          %p800 = scmp.lt.s32.totalorder %s41, 3
          %s801 = scalar_select %p800, %s41, 3
          %s802 = smul.addr %s801, 4
          %s803 = smul.addr %s802, 8
          %s804 = scalar_lea.vmem %s12, %s803
        $region84: #{tpu_custom_call.1} parent=63 // pred_fallthru
          _
        // Predicated region
        $region85: #{tpu_custom_call.1} parent=63 // pred_check
          %p805 = pneg %p359
        $region86: #{tpu_custom_call.1} parent=63 // pred_check_branch
          %807 = sbr.rel (%p805) target = $region88
        $region87: #{tpu_custom_call.1} parent=63 // pred_region
          %p808 = scmp.lt.s32.totalorder %s41, 3
          %s809 = scalar_select %p808, %s41, 3
          %s810 = scalar_lea.vmem %s13, %s809
        $region88: #{tpu_custom_call.1} parent=63 // pred_fallthru
          _
        // Predicated region
        $region89: #{tpu_custom_call.1} parent=63 // pred_check
          %p811 = pneg %p385
        $region90: #{tpu_custom_call.1} parent=63 // pred_check_branch
          %813 = sbr.rel (%p811) target = $region92
        $region91: #{tpu_custom_call.1} parent=63 // pred_region
          %p814 = scmp.lt.s32.totalorder %s41, 3
          %s815 = scalar_select %p814, %s41, 3
          %s816 = smul.addr %s815, 8
          %s817 = smul.addr %s816, 8
          %s818 = scalar_lea.vmem %s14, %s817
        $region92: #{tpu_custom_call.1} parent=63 // pred_fallthru
          _
        // Predicated region
        $region93: #{tpu_custom_call.1} parent=63 // pred_check
          %p819 = pneg %p411
        $region94: #{tpu_custom_call.1} parent=63 // pred_check_branch
          %821 = sbr.rel (%p819) target = $region96
        $region95: #{tpu_custom_call.1} parent=63 // pred_region
          %p822 = scmp.lt.s32.totalorder %s41, 3
          %s823 = scalar_select %p822, %s41, 3
          %s824 = scalar_lea.vmem %s15, %s823
        $region96: #{tpu_custom_call.1} parent=63 // pred_fallthru
          _
        // Predicated region
        $region97: #{tpu_custom_call.1} parent=63 // pred_check
          %p825 = pneg %p437
        $region98: #{tpu_custom_call.1} parent=63 // pred_check_branch
          %827 = sbr.rel (%p825) target = $region100
        $region99: #{tpu_custom_call.1} parent=63 // pred_region
          %p828 = scmp.lt.s32.totalorder %s41, 3
          %s829 = scalar_select %p828, %s41, 3
          %s830 = smul.addr %s829, 4
          %s831 = smul.addr %s830, 8
          %s832 = scalar_lea.vmem %s16, %s831
        $region100: #{tpu_custom_call.1} parent=63 // pred_fallthru
          _
        // Predicated region
        $region101: #{tpu_custom_call.1} parent=63 // pred_check
          %p833 = pneg %p463
        $region102: #{tpu_custom_call.1} parent=63 // pred_check_branch
          %835 = sbr.rel (%p833) target = $region104
        $region103: #{tpu_custom_call.1} parent=63 // pred_region
          %p836 = scmp.lt.s32.totalorder %s41, 3
          %s837 = scalar_select %p836, %s41, 3
          %s838 = scalar_lea.vmem %s17, %s837
        $region104: #{tpu_custom_call.1} parent=63 // pred_fallthru
          _
        // Predicated region
        $region105: #{tpu_custom_call.1} parent=63 // pred_check
          %p839 = pneg %p489
        $region106: #{tpu_custom_call.1} parent=63 // pred_check_branch
          %841 = sbr.rel (%p839) target = $region108
        $region107: #{tpu_custom_call.1} parent=63 // pred_region
          %s842 = sand.u32 %s479, 1
          %s843 = scalar_lea.sflag [#allocation15], %s842
          %s844 = sand.u32 %s479, 1
          %s845 = smul.addr %s844, 32
          %s846 = scalar_lea.vmem [#allocation14], %s845
          %s848 = ssub.s32 512, 512
          %849 = vsyncadd %s843, %s848
          %s850 = smul.addr %s41, 4
          %s851 = smul.addr %s850, 128
          %s852 = scalar_lea.hbm %s18, %s851
          %s853 = sshll.u32 %s846, 4
          %s854 = int_to_ptr.vmem [resolvable:$true] %s853
          %859 = dma.hbm_to_vmem [thread:$0]  %s852, 512, %s854, %s843, 128, 128, 8
        $region108: #{tpu_custom_call.1} parent=63 // pred_fallthru
          _
        // Predicated region
        $region109: #{tpu_custom_call.1} parent=63 // pred_check
          %p860 = pneg %p515
        $region110: #{tpu_custom_call.1} parent=63 // pred_check_branch
          %862 = sbr.rel (%p860) target = $region112
        $region111: #{tpu_custom_call.1} parent=63 // pred_region
          %p863 = scmp.lt.s32.totalorder %s41, 3
          %s864 = scalar_select %p863, %s41, 3
          %s865 = scalar_lea.vmem %s19, %s864
        $region112: #{tpu_custom_call.1} parent=63 // pred_fallthru
          _
        // Predicated region
        $region113: #{tpu_custom_call.1} parent=63 // pred_check
          %p866 = pneg %p541
        $region114: #{tpu_custom_call.1} parent=63 // pred_check_branch
          %868 = sbr.rel (%p866) target = $region116
        $region115: #{tpu_custom_call.1} parent=63 // pred_region
          %p869 = scmp.lt.s32.totalorder %s41, 3
          %s870 = scalar_select %p869, %s41, 3
          %s871 = smul.addr %s870, 4
          %s872 = smul.addr %s871, 8
          %s873 = scalar_lea.vmem %s20, %s872
        $region116: #{tpu_custom_call.1} parent=63 // pred_fallthru
          _
      $region64: #{tpu_custom_call.1} parent=5 // pred_fallthru
        _
      %p874 = scmp.le.s32.totalorder 1, %s41
      %p875 = scmp.lt.s32.totalorder %s41, 5
      %p876 = pnand %p874, %p875
      %p877 = pneg %p876
      // Predicated region
      $region117: #{tpu_custom_call.1} parent=5 // pred_check
        _
      $region118: #{tpu_custom_call.1} parent=5 // pred_check_branch
        %879 = sbr.rel (%p876) target = $region120
      $region119: #{tpu_custom_call.1} parent=5 // pred_region
        %s880 = ssub.s32 %s41, 1
        // Predicated region
        $region121: #{tpu_custom_call.1} parent=119 // pred_check
          %p881 = pneg %p62
        $region122: #{tpu_custom_call.1} parent=119 // pred_check_branch
          %883 = sbr.rel (%p881) target = $region124
        $region123: #{tpu_custom_call.1} parent=119 // pred_region
          %884 = dma.done [#allocation7], 128
        $region124: #{tpu_custom_call.1} parent=119 // pred_fallthru
          _
        // Predicated region
        $region125: #{tpu_custom_call.1} parent=119 // pred_check
          %p885 = pneg %p125
        $region126: #{tpu_custom_call.1} parent=119 // pred_check_branch
          %887 = sbr.rel (%p885) target = $region128
        $region127: #{tpu_custom_call.1} parent=119 // pred_region
          %888 = dma.done [#allocation9], 64
        $region128: #{tpu_custom_call.1} parent=119 // pred_fallthru
          _
        // Predicated region
        $region129: #{tpu_custom_call.1} parent=119 // pred_check
          %p889 = pneg %p167
        $region130: #{tpu_custom_call.1} parent=119 // pred_check_branch
          %891 = sbr.rel (%p889) target = $region132
        $region131: #{tpu_custom_call.1} parent=119 // pred_region
          %892 = dma.done [#allocation9], 32
        $region132: #{tpu_custom_call.1} parent=119 // pred_fallthru
          _
        // Predicated region
        $region133: #{tpu_custom_call.1} parent=119 // pred_check
          %p893 = pneg %p188
        $region134: #{tpu_custom_call.1} parent=119 // pred_check_branch
          %895 = sbr.rel (%p893) target = $region136
        $region135: #{tpu_custom_call.1} parent=119 // pred_region
          %896 = dma.done [#allocation12], 128
        $region136: #{tpu_custom_call.1} parent=119 // pred_fallthru
          _
        // Predicated region
        $region137: #{tpu_custom_call.1} parent=119 // pred_check
          %p897 = pneg %p209
        $region138: #{tpu_custom_call.1} parent=119 // pred_check_branch
          %899 = sbr.rel (%p897) target = $region140
        $region139: #{tpu_custom_call.1} parent=119 // pred_region
          %900 = dma.done [#allocation12], 16
        $region140: #{tpu_custom_call.1} parent=119 // pred_fallthru
          _
        %s901 = sand.u32 %s482, 1
        %s902 = scalar_lea.sflag [#allocation15], %s901
        %s903 = sand.u32 %s482, 1
        %s904 = smul.addr %s903, 32
        %s905 = scalar_lea.vmem [#allocation14], %s904
        // Predicated region
        $region141: #{tpu_custom_call.1} parent=119 // pred_check
          %p906 = pneg %p495
        $region142: #{tpu_custom_call.1} parent=119 // pred_check_branch
          %908 = sbr.rel (%p906) target = $region144
        $region143: #{tpu_custom_call.1} parent=119 // pred_region
          %909 = dma.done %s902, 512
        $region144: #{tpu_custom_call.1} parent=119 // pred_fallthru
          _
        %p910 = pneg %p62
        %p911 = pneg %p59
        %p912 = pneg %p83
        %p913 = pneg %p80
        %p914 = pneg %p104
        %p915 = pneg %p101
        %p916 = pneg %p125
        %p917 = pneg %p122
        %p918 = pneg %p146
        %p919 = pneg %p143
        %p920 = pneg %p167
        %p921 = pneg %p164
        %p922 = pneg %p188
        %p923 = pneg %p185
        %p924 = pneg %p209
        %p925 = pneg %p206
        %p926 = scmp.lt.s32.totalorder %s46, 3
        %s927 = scalar_select %p926, %s46, 3
        %s928 = smul.addr %s927, 4
        %s929 = smul.addr %s928, 8
        %s930 = scalar_lea.vmem %s8, %s929
        %p931 = pneg %p235
        %p932 = pneg %p232
        %p933 = scmp.lt.s32.totalorder %s46, 3
        %s934 = scalar_select %p933, %s46, 3
        %s935 = smul.addr %s934, 4
        %s936 = smul.addr %s935, 8
        %s937 = scalar_lea.vmem %s9, %s936
        %p938 = pneg %p261
        %p939 = pneg %p258
        %p940 = scmp.lt.s32.totalorder %s46, 3
        %s941 = scalar_select %p940, %s46, 3
        %s942 = smul.addr %s941, 4
        %s943 = scalar_lea.vmem %s10, %s942
        %p944 = pneg %p287
        %p945 = pneg %p284
        %p946 = scmp.lt.s32.totalorder %s46, 3
        %s947 = scalar_select %p946, %s46, 3
        %s948 = scalar_lea.vmem %s11, %s947
        %p949 = pneg %p313
        %p950 = pneg %p310
        %p951 = scmp.lt.s32.totalorder %s46, 3
        %s952 = scalar_select %p951, %s46, 3
        %s953 = smul.addr %s952, 4
        %s954 = smul.addr %s953, 8
        %s955 = scalar_lea.vmem %s12, %s954
        %p956 = pneg %p339
        %p957 = pneg %p336
        %p958 = scmp.lt.s32.totalorder %s46, 3
        %s959 = scalar_select %p958, %s46, 3
        %s960 = scalar_lea.vmem %s13, %s959
        %p961 = pneg %p365
        %p962 = pneg %p362
        %p963 = scmp.lt.s32.totalorder %s46, 3
        %s964 = scalar_select %p963, %s46, 3
        %s965 = smul.addr %s964, 8
        %s966 = smul.addr %s965, 8
        %s967 = scalar_lea.vmem %s14, %s966
        %p968 = pneg %p391
        %p969 = pneg %p388
        %p970 = scmp.lt.s32.totalorder %s46, 3
        %s971 = scalar_select %p970, %s46, 3
        %s972 = scalar_lea.vmem %s15, %s971
        %p973 = pneg %p417
        %p974 = pneg %p414
        %p975 = scmp.lt.s32.totalorder %s46, 3
        %s976 = scalar_select %p975, %s46, 3
        %s977 = smul.addr %s976, 4
        %s978 = smul.addr %s977, 8
        %s979 = scalar_lea.vmem %s16, %s978
        %p980 = pneg %p443
        %p981 = pneg %p440
        %p982 = scmp.lt.s32.totalorder %s46, 3
        %s983 = scalar_select %p982, %s46, 3
        %s984 = scalar_lea.vmem %s17, %s983
        %p985 = pneg %p469
        %p986 = pneg %p466
        %s987 = sand.u32 %s482, 1
        %s988 = scalar_lea.sflag [#allocation15], %s987
        %s989 = sand.u32 %s482, 1
        %s990 = smul.addr %s989, 32
        %s991 = scalar_lea.vmem [#allocation14], %s990
        %p992 = pneg %p495
        %p993 = pneg %p492
        %p994 = scmp.lt.s32.totalorder %s46, 3
        %s995 = scalar_select %p994, %s46, 3
        %s996 = scalar_lea.vmem %s19, %s995
        %p997 = pneg %p521
        %p998 = pneg %p518
        %p999 = scmp.lt.s32.totalorder %s46, 3
        %s1000 = scalar_select %p999, %s46, 3
        %s1001 = smul.addr %s1000, 4
        %s1002 = smul.addr %s1001, 8
        %s1003 = scalar_lea.vmem %s20, %s1002
        %p1004 = pneg %p547
        %p1005 = pneg %p544
        %p1006 = pneg %p568
        %p1007 = pneg %p565
        %p1008 = pneg %p589
        %p1009 = pneg %p586
        %p1010 = pneg %p610
        %p1011 = pneg %p607
        %p1012 = pneg %p631
        %p1013 = pneg %p628
        %p1014 = pneg %p652
        %p1015 = pneg %p649
        %p1016 = pneg %p673
        %p1017 = pneg %p670
        %p1018 = scmp.lt.s32.totalorder %s46, 3
        %s1019 = scalar_select %p1018, %s46, 3
        %s1020 = smul.addr %s1019, 4
        %s1021 = smul.addr %s1020, 8
        %s1022 = scalar_lea.vmem %s8, %s1021
        %p1023 = scmp.lt.s32.totalorder %s46, 3
        %s1024 = scalar_select %p1023, %s46, 3
        %s1025 = smul.addr %s1024, 4
        %s1026 = smul.addr %s1025, 8
        %s1027 = scalar_lea.vmem %s9, %s1026
        %p1028 = scmp.lt.s32.totalorder %s46, 3
        %s1029 = scalar_select %p1028, %s46, 3
        %s1030 = smul.addr %s1029, 4
        %s1031 = scalar_lea.vmem %s10, %s1030
        %p1032 = scmp.lt.s32.totalorder %s46, 3
        %s1033 = scalar_select %p1032, %s46, 3
        %s1034 = scalar_lea.vmem %s11, %s1033
        %p1035 = scmp.lt.s32.totalorder %s46, 3
        %s1036 = scalar_select %p1035, %s46, 3
        %s1037 = smul.addr %s1036, 4
        %s1038 = smul.addr %s1037, 8
        %s1039 = scalar_lea.vmem %s12, %s1038
        %p1040 = scmp.lt.s32.totalorder %s46, 3
        %s1041 = scalar_select %p1040, %s46, 3
        %s1042 = scalar_lea.vmem %s13, %s1041
        %p1043 = scmp.lt.s32.totalorder %s46, 3
        %s1044 = scalar_select %p1043, %s46, 3
        %s1045 = smul.addr %s1044, 8
        %s1046 = smul.addr %s1045, 8
        %s1047 = scalar_lea.vmem %s14, %s1046
        %p1048 = scmp.lt.s32.totalorder %s46, 3
        %s1049 = scalar_select %p1048, %s46, 3
        %s1050 = scalar_lea.vmem %s15, %s1049
        %p1051 = scmp.lt.s32.totalorder %s46, 3
        %s1052 = scalar_select %p1051, %s46, 3
        %s1053 = smul.addr %s1052, 4
        %s1054 = smul.addr %s1053, 8
        %s1055 = scalar_lea.vmem %s16, %s1054
        %p1056 = scmp.lt.s32.totalorder %s46, 3
        %s1057 = scalar_select %p1056, %s46, 3
        %s1058 = scalar_lea.vmem %s17, %s1057
        %p1059 = scmp.lt.s32.totalorder %s46, 3
        %s1060 = scalar_select %p1059, %s46, 3
        %s1061 = scalar_lea.vmem %s19, %s1060
        %p1062 = scmp.lt.s32.totalorder %s46, 3
        %s1063 = scalar_select %p1062, %s46, 3
        %s1064 = smul.addr %s1063, 4
        %s1065 = smul.addr %s1064, 8
        %s1066 = scalar_lea.vmem %s20, %s1065
        %p1068 = scmp.eq.s32.totalorder %s46, 0
        // Predicated region
        $region145: #{tpu_custom_call.1} parent=119 // pred_check
          %p1069 = pneg %p1068
        $region146: #{tpu_custom_call.1} parent=119 // pred_check_branch
          %1071 = sbr.rel (%p1069) target = $region148
        $region147: #{tpu_custom_call.1} parent=119 // pred_region
          %v1072 = vld [vmem:[#allocation6] sm:$0xff]
          %v1073 = vld [vmem:[#allocation11] sm:$0x1f]
          %v1074 = vld [vmem:[#allocation13] sm:$0x1]
          %v1076 = vlaneseq
          %v1077 = vshrl.u32 %v1076, 7
          %v1078 = vsub.s32 0, %v1077
          %v1079 = vrot.slane %v1074, %v1078
          %vm1081 = vcmask 39936
          %v1083 = vsel %vm1081, %v1072, 0
          %vm1085 = vcmask 1044480
          %v1087 = vsel %vm1085, %v1073, 0
          %1089 = vmatprep.subr.mxu0 0.0
          %1090 = vmatpush1.msra.mxu0 %v1087
          %1091 = vmatprep.subr.mxu0 0.0
          %1092 = vmatpush1.msra.mxu0 0.0
          %1093 = vmatprep.subr.mxu0 0.0
          %1094 = vmatpush1.msra.mxu0 0.0
          %1095 = vmatprep.subr.mxu0 0.0
          %1096 = vmatpush1.msra.mxu0 0.0
          %1097 = vmatprep.subr.mxu0 0.0
          %1098 = vmatpush1.msra.mxu0 0.0
          %1099 = vmatprep.subr.mxu0 0.0
          %1100 = vmatpush1.msra.mxu0 0.0
          %1101 = vmatprep.subr.mxu0 0.0
          %1102 = vmatpush1.msra.mxu0 0.0
          %1103 = vmatprep.subr.mxu0 0.0
          %1104 = vmatpush1.msra.mxu0 0.0
          %1105 = vmatprep.subr.mxu0 0.0
          %1106 = vmatpush1.msra.mxu0 0.0
          %1107 = vmatprep.subr.mxu0 0.0
          %1108 = vmatpush1.msra.mxu0 0.0
          %1109 = vmatprep.subr.mxu0 0.0
          %1110 = vmatpush1.msra.mxu0 0.0
          %1111 = vmatprep.subr.mxu0 0.0
          %1112 = vmatpush1.msra.mxu0 0.0
          %1113 = vmatprep.subr.mxu0 0.0
          %1114 = vmatpush1.msra.mxu0 0.0
          %1115 = vmatprep.subr.mxu0 0.0
          %1116 = vmatpush1.msra.mxu0 0.0
          %1117 = vmatprep.subr.mxu0 0.0
          %1118 = vmatpush1.msra.mxu0 0.0
          %1119 = vmatprep.subr.mxu0 0.0
          %1120 = vmatpush1.msra.mxu0 0.0
          %1121 = vmatprep.subr.mxu0 0.0
          %1122 = vmatpush1.msra.mxu0 0.0
          %1123 = vmatprep.subr.mxu0 0.0
          %1124 = vmatpush1.msra.mxu0 0.0
          %1125 = vmatprep.subr.mxu0 0.0
          %1126 = vmatpush1.msra.mxu0 0.0
          %1127 = vmatprep.subr.mxu0 0.0
          %1128 = vmatpush1.msra.mxu0 0.0
          %1129 = vmatprep.subr.mxu0 0.0
          %1130 = vmatpush1.msra.mxu0 0.0
          %1131 = vmatprep.subr.mxu0 0.0
          %1132 = vmatpush1.msra.mxu0 0.0
          %1133 = vmatprep.subr.mxu0 0.0
          %1134 = vmatpush1.msra.mxu0 0.0
          %1135 = vmatprep.subr.mxu0 0.0
          %1136 = vmatpush1.msra.mxu0 0.0
          %1137 = vmatprep.subr.mxu0 0.0
          %1138 = vmatpush1.msra.mxu0 0.0
          %1139 = vmatprep.subr.mxu0 0.0
          %1140 = vmatpush1.msra.mxu0 0.0
          %1141 = vmatprep.subr.mxu0 0.0
          %1142 = vmatpush1.msra.mxu0 0.0
          %1143 = vmatprep.subr.mxu0 0.0
          %1144 = vmatpush1.msra.mxu0 0.0
          %1145 = vmatprep.subr.mxu0 0.0
          %1146 = vmatpush1.msra.mxu0 0.0
          %1147 = vmatprep.subr.mxu0 0.0
          %1148 = vmatpush1.msra.mxu0 0.0
          %1149 = vmatprep.subr.mxu0 0.0
          %1150 = vmatpush1.msra.mxu0 0.0
          %1151 = vmatprep.subr.mxu0 0.0
          %1152 = vmatpush1.msra.mxu0 0.0
          %1153 = vmatprep.mubr.f32.mxu0 0.0
          %1154 = vmatmul.mubr.f32.gmra.mrb[0].mxu0 %v1083
          %v1155 = vpop.f32.mrb[0].mxu0
          %v1156 = vadd.f32 %v1079, %v1155
          %v1157 = vpop.f32.mrb[0].mxu0
          %1158 = vdwg.mxu0
          %vm1159 = vcmask 261120
          %1160 = vst.msk [vmem:[#allocation2] sm:$0xff] %vm1159, %v1156
          %v1161 = vld [vmem:[%s1] sm:$0xff]
          %v1162 = vsub.f32 0.0, %v1161
          %v1163 = vld [vmem:[%s2] sm:$0xf]
          %v1164 = vld [vmem:[%s2 + $0x4] sm:$0xf]
          %v1165 = vld [vmem:[%s2 + $0x8] sm:$0xf]
          %v1166 = vunpack.c.l.bf16 %v1163
          %v1167 = vunpack.c.l.bf16 %v1164
          %v1168 = vunpack.c.l.bf16 %v1165
          %vm1169 = vcmask 130048
          %v1171 = vsel %vm1169, %v1166, 0
          %v1174 = vsel %vm1169, %v1167, 0
          %v1177 = vsel %vm1169, %v1168, 0
          %1179 = vmatprep.subr.mxu0 0.0
          %1180 = vmatpush1.msra.mxu0 %v1161
          %1181 = vmatprep.subr.mxu0 0.0
          %1182 = vmatpush1.msra.mxu0 %v1162
          %1183 = vmatprep.subr.mxu0 0.0
          %1184 = vmatpush1.msra.mxu0 0.0
          %1185 = vmatprep.subr.mxu0 0.0
          %1186 = vmatpush1.msra.mxu0 0.0
          %1187 = vmatprep.subr.mxu0 0.0
          %1188 = vmatpush1.msra.mxu0 0.0
          %1189 = vmatprep.subr.mxu0 0.0
          %1190 = vmatpush1.msra.mxu0 0.0
          %1191 = vmatprep.subr.mxu0 0.0
          %1192 = vmatpush1.msra.mxu0 0.0
          %1193 = vmatprep.subr.mxu0 0.0
          %1194 = vmatpush1.msra.mxu0 0.0
          %1195 = vmatprep.subr.mxu0 0.0
          %1196 = vmatpush1.msra.mxu0 0.0
          %1197 = vmatprep.subr.mxu0 0.0
          %1198 = vmatpush1.msra.mxu0 0.0
          %1199 = vmatprep.subr.mxu0 0.0
          %1200 = vmatpush1.msra.mxu0 0.0
          %1201 = vmatprep.subr.mxu0 0.0
          %1202 = vmatpush1.msra.mxu0 0.0
          %1203 = vmatprep.subr.mxu0 0.0
          %1204 = vmatpush1.msra.mxu0 0.0
          %1205 = vmatprep.subr.mxu0 0.0
          %1206 = vmatpush1.msra.mxu0 0.0
          %1207 = vmatprep.subr.mxu0 0.0
          %1208 = vmatpush1.msra.mxu0 0.0
          %1209 = vmatprep.subr.mxu0 0.0
          %1210 = vmatpush1.msra.mxu0 0.0
          %1211 = vmatprep.subr.mxu0 0.0
          %1212 = vmatpush1.msra.mxu0 0.0
          %1213 = vmatprep.subr.mxu0 0.0
          %1214 = vmatpush1.msra.mxu0 0.0
          %1215 = vmatprep.subr.mxu0 0.0
          %1216 = vmatpush1.msra.mxu0 0.0
          %1217 = vmatprep.subr.mxu0 0.0
          %1218 = vmatpush1.msra.mxu0 0.0
          %1219 = vmatprep.subr.mxu0 0.0
          %1220 = vmatpush1.msra.mxu0 0.0
          %1221 = vmatprep.subr.mxu0 0.0
          %1222 = vmatpush1.msra.mxu0 0.0
          %1223 = vmatprep.subr.mxu0 0.0
          %1224 = vmatpush1.msra.mxu0 0.0
          %1225 = vmatprep.subr.mxu0 0.0
          %1226 = vmatpush1.msra.mxu0 0.0
          %1227 = vmatprep.subr.mxu0 0.0
          %1228 = vmatpush1.msra.mxu0 0.0
          %1229 = vmatprep.subr.mxu0 0.0
          %1230 = vmatpush1.msra.mxu0 0.0
          %1231 = vmatprep.subr.mxu0 0.0
          %1232 = vmatpush1.msra.mxu0 0.0
          %1233 = vmatprep.subr.mxu0 0.0
          %1234 = vmatpush1.msra.mxu0 0.0
          %1235 = vmatprep.subr.mxu0 0.0
          %1236 = vmatpush1.msra.mxu0 0.0
          %1237 = vmatprep.subr.mxu0 0.0
          %1238 = vmatpush1.msra.mxu0 0.0
          %1239 = vmatprep.subr.mxu0 0.0
          %1240 = vmatpush1.msra.mxu0 0.0
          %1241 = vmatprep.subr.mxu0 0.0
          %1242 = vmatpush1.msra.mxu0 0.0
          %1243 = vmatprep.mubr.f32.mxu0 0.0
          %1244 = vmatmul.mubr.f32.gmra.mrb[0].mxu0 %v1171
          %v1245 = vpop.f32.mrb[0].mxu0
          %v1246 = vadd.f32 0.0, %v1245
          %v1247 = vpop.f32.mrb[0].mxu0
          %1248 = vmatprep.mubr.f32.mxu0 0.0
          %1249 = vmatmul.mubr.f32.gmra.mrb[0].mxu0 %v1174
          %v1250 = vpop.f32.mrb[0].mxu0
          %v1251 = vadd.f32 0.0, %v1250
          %v1252 = vpop.f32.mrb[0].mxu0
          %1253 = vmatprep.mubr.f32.mxu0 0.0
          %1254 = vmatmul.mubr.f32.gmra.mrb[0].mxu0 %v1177
          %v1255 = vpop.f32.mrb[0].mxu0
          %v1256 = vadd.f32 0.0, %v1255
          %v1257 = vpop.f32.mrb[0].mxu0
          %1258 = vdwg.mxu0
          %vm1259 = vcmask 23552
          %1260 = vst.msk [vmem:[#allocation4] sm:$0xff] %vm1259, %v1246
          %1261 = vst.msk [vmem:[#allocation4 + $0x8] sm:$0xff] %vm1259, %v1251
          %1262 = vst.msk [vmem:[#allocation4 + $0x10] sm:$0xff] %vm1259, %v1256
          %v1263 = vmul.f32 %v1246, %v1246
          %v1264 = vmul.f32 %v1251, %v1251
          %v1265 = vmul.f32 %v1256, %v1256
          %v1266 = vsel %vm1259, %v1263, 0.0
          %1267 = vadd.xlane.f32.xlu0 %v1266
          %v1268 = vpop.xlane.xlu0 %1267
          %v1269 = vsel %vm1259, %v1264, 0.0
          %1270 = vadd.xlane.f32.xlu0 %v1269
          %v1271 = vpop.xlane.xlu0 %1270
          %v1272 = vsel %vm1259, %v1265, 0.0
          %1273 = vadd.xlane.f32.xlu0 %v1272
          %v1274 = vpop.xlane.xlu0 %1273
          %v1275 = vld [vmem:[%s4] sm:$0xff]
          %v1276 = vld [vmem:[%s4 + $0x8] sm:$0xff]
          %v1277 = vld [vmem:[%s4 + $0x10] sm:$0xff]
          %1281 = vrot.lane.b32.xlu0 %v1275, 1
          %v1282 = vpop.permute.xlu0 %1281
          %1283 = vrot.lane.b32.xlu0 %v1276, 1
          %v1284 = vpop.permute.xlu0 %1283
          %1285 = vrot.lane.b32.xlu0 %v1277, 1
          %v1286 = vpop.permute.xlu0 %1285
          %vm1290 = vcmask 7168
          %v1291 = vsel %vm1290, %v1268, %v1282
          %v1292 = vsel %vm1290, %v1271, %v1284
          %v1293 = vsel %vm1290, %v1274, %v1286
          %1294 = vst.msk [vmem:[#allocation3] sm:$0xff] %vm1259, %v1291
          %1295 = vst.msk [vmem:[#allocation3 + $0x8] sm:$0xff] %vm1259, %v1292
          %1296 = vst.msk [vmem:[#allocation3 + $0x10] sm:$0xff] %vm1259, %v1293
        $region148: #{tpu_custom_call.1} parent=119 // pred_fallthru
          _
        %v1297 = vld [vmem:[#allocation2] sm:$0xff]
        %v1298 = vld [vmem:[%s1022] sm:$0xff]
        %v1299 = vld [vmem:[%s1022 + $0x8] sm:$0xff]
        %v1300 = vld [vmem:[%s1022 + $0x10] sm:$0xff]
        %v1301 = vld [vmem:[%s1022 + $0x18] sm:$0xff]
        %vm1302 = vcmask 261120
        %v1304 = vsel %vm1302, %v1297, 0
        %1306 = vmatprep.subr.mxu0 0.0
        %1307 = vmatpush1.msra.mxu0 %v1298
        %1308 = vmatprep.subr.mxu0 0.0
        %1309 = vmatpush1.msra.mxu0 %v1299
        %1310 = vmatprep.subr.mxu0 0.0
        %1311 = vmatpush1.msra.mxu0 %v1300
        %1312 = vmatprep.subr.mxu0 0.0
        %1313 = vmatpush1.msra.mxu0 %v1301
        %1314 = vmatprep.subr.mxu0 0.0
        %1315 = vmatpush1.msra.mxu0 0.0
        %1316 = vmatprep.subr.mxu0 0.0
        %1317 = vmatpush1.msra.mxu0 0.0
        %1318 = vmatprep.subr.mxu0 0.0
        %1319 = vmatpush1.msra.mxu0 0.0
        %1320 = vmatprep.subr.mxu0 0.0
        %1321 = vmatpush1.msra.mxu0 0.0
        %1322 = vmatprep.subr.mxu0 0.0
        %1323 = vmatpush1.msra.mxu0 0.0
        %1324 = vmatprep.subr.mxu0 0.0
        %1325 = vmatpush1.msra.mxu0 0.0
        %1326 = vmatprep.subr.mxu0 0.0
        %1327 = vmatpush1.msra.mxu0 0.0
        %1328 = vmatprep.subr.mxu0 0.0
        %1329 = vmatpush1.msra.mxu0 0.0
        %1330 = vmatprep.subr.mxu0 0.0
        %1331 = vmatpush1.msra.mxu0 0.0
        %1332 = vmatprep.subr.mxu0 0.0
        %1333 = vmatpush1.msra.mxu0 0.0
        %1334 = vmatprep.subr.mxu0 0.0
        %1335 = vmatpush1.msra.mxu0 0.0
        %1336 = vmatprep.subr.mxu0 0.0
        %1337 = vmatpush1.msra.mxu0 0.0
        %1338 = vmatprep.subr.mxu0 0.0
        %1339 = vmatpush1.msra.mxu0 0.0
        %1340 = vmatprep.subr.mxu0 0.0
        %1341 = vmatpush1.msra.mxu0 0.0
        %1342 = vmatprep.subr.mxu0 0.0
        %1343 = vmatpush1.msra.mxu0 0.0
        %1344 = vmatprep.subr.mxu0 0.0
        %1345 = vmatpush1.msra.mxu0 0.0
        %1346 = vmatprep.subr.mxu0 0.0
        %1347 = vmatpush1.msra.mxu0 0.0
        %1348 = vmatprep.subr.mxu0 0.0
        %1349 = vmatpush1.msra.mxu0 0.0
        %1350 = vmatprep.subr.mxu0 0.0
        %1351 = vmatpush1.msra.mxu0 0.0
        %1352 = vmatprep.subr.mxu0 0.0
        %1353 = vmatpush1.msra.mxu0 0.0
        %1354 = vmatprep.subr.mxu0 0.0
        %1355 = vmatpush1.msra.mxu0 0.0
        %1356 = vmatprep.subr.mxu0 0.0
        %1357 = vmatpush1.msra.mxu0 0.0
        %1358 = vmatprep.subr.mxu0 0.0
        %1359 = vmatpush1.msra.mxu0 0.0
        %1360 = vmatprep.subr.mxu0 0.0
        %1361 = vmatpush1.msra.mxu0 0.0
        %1362 = vmatprep.subr.mxu0 0.0
        %1363 = vmatpush1.msra.mxu0 0.0
        %1364 = vmatprep.subr.mxu0 0.0
        %1365 = vmatpush1.msra.mxu0 0.0
        %1366 = vmatprep.subr.mxu0 0.0
        %1367 = vmatpush1.msra.mxu0 0.0
        %1368 = vmatprep.subr.mxu0 0.0
        %1369 = vmatpush1.msra.mxu0 0.0
        %1370 = vmatprep.mubr.f32.mxu0 0.0
        %1371 = vmatmul.mubr.f32.gmra.mrb[0].mxu0 %v1304
        %v1372 = vpop.f32.mrb[0].mxu0
        %v1373 = vadd.f32 0.0, %v1372
        %v1374 = vpop.f32.mrb[0].mxu0
        %1375 = vdwg.mxu0
        %v1376 = vld [vmem:[%s1027] sm:$0xff]
        %v1377 = vld [vmem:[%s1027 + $0x8] sm:$0xff]
        %v1378 = vld [vmem:[%s1027 + $0x10] sm:$0xff]
        %v1379 = vld [vmem:[%s1027 + $0x18] sm:$0xff]
        %1380 = vmatprep.subr.mxu0 0.0
        %1381 = vmatpush1.msra.mxu0 %v1376
        %1382 = vmatprep.subr.mxu0 0.0
        %1383 = vmatpush1.msra.mxu0 %v1377
        %1384 = vmatprep.subr.mxu0 0.0
        %1385 = vmatpush1.msra.mxu0 %v1378
        %1386 = vmatprep.subr.mxu0 0.0
        %1387 = vmatpush1.msra.mxu0 %v1379
        %1388 = vmatprep.subr.mxu0 0.0
        %1389 = vmatpush1.msra.mxu0 0.0
        %1390 = vmatprep.subr.mxu0 0.0
        %1391 = vmatpush1.msra.mxu0 0.0
        %1392 = vmatprep.subr.mxu0 0.0
        %1393 = vmatpush1.msra.mxu0 0.0
        %1394 = vmatprep.subr.mxu0 0.0
        %1395 = vmatpush1.msra.mxu0 0.0
        %1396 = vmatprep.subr.mxu0 0.0
        %1397 = vmatpush1.msra.mxu0 0.0
        %1398 = vmatprep.subr.mxu0 0.0
        %1399 = vmatpush1.msra.mxu0 0.0
        %1400 = vmatprep.subr.mxu0 0.0
        %1401 = vmatpush1.msra.mxu0 0.0
        %1402 = vmatprep.subr.mxu0 0.0
        %1403 = vmatpush1.msra.mxu0 0.0
        %1404 = vmatprep.subr.mxu0 0.0
        %1405 = vmatpush1.msra.mxu0 0.0
        %1406 = vmatprep.subr.mxu0 0.0
        %1407 = vmatpush1.msra.mxu0 0.0
        %1408 = vmatprep.subr.mxu0 0.0
        %1409 = vmatpush1.msra.mxu0 0.0
        %1410 = vmatprep.subr.mxu0 0.0
        %1411 = vmatpush1.msra.mxu0 0.0
        %1412 = vmatprep.subr.mxu0 0.0
        %1413 = vmatpush1.msra.mxu0 0.0
        %1414 = vmatprep.subr.mxu0 0.0
        %1415 = vmatpush1.msra.mxu0 0.0
        %1416 = vmatprep.subr.mxu0 0.0
        %1417 = vmatpush1.msra.mxu0 0.0
        %1418 = vmatprep.subr.mxu0 0.0
        %1419 = vmatpush1.msra.mxu0 0.0
        %1420 = vmatprep.subr.mxu0 0.0
        %1421 = vmatpush1.msra.mxu0 0.0
        %1422 = vmatprep.subr.mxu0 0.0
        %1423 = vmatpush1.msra.mxu0 0.0
        %1424 = vmatprep.subr.mxu0 0.0
        %1425 = vmatpush1.msra.mxu0 0.0
        %1426 = vmatprep.subr.mxu0 0.0
        %1427 = vmatpush1.msra.mxu0 0.0
        %1428 = vmatprep.subr.mxu0 0.0
        %1429 = vmatpush1.msra.mxu0 0.0
        %1430 = vmatprep.subr.mxu0 0.0
        %1431 = vmatpush1.msra.mxu0 0.0
        %1432 = vmatprep.subr.mxu0 0.0
        %1433 = vmatpush1.msra.mxu0 0.0
        %1434 = vmatprep.subr.mxu0 0.0
        %1435 = vmatpush1.msra.mxu0 0.0
        %1436 = vmatprep.subr.mxu0 0.0
        %1437 = vmatpush1.msra.mxu0 0.0
        %1438 = vmatprep.subr.mxu0 0.0
        %1439 = vmatpush1.msra.mxu0 0.0
        %1440 = vmatprep.subr.mxu0 0.0
        %1441 = vmatpush1.msra.mxu0 0.0
        %1442 = vmatprep.subr.mxu0 0.0
        %1443 = vmatpush1.msra.mxu0 0.0
        %1444 = vmatprep.mubr.f32.mxu0 0.0
        %1445 = vmatmul.mubr.f32.gmra.mrb[0].mxu0 %v1304
        %v1446 = vpop.f32.mrb[0].mxu0
        %v1447 = vadd.f32 0.0, %v1446
        %v1448 = vpop.f32.mrb[0].mxu0
        %1449 = vdwg.mxu0
        %v1450 = vpack.c.bf16 %v1447, %v1373
        %v1451 = vld [vmem:[%s2] sm:$0xf]
        %v1452 = vld [vmem:[%s2 + $0x4] sm:$0xf]
        %v1453 = vld [vmem:[%s2 + $0x8] sm:$0xf]
        %v1454 = vld [vmem:[#allocation3] sm:$0xff]
        %v1455 = vld [vmem:[#allocation3 + $0x8] sm:$0xff]
        %v1456 = vld [vmem:[#allocation3 + $0x10] sm:$0xff]
        %v1457 = vld [vmem:[%s1031] sm:$0x7]
        %vm1458 = vcmask 23552
        %v1460 = vsel %vm1458, %v1454, 0
        %v1463 = vsel %vm1458, %v1455, 0
        %v1466 = vsel %vm1458, %v1456, 0
        %vm1468 = vcmask 1042432
        %v1470 = vsel %vm1468, %v1457, 0
        %1472 = vmatprep.subr.mxu0 0.0
        %1473 = vmatpush1.msra.mxu0 %v1470
        %1474 = vmatprep.subr.mxu0 0.0
        %1475 = vmatpush1.msra.mxu0 0.0
        %1476 = vmatprep.subr.mxu0 0.0
        %1477 = vmatpush1.msra.mxu0 0.0
        %1478 = vmatprep.subr.mxu0 0.0
        %1479 = vmatpush1.msra.mxu0 0.0
        %1480 = vmatprep.subr.mxu0 0.0
        %1481 = vmatpush1.msra.mxu0 0.0
        %1482 = vmatprep.subr.mxu0 0.0
        %1483 = vmatpush1.msra.mxu0 0.0
        %1484 = vmatprep.subr.mxu0 0.0
        %1485 = vmatpush1.msra.mxu0 0.0
        %1486 = vmatprep.subr.mxu0 0.0
        %1487 = vmatpush1.msra.mxu0 0.0
        %1488 = vmatprep.subr.mxu0 0.0
        %1489 = vmatpush1.msra.mxu0 0.0
        %1490 = vmatprep.subr.mxu0 0.0
        %1491 = vmatpush1.msra.mxu0 0.0
        %1492 = vmatprep.subr.mxu0 0.0
        %1493 = vmatpush1.msra.mxu0 0.0
        %1494 = vmatprep.subr.mxu0 0.0
        %1495 = vmatpush1.msra.mxu0 0.0
        %1496 = vmatprep.subr.mxu0 0.0
        %1497 = vmatpush1.msra.mxu0 0.0
        %1498 = vmatprep.subr.mxu0 0.0
        %1499 = vmatpush1.msra.mxu0 0.0
        %1500 = vmatprep.subr.mxu0 0.0
        %1501 = vmatpush1.msra.mxu0 0.0
        %1502 = vmatprep.subr.mxu0 0.0
        %1503 = vmatpush1.msra.mxu0 0.0
        %1504 = vmatprep.subr.mxu0 0.0
        %1505 = vmatpush1.msra.mxu0 0.0
        %1506 = vmatprep.subr.mxu0 0.0
        %1507 = vmatpush1.msra.mxu0 0.0
        %1508 = vmatprep.subr.mxu0 0.0
        %1509 = vmatpush1.msra.mxu0 0.0
        %1510 = vmatprep.subr.mxu0 0.0
        %1511 = vmatpush1.msra.mxu0 0.0
        %1512 = vmatprep.subr.mxu0 0.0
        %1513 = vmatpush1.msra.mxu0 0.0
        %1514 = vmatprep.subr.mxu0 0.0
        %1515 = vmatpush1.msra.mxu0 0.0
        %1516 = vmatprep.subr.mxu0 0.0
        %1517 = vmatpush1.msra.mxu0 0.0
        %1518 = vmatprep.subr.mxu0 0.0
        %1519 = vmatpush1.msra.mxu0 0.0
        %1520 = vmatprep.subr.mxu0 0.0
        %1521 = vmatpush1.msra.mxu0 0.0
        %1522 = vmatprep.subr.mxu0 0.0
        %1523 = vmatpush1.msra.mxu0 0.0
        %1524 = vmatprep.subr.mxu0 0.0
        %1525 = vmatpush1.msra.mxu0 0.0
        %1526 = vmatprep.subr.mxu0 0.0
        %1527 = vmatpush1.msra.mxu0 0.0
        %1528 = vmatprep.subr.mxu0 0.0
        %1529 = vmatpush1.msra.mxu0 0.0
        %1530 = vmatprep.subr.mxu0 0.0
        %1531 = vmatpush1.msra.mxu0 0.0
        %1532 = vmatprep.subr.mxu0 0.0
        %1533 = vmatpush1.msra.mxu0 0.0
        %1534 = vmatprep.subr.mxu0 0.0
        %1535 = vmatpush1.msra.mxu0 0.0
        %1536 = vmatprep.mubr.f32.mxu0 0.0
        %1537 = vmatmul.mubr.f32.gmra.mrb[0].mxu0 %v1460
        %v1538 = vpop.f32.mrb[0].mxu0
        %v1539 = vadd.f32 0.0, %v1538
        %v1540 = vpop.f32.mrb[0].mxu0
        %1541 = vmatprep.mubr.f32.mxu0 0.0
        %1542 = vmatmul.mubr.f32.gmra.mrb[0].mxu0 %v1463
        %v1543 = vpop.f32.mrb[0].mxu0
        %v1544 = vadd.f32 0.0, %v1543
        %v1545 = vpop.f32.mrb[0].mxu0
        %1546 = vmatprep.mubr.f32.mxu0 0.0
        %1547 = vmatmul.mubr.f32.gmra.mrb[0].mxu0 %v1466
        %v1548 = vpop.f32.mrb[0].mxu0
        %v1549 = vadd.f32 0.0, %v1548
        %v1550 = vpop.f32.mrb[0].mxu0
        %1551 = vdwg.mxu0
        %v1555 = vunpack.c.l.b16 %v1451
        %v1556 = vunpack.c.l.b16 %v1452
        %v1557 = vunpack.c.l.b16 %v1453
        %v1558 = vpack.c.b16 %v1556, %v1555
        %v1559 = vpack.c.b16 %v1557, %v1557
        %vm1560 = vcmask 130048
        %v1562 = vsel %vm1560, %v1558, 0
        %v1565 = vsel %vm1560, %v1559, 0
        %1567 = vmatprep.subr.bf16.mxu0 0
        %1568 = vmatpush1.bf16.msra.mxu0 %v1450
        %1569 = vmatprep.subr.bf16.mxu0 0
        %1570 = vmatpush1.bf16.msra.mxu0 0
        %1571 = vmatprep.subr.bf16.mxu0 0
        %1572 = vmatpush1.bf16.msra.mxu0 0
        %1573 = vmatprep.subr.bf16.mxu0 0
        %1574 = vmatpush1.bf16.msra.mxu0 0
        %1575 = vmatprep.subr.bf16.mxu0 0
        %1576 = vmatpush1.bf16.msra.mxu0 0
        %1577 = vmatprep.subr.bf16.mxu0 0
        %1578 = vmatpush1.bf16.msra.mxu0 0
        %1579 = vmatprep.subr.bf16.mxu0 0
        %1580 = vmatpush1.bf16.msra.mxu0 0
        %1581 = vmatprep.subr.bf16.mxu0 0
        %1582 = vmatpush1.bf16.msra.mxu0 0
        %1583 = vmatprep.subr.bf16.mxu0 0
        %1584 = vmatpush1.bf16.msra.mxu0 0
        %1585 = vmatprep.subr.bf16.mxu0 0
        %1586 = vmatpush1.bf16.msra.mxu0 0
        %1587 = vmatprep.subr.bf16.mxu0 0
        %1588 = vmatpush1.bf16.msra.mxu0 0
        %1589 = vmatprep.subr.bf16.mxu0 0
        %1590 = vmatpush1.bf16.msra.mxu0 0
        %1591 = vmatprep.subr.bf16.mxu0 0
        %1592 = vmatpush1.bf16.msra.mxu0 0
        %1593 = vmatprep.subr.bf16.mxu0 0
        %1594 = vmatpush1.bf16.msra.mxu0 0
        %1595 = vmatprep.subr.bf16.mxu0 0
        %1596 = vmatpush1.bf16.msra.mxu0 0
        %1597 = vmatprep.subr.bf16.mxu0 0
        %1598 = vmatpush1.bf16.msra.mxu0 0
        %1599 = vmatprep.mubr.bf16.mxu0 0
        %1600 = vmatmul.mubr.bf16.gmra.mrb[0].mxu0 %v1562
        %v1601 = vpop.f32.mrb[0].mxu0
        %v1602 = vadd.f32 %v1539, %v1601
        %v1603 = vpop.f32.mrb[0].mxu0
        %v1604 = vpop.f32.mrb[0].mxu0
        %v1605 = vadd.f32 %v1544, %v1604
        %v1606 = vpop.f32.mrb[0].mxu0
        %1607 = vmatprep.mubr.bf16.mxu0 0
        %1608 = vmatmul.mubr.bf16.gmra.mrb[0].mxu0 %v1565
        %v1609 = vpop.f32.mrb[0].mxu0
        %v1610 = vadd.f32 %v1549, %v1609
        %v1611 = vpop.f32.mrb[0].mxu0
        %v1612 = vpop.f32.mrb[0].mxu0
        %v1613 = vpop.f32.mrb[0].mxu0
        %1614 = vdwg.mxu0
        %v1615 = vld [vmem:[%s1034] sm:$0x1]
        %v1617 = vlaneseq
        %v1618 = vshrl.u32 %v1617, 7
        %v1619 = vsub.s32 0, %v1618
        %v1620 = vrot.slane %v1615, %v1619
        %v1622 = vadd.f32 %v1602, %v1620
        %v1623 = vadd.f32 %v1605, %v1620
        %v1624 = vadd.f32 %v1610, %v1620
        %v1625 = vsub.f32 0.0, %v1622
        %v1626 = vsub.f32 0.0, %v1623
        %v1627 = vsub.f32 0.0, %v1624
        %v1628 = vmul.f32 %v1625, 1.442695
        %v1629 = vpow.pop %v1628
        %v1630 = vmul.f32 %v1626, 1.442695
        %v1631 = vpow.pop %v1630
        %v1632 = vmul.f32 %v1627, 1.442695
        %v1633 = vpow.pop %v1632
        %v1634 = vadd.f32 %v1629, 1.0
        %v1635 = vadd.f32 %v1631, 1.0
        %v1636 = vadd.f32 %v1633, 1.0
        %v1637 = vrcp.pop %v1634
        %v1638 = vrcp.pop %v1635
        %v1639 = vrcp.pop %v1636
        %v1640 = vmul.f32 %v1622, %v1637
        %v1641 = vmul.f32 %v1623, %v1638
        %v1642 = vmul.f32 %v1624, %v1639
        %v1643 = vld [vmem:[%s1039] sm:$0xff]
        %v1644 = vld [vmem:[%s1039 + $0x8] sm:$0xff]
        %v1645 = vld [vmem:[%s1039 + $0x10] sm:$0xff]
        %v1646 = vld [vmem:[%s1039 + $0x18] sm:$0xff]
        %v1647 = vld [vmem:[%s1042] sm:$0x1]
        %v1649 = vlaneseq
        %v1650 = vshrl.u32 %v1649, 7
        %v1651 = vsub.s32 0, %v1650
        %v1652 = vrot.slane %v1647, %v1651
        %v1655 = vsel %vm1302, %v1640, 0
        %v1658 = vsel %vm1302, %v1641, 0
        %v1661 = vsel %vm1302, %v1642, 0
        %1663 = vmatprep.subr.mxu0 0.0
        %1664 = vmatpush1.msra.mxu0 %v1643
        %1665 = vmatprep.subr.mxu0 0.0
        %1666 = vmatpush1.msra.mxu0 %v1644
        %1667 = vmatprep.subr.mxu0 0.0
        %1668 = vmatpush1.msra.mxu0 %v1645
        %1669 = vmatprep.subr.mxu0 0.0
        %1670 = vmatpush1.msra.mxu0 %v1646
        %1671 = vmatprep.subr.mxu0 0.0
        %1672 = vmatpush1.msra.mxu0 0.0
        %1673 = vmatprep.subr.mxu0 0.0
        %1674 = vmatpush1.msra.mxu0 0.0
        %1675 = vmatprep.subr.mxu0 0.0
        %1676 = vmatpush1.msra.mxu0 0.0
        %1677 = vmatprep.subr.mxu0 0.0
        %1678 = vmatpush1.msra.mxu0 0.0
        %1679 = vmatprep.subr.mxu0 0.0
        %1680 = vmatpush1.msra.mxu0 0.0
        %1681 = vmatprep.subr.mxu0 0.0
        %1682 = vmatpush1.msra.mxu0 0.0
        %1683 = vmatprep.subr.mxu0 0.0
        %1684 = vmatpush1.msra.mxu0 0.0
        %1685 = vmatprep.subr.mxu0 0.0
        %1686 = vmatpush1.msra.mxu0 0.0
        %1687 = vmatprep.subr.mxu0 0.0
        %1688 = vmatpush1.msra.mxu0 0.0
        %1689 = vmatprep.subr.mxu0 0.0
        %1690 = vmatpush1.msra.mxu0 0.0
        %1691 = vmatprep.subr.mxu0 0.0
        %1692 = vmatpush1.msra.mxu0 0.0
        %1693 = vmatprep.subr.mxu0 0.0
        %1694 = vmatpush1.msra.mxu0 0.0
        %1695 = vmatprep.subr.mxu0 0.0
        %1696 = vmatpush1.msra.mxu0 0.0
        %1697 = vmatprep.subr.mxu0 0.0
        %1698 = vmatpush1.msra.mxu0 0.0
        %1699 = vmatprep.subr.mxu0 0.0
        %1700 = vmatpush1.msra.mxu0 0.0
        %1701 = vmatprep.subr.mxu0 0.0
        %1702 = vmatpush1.msra.mxu0 0.0
        %1703 = vmatprep.subr.mxu0 0.0
        %1704 = vmatpush1.msra.mxu0 0.0
        %1705 = vmatprep.subr.mxu0 0.0
        %1706 = vmatpush1.msra.mxu0 0.0
        %1707 = vmatprep.subr.mxu0 0.0
        %1708 = vmatpush1.msra.mxu0 0.0
        %1709 = vmatprep.subr.mxu0 0.0
        %1710 = vmatpush1.msra.mxu0 0.0
        %1711 = vmatprep.subr.mxu0 0.0
        %1712 = vmatpush1.msra.mxu0 0.0
        %1713 = vmatprep.subr.mxu0 0.0
        %1714 = vmatpush1.msra.mxu0 0.0
        %1715 = vmatprep.subr.mxu0 0.0
        %1716 = vmatpush1.msra.mxu0 0.0
        %1717 = vmatprep.subr.mxu0 0.0
        %1718 = vmatpush1.msra.mxu0 0.0
        %1719 = vmatprep.subr.mxu0 0.0
        %1720 = vmatpush1.msra.mxu0 0.0
        %1721 = vmatprep.subr.mxu0 0.0
        %1722 = vmatpush1.msra.mxu0 0.0
        %1723 = vmatprep.subr.mxu0 0.0
        %1724 = vmatpush1.msra.mxu0 0.0
        %1725 = vmatprep.subr.mxu0 0.0
        %1726 = vmatpush1.msra.mxu0 0.0
        %1727 = vmatprep.mubr.f32.mxu0 0.0
        %1728 = vmatmul.mubr.f32.gmra.mrb[0].mxu0 %v1655
        %v1729 = vpop.f32.mrb[0].mxu0
        %v1730 = vadd.f32 %v1652, %v1729
        %v1731 = vpop.f32.mrb[0].mxu0
        %1732 = vmatprep.mubr.f32.mxu0 0.0
        %1733 = vmatmul.mubr.f32.gmra.mrb[0].mxu0 %v1658
        %v1734 = vpop.f32.mrb[0].mxu0
        %v1735 = vadd.f32 %v1652, %v1734
        %v1736 = vpop.f32.mrb[0].mxu0
        %1737 = vmatprep.mubr.f32.mxu0 0.0
        %1738 = vmatmul.mubr.f32.gmra.mrb[0].mxu0 %v1661
        %v1739 = vpop.f32.mrb[0].mxu0
        %v1740 = vadd.f32 %v1652, %v1739
        %v1741 = vpop.f32.mrb[0].mxu0
        %1742 = vdwg.mxu0
        %v1743 = vsub.f32 0.0, %v1730
        %v1744 = vsub.f32 0.0, %v1735
        %v1745 = vsub.f32 0.0, %v1740
        %v1746 = vmul.f32 %v1743, 1.442695
        %v1747 = vpow.pop %v1746
        %v1748 = vmul.f32 %v1744, 1.442695
        %v1749 = vpow.pop %v1748
        %v1750 = vmul.f32 %v1745, 1.442695
        %v1751 = vpow.pop %v1750
        %v1752 = vadd.f32 %v1747, 1.0
        %v1753 = vadd.f32 %v1749, 1.0
        %v1754 = vadd.f32 %v1751, 1.0
        %v1755 = vrcp.pop %v1752
        %v1756 = vrcp.pop %v1753
        %v1757 = vrcp.pop %v1754
        %v1758 = vmul.f32 %v1730, %v1755
        %v1759 = vmul.f32 %v1735, %v1756
        %v1760 = vmul.f32 %v1740, %v1757
        %v1761 = vld [vmem:[#allocation8] sm:$0xf]
        %v1762 = vpack.c.bf16 %v1759, %v1758
        %v1763 = vpack.c.bf16 %v1760, %v1760
        %vm1764 = vcmask 195584
        %v1766 = vsel %vm1764, %v1761, 0
        %vm1768 = vcmask 1043456
        %v1770 = vsel %vm1768, %v1763, 0
        %1772 = vmatprep.subr.bf16.mxu0 0
        %1773 = vmatpush1.bf16.msra.mxu0 %v1762
        %1774 = vmatprep.subr.bf16.mxu0 0
        %1775 = vmatpush1.bf16.msra.mxu0 %v1770
        %1776 = vmatprep.subr.bf16.mxu0 0
        %1777 = vmatpush1.bf16.msra.mxu0 0
        %1778 = vmatprep.subr.bf16.mxu0 0
        %1779 = vmatpush1.bf16.msra.mxu0 0
        %1780 = vmatprep.subr.bf16.mxu0 0
        %1781 = vmatpush1.bf16.msra.mxu0 0
        %1782 = vmatprep.subr.bf16.mxu0 0
        %1783 = vmatpush1.bf16.msra.mxu0 0
        %1784 = vmatprep.subr.bf16.mxu0 0
        %1785 = vmatpush1.bf16.msra.mxu0 0
        %1786 = vmatprep.subr.bf16.mxu0 0
        %1787 = vmatpush1.bf16.msra.mxu0 0
        %1788 = vmatprep.subr.bf16.mxu0 0
        %1789 = vmatpush1.bf16.msra.mxu0 0
        %1790 = vmatprep.subr.bf16.mxu0 0
        %1791 = vmatpush1.bf16.msra.mxu0 0
        %1792 = vmatprep.subr.bf16.mxu0 0
        %1793 = vmatpush1.bf16.msra.mxu0 0
        %1794 = vmatprep.subr.bf16.mxu0 0
        %1795 = vmatpush1.bf16.msra.mxu0 0
        %1796 = vmatprep.subr.bf16.mxu0 0
        %1797 = vmatpush1.bf16.msra.mxu0 0
        %1798 = vmatprep.subr.bf16.mxu0 0
        %1799 = vmatpush1.bf16.msra.mxu0 0
        %1800 = vmatprep.subr.bf16.mxu0 0
        %1801 = vmatpush1.bf16.msra.mxu0 0
        %1802 = vmatprep.subr.bf16.mxu0 0
        %1803 = vmatpush1.bf16.msra.mxu0 0
        %1804 = vmatprep.mubr.bf16.mxu0 0
        %1805 = vmatmul.mubr.bf16.gmra.mrb[0].mxu0 %v1766
        %v1806 = vpop.f32.mrb[0].mxu0
        %v1807 = vadd.f32 0.0, %v1806
        %v1808 = vpop.f32.mrb[0].mxu0
        %v1809 = vpop.f32.mrb[0].mxu0
        %v1810 = vpop.f32.mrb[0].mxu0
        %1811 = vdwg.mxu0
        %1813 = vrot.lane.b32.xlu0 %v1807, 32
        %v1814 = vpop.permute.xlu0 %1813
        %v1816 = vsel %vm1302, %v1297, %v1814
        %v1817 = vld [vmem:[%s1047] sm:$0xff]
        %v1818 = vld [vmem:[%s1047 + $0x8] sm:$0xff]
        %v1819 = vld [vmem:[%s1047 + $0x10] sm:$0xff]
        %v1820 = vld [vmem:[%s1047 + $0x18] sm:$0xff]
        %v1821 = vld [vmem:[%s1047 + $0x20] sm:$0xff]
        %v1822 = vld [vmem:[%s1047 + $0x28] sm:$0xff]
        %v1823 = vld [vmem:[%s1047 + $0x30] sm:$0xff]
        %v1824 = vld [vmem:[%s1047 + $0x38] sm:$0xff]
        %v1825 = vld [vmem:[%s1050] sm:$0x1]
        %v1827 = vlaneseq
        %v1828 = vshrl.u32 %v1827, 7
        %v1829 = vsub.s32 0, %v1828
        %v1830 = vrot.slane %v1825, %v1829
        %vm1832 = vcmask 523264
        %v1834 = vsel %vm1832, %v1816, 0
        %1836 = vmatprep.subr.mxu0 0.0
        %1837 = vmatpush1.msra.mxu0 %v1817
        %1838 = vmatprep.subr.mxu0 0.0
        %1839 = vmatpush1.msra.mxu0 %v1818
        %1840 = vmatprep.subr.mxu0 0.0
        %1841 = vmatpush1.msra.mxu0 %v1819
        %1842 = vmatprep.subr.mxu0 0.0
        %1843 = vmatpush1.msra.mxu0 %v1820
        %1844 = vmatprep.subr.mxu0 0.0
        %1845 = vmatpush1.msra.mxu0 %v1821
        %1846 = vmatprep.subr.mxu0 0.0
        %1847 = vmatpush1.msra.mxu0 %v1822
        %1848 = vmatprep.subr.mxu0 0.0
        %1849 = vmatpush1.msra.mxu0 %v1823
        %1850 = vmatprep.subr.mxu0 0.0
        %1851 = vmatpush1.msra.mxu0 %v1824
        %1852 = vmatprep.subr.mxu0 0.0
        %1853 = vmatpush1.msra.mxu0 0.0
        %1854 = vmatprep.subr.mxu0 0.0
        %1855 = vmatpush1.msra.mxu0 0.0
        %1856 = vmatprep.subr.mxu0 0.0
        %1857 = vmatpush1.msra.mxu0 0.0
        %1858 = vmatprep.subr.mxu0 0.0
        %1859 = vmatpush1.msra.mxu0 0.0
        %1860 = vmatprep.subr.mxu0 0.0
        %1861 = vmatpush1.msra.mxu0 0.0
        %1862 = vmatprep.subr.mxu0 0.0
        %1863 = vmatpush1.msra.mxu0 0.0
        %1864 = vmatprep.subr.mxu0 0.0
        %1865 = vmatpush1.msra.mxu0 0.0
        %1866 = vmatprep.subr.mxu0 0.0
        %1867 = vmatpush1.msra.mxu0 0.0
        %1868 = vmatprep.subr.mxu0 0.0
        %1869 = vmatpush1.msra.mxu0 0.0
        %1870 = vmatprep.subr.mxu0 0.0
        %1871 = vmatpush1.msra.mxu0 0.0
        %1872 = vmatprep.subr.mxu0 0.0
        %1873 = vmatpush1.msra.mxu0 0.0
        %1874 = vmatprep.subr.mxu0 0.0
        %1875 = vmatpush1.msra.mxu0 0.0
        %1876 = vmatprep.subr.mxu0 0.0
        %1877 = vmatpush1.msra.mxu0 0.0
        %1878 = vmatprep.subr.mxu0 0.0
        %1879 = vmatpush1.msra.mxu0 0.0
        %1880 = vmatprep.subr.mxu0 0.0
        %1881 = vmatpush1.msra.mxu0 0.0
        %1882 = vmatprep.subr.mxu0 0.0
        %1883 = vmatpush1.msra.mxu0 0.0
        %1884 = vmatprep.subr.mxu0 0.0
        %1885 = vmatpush1.msra.mxu0 0.0
        %1886 = vmatprep.subr.mxu0 0.0
        %1887 = vmatpush1.msra.mxu0 0.0
        %1888 = vmatprep.subr.mxu0 0.0
        %1889 = vmatpush1.msra.mxu0 0.0
        %1890 = vmatprep.subr.mxu0 0.0
        %1891 = vmatpush1.msra.mxu0 0.0
        %1892 = vmatprep.subr.mxu0 0.0
        %1893 = vmatpush1.msra.mxu0 0.0
        %1894 = vmatprep.subr.mxu0 0.0
        %1895 = vmatpush1.msra.mxu0 0.0
        %1896 = vmatprep.subr.mxu0 0.0
        %1897 = vmatpush1.msra.mxu0 0.0
        %1898 = vmatprep.subr.mxu0 0.0
        %1899 = vmatpush1.msra.mxu0 0.0
        %1900 = vmatprep.mubr.f32.mxu0 0.0
        %1901 = vmatmul.mubr.f32.gmra.mrb[0].mxu0 %v1834
        %v1902 = vpop.f32.mrb[0].mxu0
        %v1903 = vadd.f32 %v1830, %v1902
        %v1904 = vpop.f32.mrb[0].mxu0
        %1905 = vdwg.mxu0
        %v1906 = vsub.f32 0.0, %v1903
        %v1907 = vmul.f32 %v1906, 1.442695
        %v1908 = vpow.pop %v1907
        %v1909 = vadd.f32 %v1908, 1.0
        %v1910 = vrcp.pop %v1909
        %v1911 = vmul.f32 %v1903, %v1910
        %v1912 = vld [vmem:[%s1055] sm:$0xff]
        %v1913 = vld [vmem:[%s1055 + $0x8] sm:$0xff]
        %v1914 = vld [vmem:[%s1055 + $0x10] sm:$0xff]
        %v1915 = vld [vmem:[%s1055 + $0x18] sm:$0xff]
        %v1917 = vsel %vm1302, %v1911, 0
        %1919 = vmatprep.subr.mxu0 0.0
        %1920 = vmatpush1.msra.mxu0 %v1912
        %1921 = vmatprep.subr.mxu0 0.0
        %1922 = vmatpush1.msra.mxu0 %v1913
        %1923 = vmatprep.subr.mxu0 0.0
        %1924 = vmatpush1.msra.mxu0 %v1914
        %1925 = vmatprep.subr.mxu0 0.0
        %1926 = vmatpush1.msra.mxu0 %v1915
        %1927 = vmatprep.subr.mxu0 0.0
        %1928 = vmatpush1.msra.mxu0 0.0
        %1929 = vmatprep.subr.mxu0 0.0
        %1930 = vmatpush1.msra.mxu0 0.0
        %1931 = vmatprep.subr.mxu0 0.0
        %1932 = vmatpush1.msra.mxu0 0.0
        %1933 = vmatprep.subr.mxu0 0.0
        %1934 = vmatpush1.msra.mxu0 0.0
        %1935 = vmatprep.subr.mxu0 0.0
        %1936 = vmatpush1.msra.mxu0 0.0
        %1937 = vmatprep.subr.mxu0 0.0
        %1938 = vmatpush1.msra.mxu0 0.0
        %1939 = vmatprep.subr.mxu0 0.0
        %1940 = vmatpush1.msra.mxu0 0.0
        %1941 = vmatprep.subr.mxu0 0.0
        %1942 = vmatpush1.msra.mxu0 0.0
        %1943 = vmatprep.subr.mxu0 0.0
        %1944 = vmatpush1.msra.mxu0 0.0
        %1945 = vmatprep.subr.mxu0 0.0
        %1946 = vmatpush1.msra.mxu0 0.0
        %1947 = vmatprep.subr.mxu0 0.0
        %1948 = vmatpush1.msra.mxu0 0.0
        %1949 = vmatprep.subr.mxu0 0.0
        %1950 = vmatpush1.msra.mxu0 0.0
        %1951 = vmatprep.subr.mxu0 0.0
        %1952 = vmatpush1.msra.mxu0 0.0
        %1953 = vmatprep.subr.mxu0 0.0
        %1954 = vmatpush1.msra.mxu0 0.0
        %1955 = vmatprep.subr.mxu0 0.0
        %1956 = vmatpush1.msra.mxu0 0.0
        %1957 = vmatprep.subr.mxu0 0.0
        %1958 = vmatpush1.msra.mxu0 0.0
        %1959 = vmatprep.subr.mxu0 0.0
        %1960 = vmatpush1.msra.mxu0 0.0
        %1961 = vmatprep.subr.mxu0 0.0
        %1962 = vmatpush1.msra.mxu0 0.0
        %1963 = vmatprep.subr.mxu0 0.0
        %1964 = vmatpush1.msra.mxu0 0.0
        %1965 = vmatprep.subr.mxu0 0.0
        %1966 = vmatpush1.msra.mxu0 0.0
        %1967 = vmatprep.subr.mxu0 0.0
        %1968 = vmatpush1.msra.mxu0 0.0
        %1969 = vmatprep.subr.mxu0 0.0
        %1970 = vmatpush1.msra.mxu0 0.0
        %1971 = vmatprep.subr.mxu0 0.0
        %1972 = vmatpush1.msra.mxu0 0.0
        %1973 = vmatprep.subr.mxu0 0.0
        %1974 = vmatpush1.msra.mxu0 0.0
        %1975 = vmatprep.subr.mxu0 0.0
        %1976 = vmatpush1.msra.mxu0 0.0
        %1977 = vmatprep.subr.mxu0 0.0
        %1978 = vmatpush1.msra.mxu0 0.0
        %1979 = vmatprep.subr.mxu0 0.0
        %1980 = vmatpush1.msra.mxu0 0.0
        %1981 = vmatprep.subr.mxu0 0.0
        %1982 = vmatpush1.msra.mxu0 0.0
        %1983 = vmatprep.mubr.f32.mxu0 0.0
        %1984 = vmatmul.mubr.f32.gmra.mrb[0].mxu0 %v1917
        %v1985 = vpop.f32.mrb[0].mxu0
        %v1986 = vadd.f32 0.0, %v1985
        %v1987 = vpop.f32.mrb[0].mxu0
        %1988 = vdwg.mxu0
        %v1989 = vadd.f32 %v1297, %v1986
        %v1990 = vld [vmem:[%s1058] sm:$0x1]
        %v1992 = vlaneseq
        %v1993 = vshrl.u32 %v1992, 7
        %v1994 = vsub.s32 0, %v1993
        %v1995 = vrot.slane %v1990, %v1994
        %v1997 = vadd.f32 %v1989, %v1995
        %1998 = vst.msk [vmem:[#allocation2] sm:$0xff] %vm1302, %v1997
        %p1999 = scmp.eq.s32.totalorder %s46, 3
        // Predicated region
        $region149: #{tpu_custom_call.1} parent=119 // pred_check
          %p2000 = pneg %p1999
        $region150: #{tpu_custom_call.1} parent=119 // pred_check_branch
          %2002 = sbr.rel (%p2000) target = $region152
        $region151: #{tpu_custom_call.1} parent=119 // pred_region
          %v2003 = vld [vmem:[%s905] sm:$0xff]
          %v2004 = vld [vmem:[%s905 + $0x8] sm:$0xff]
          %v2005 = vld [vmem:[%s905 + $0x10] sm:$0xff]
          %v2006 = vld [vmem:[%s905 + $0x18] sm:$0xff]
          %v2007 = vld [vmem:[%s1061] sm:$0x1]
          %v2009 = vlaneseq
          %v2010 = vshrl.u32 %v2009, 7
          %v2011 = vsub.s32 0, %v2010
          %v2012 = vrot.slane %v2007, %v2011
          %v2015 = vsel %vm1302, %v1758, 0
          %v2018 = vsel %vm1302, %v1759, 0
          %v2021 = vsel %vm1302, %v1760, 0
          %2023 = vmatprep.subr.mxu0 0.0
          %2024 = vmatpush1.msra.mxu0 %v2003
          %2025 = vmatprep.subr.mxu0 0.0
          %2026 = vmatpush1.msra.mxu0 %v2004
          %2027 = vmatprep.subr.mxu0 0.0
          %2028 = vmatpush1.msra.mxu0 %v2005
          %2029 = vmatprep.subr.mxu0 0.0
          %2030 = vmatpush1.msra.mxu0 %v2006
          %2031 = vmatprep.subr.mxu0 0.0
          %2032 = vmatpush1.msra.mxu0 0.0
          %2033 = vmatprep.subr.mxu0 0.0
          %2034 = vmatpush1.msra.mxu0 0.0
          %2035 = vmatprep.subr.mxu0 0.0
          %2036 = vmatpush1.msra.mxu0 0.0
          %2037 = vmatprep.subr.mxu0 0.0
          %2038 = vmatpush1.msra.mxu0 0.0
          %2039 = vmatprep.subr.mxu0 0.0
          %2040 = vmatpush1.msra.mxu0 0.0
          %2041 = vmatprep.subr.mxu0 0.0
          %2042 = vmatpush1.msra.mxu0 0.0
          %2043 = vmatprep.subr.mxu0 0.0
          %2044 = vmatpush1.msra.mxu0 0.0
          %2045 = vmatprep.subr.mxu0 0.0
          %2046 = vmatpush1.msra.mxu0 0.0
          %2047 = vmatprep.subr.mxu0 0.0
          %2048 = vmatpush1.msra.mxu0 0.0
          %2049 = vmatprep.subr.mxu0 0.0
          %2050 = vmatpush1.msra.mxu0 0.0
          %2051 = vmatprep.subr.mxu0 0.0
          %2052 = vmatpush1.msra.mxu0 0.0
          %2053 = vmatprep.subr.mxu0 0.0
          %2054 = vmatpush1.msra.mxu0 0.0
          %2055 = vmatprep.subr.mxu0 0.0
          %2056 = vmatpush1.msra.mxu0 0.0
          %2057 = vmatprep.subr.mxu0 0.0
          %2058 = vmatpush1.msra.mxu0 0.0
          %2059 = vmatprep.subr.mxu0 0.0
          %2060 = vmatpush1.msra.mxu0 0.0
          %2061 = vmatprep.subr.mxu0 0.0
          %2062 = vmatpush1.msra.mxu0 0.0
          %2063 = vmatprep.subr.mxu0 0.0
          %2064 = vmatpush1.msra.mxu0 0.0
          %2065 = vmatprep.subr.mxu0 0.0
          %2066 = vmatpush1.msra.mxu0 0.0
          %2067 = vmatprep.subr.mxu0 0.0
          %2068 = vmatpush1.msra.mxu0 0.0
          %2069 = vmatprep.subr.mxu0 0.0
          %2070 = vmatpush1.msra.mxu0 0.0
          %2071 = vmatprep.subr.mxu0 0.0
          %2072 = vmatpush1.msra.mxu0 0.0
          %2073 = vmatprep.subr.mxu0 0.0
          %2074 = vmatpush1.msra.mxu0 0.0
          %2075 = vmatprep.subr.mxu0 0.0
          %2076 = vmatpush1.msra.mxu0 0.0
          %2077 = vmatprep.subr.mxu0 0.0
          %2078 = vmatpush1.msra.mxu0 0.0
          %2079 = vmatprep.subr.mxu0 0.0
          %2080 = vmatpush1.msra.mxu0 0.0
          %2081 = vmatprep.subr.mxu0 0.0
          %2082 = vmatpush1.msra.mxu0 0.0
          %2083 = vmatprep.subr.mxu0 0.0
          %2084 = vmatpush1.msra.mxu0 0.0
          %2085 = vmatprep.subr.mxu0 0.0
          %2086 = vmatpush1.msra.mxu0 0.0
          %2087 = vmatprep.mubr.f32.mxu0 0.0
          %2088 = vmatmul.mubr.f32.gmra.mrb[0].mxu0 %v2015
          %v2089 = vpop.f32.mrb[0].mxu0
          %v2090 = vadd.f32 %v2012, %v2089
          %v2091 = vpop.f32.mrb[0].mxu0
          %2092 = vmatprep.mubr.f32.mxu0 0.0
          %2093 = vmatmul.mubr.f32.gmra.mrb[0].mxu0 %v2018
          %v2094 = vpop.f32.mrb[0].mxu0
          %v2095 = vadd.f32 %v2012, %v2094
          %v2096 = vpop.f32.mrb[0].mxu0
          %2097 = vmatprep.mubr.f32.mxu0 0.0
          %2098 = vmatmul.mubr.f32.gmra.mrb[0].mxu0 %v2021
          %v2099 = vpop.f32.mrb[0].mxu0
          %v2100 = vadd.f32 %v2012, %v2099
          %v2101 = vpop.f32.mrb[0].mxu0
          %2102 = vdwg.mxu0
          %v2103 = vsub.f32 0.0, %v2090
          %v2104 = vsub.f32 0.0, %v2095
          %v2105 = vsub.f32 0.0, %v2100
          %v2106 = vmul.f32 %v2103, 1.442695
          %v2107 = vpow.pop %v2106
          %v2108 = vmul.f32 %v2104, 1.442695
          %v2109 = vpow.pop %v2108
          %v2110 = vmul.f32 %v2105, 1.442695
          %v2111 = vpow.pop %v2110
          %v2112 = vadd.f32 %v2107, 1.0
          %v2113 = vadd.f32 %v2109, 1.0
          %v2114 = vadd.f32 %v2111, 1.0
          %v2115 = vrcp.pop %v2112
          %v2116 = vrcp.pop %v2113
          %v2117 = vrcp.pop %v2114
          %v2118 = vmul.f32 %v2090, %v2115
          %v2119 = vmul.f32 %v2095, %v2116
          %v2120 = vmul.f32 %v2100, %v2117
          %v2121 = vld [vmem:[%s1066] sm:$0xff]
          %v2122 = vld [vmem:[%s1066 + $0x8] sm:$0xff]
          %v2123 = vld [vmem:[%s1066 + $0x10] sm:$0xff]
          %v2124 = vld [vmem:[%s1066 + $0x18] sm:$0xff]
          %v2126 = vsel %vm1302, %v2118, 0
          %v2129 = vsel %vm1302, %v2119, 0
          %v2132 = vsel %vm1302, %v2120, 0
          %2134 = vmatprep.subr.mxu0 0.0
          %2135 = vmatpush1.msra.mxu0 %v2121
          %2136 = vmatprep.subr.mxu0 0.0
          %2137 = vmatpush1.msra.mxu0 %v2122
          %2138 = vmatprep.subr.mxu0 0.0
          %2139 = vmatpush1.msra.mxu0 %v2123
          %2140 = vmatprep.subr.mxu0 0.0
          %2141 = vmatpush1.msra.mxu0 %v2124
          %2142 = vmatprep.subr.mxu0 0.0
          %2143 = vmatpush1.msra.mxu0 0.0
          %2144 = vmatprep.subr.mxu0 0.0
          %2145 = vmatpush1.msra.mxu0 0.0
          %2146 = vmatprep.subr.mxu0 0.0
          %2147 = vmatpush1.msra.mxu0 0.0
          %2148 = vmatprep.subr.mxu0 0.0
          %2149 = vmatpush1.msra.mxu0 0.0
          %2150 = vmatprep.subr.mxu0 0.0
          %2151 = vmatpush1.msra.mxu0 0.0
          %2152 = vmatprep.subr.mxu0 0.0
          %2153 = vmatpush1.msra.mxu0 0.0
          %2154 = vmatprep.subr.mxu0 0.0
          %2155 = vmatpush1.msra.mxu0 0.0
          %2156 = vmatprep.subr.mxu0 0.0
          %2157 = vmatpush1.msra.mxu0 0.0
          %2158 = vmatprep.subr.mxu0 0.0
          %2159 = vmatpush1.msra.mxu0 0.0
          %2160 = vmatprep.subr.mxu0 0.0
          %2161 = vmatpush1.msra.mxu0 0.0
          %2162 = vmatprep.subr.mxu0 0.0
          %2163 = vmatpush1.msra.mxu0 0.0
          %2164 = vmatprep.subr.mxu0 0.0
          %2165 = vmatpush1.msra.mxu0 0.0
          %2166 = vmatprep.subr.mxu0 0.0
          %2167 = vmatpush1.msra.mxu0 0.0
          %2168 = vmatprep.subr.mxu0 0.0
          %2169 = vmatpush1.msra.mxu0 0.0
          %2170 = vmatprep.subr.mxu0 0.0
          %2171 = vmatpush1.msra.mxu0 0.0
          %2172 = vmatprep.subr.mxu0 0.0
          %2173 = vmatpush1.msra.mxu0 0.0
          %2174 = vmatprep.subr.mxu0 0.0
          %2175 = vmatpush1.msra.mxu0 0.0
          %2176 = vmatprep.subr.mxu0 0.0
          %2177 = vmatpush1.msra.mxu0 0.0
          %2178 = vmatprep.subr.mxu0 0.0
          %2179 = vmatpush1.msra.mxu0 0.0
          %2180 = vmatprep.subr.mxu0 0.0
          %2181 = vmatpush1.msra.mxu0 0.0
          %2182 = vmatprep.subr.mxu0 0.0
          %2183 = vmatpush1.msra.mxu0 0.0
          %2184 = vmatprep.subr.mxu0 0.0
          %2185 = vmatpush1.msra.mxu0 0.0
          %2186 = vmatprep.subr.mxu0 0.0
          %2187 = vmatpush1.msra.mxu0 0.0
          %2188 = vmatprep.subr.mxu0 0.0
          %2189 = vmatpush1.msra.mxu0 0.0
          %2190 = vmatprep.subr.mxu0 0.0
          %2191 = vmatpush1.msra.mxu0 0.0
          %2192 = vmatprep.subr.mxu0 0.0
          %2193 = vmatpush1.msra.mxu0 0.0
          %2194 = vmatprep.subr.mxu0 0.0
          %2195 = vmatpush1.msra.mxu0 0.0
          %2196 = vmatprep.subr.mxu0 0.0
          %2197 = vmatpush1.msra.mxu0 0.0
          %2198 = vmatprep.mubr.f32.mxu0 0.0
          %2199 = vmatmul.mubr.f32.gmra.mrb[0].mxu0 %v2126
          %v2200 = vpop.f32.mrb[0].mxu0
          %v2201 = vadd.f32 0.0, %v2200
          %v2202 = vpop.f32.mrb[0].mxu0
          %2203 = vmatprep.mubr.f32.mxu0 0.0
          %2204 = vmatmul.mubr.f32.gmra.mrb[0].mxu0 %v2129
          %v2205 = vpop.f32.mrb[0].mxu0
          %v2206 = vadd.f32 0.0, %v2205
          %v2207 = vpop.f32.mrb[0].mxu0
          %2208 = vmatprep.mubr.f32.mxu0 0.0
          %2209 = vmatmul.mubr.f32.gmra.mrb[0].mxu0 %v2132
          %v2210 = vpop.f32.mrb[0].mxu0
          %v2211 = vadd.f32 0.0, %v2210
          %v2212 = vpop.f32.mrb[0].mxu0
          %2213 = vdwg.mxu0
          %v2214 = vld [vmem:[#allocation4] sm:$0xff]
          %v2215 = vld [vmem:[#allocation4 + $0x8] sm:$0xff]
          %v2216 = vld [vmem:[#allocation4 + $0x10] sm:$0xff]
          %2218 = vset.pattern.permute.xlu0 0
          %2219 = vperm.xlu0 %2218, %v2201
          %v2220 = vpop.permute.xlu0 %2219
          %2223 = vset.pattern.permute.xlu0 0
          %2224 = vperm.xlu0 %2223, %v2206
          %v2225 = vpop.permute.xlu0 %2224
          %2228 = vset.pattern.permute.xlu0 0
          %2229 = vperm.xlu0 %2228, %v2211
          %v2230 = vpop.permute.xlu0 %2229
          %v2232 = vmul.f32 %v2214, %v2220
          %v2233 = vmul.f32 %v2215, %v2225
          %v2234 = vmul.f32 %v2216, %v2230
          %v2235 = vsel %vm1458, %v2232, 1.0
          %v2236 = vsel %vm1458, %v2233, 1.0
          %v2237 = vsel %vm1458, %v2234, 1.0
          %v2238 = vld [vmem:[#allocation8] sm:$0xf]
          %v2239 = vunpack.c.l.bf16 %v2238
          %v2241 = vsel %vm1764, %v2239, 0
          %2243 = vmatprep.subr.mxu0 0.0
          %2244 = vmatpush1.msra.mxu0 %v2235
          %2245 = vmatprep.subr.mxu0 0.0
          %2246 = vmatpush1.msra.mxu0 %v2236
          %2247 = vmatprep.subr.mxu0 0.0
          %2248 = vmatpush1.msra.mxu0 %v2237
          %2249 = vmatprep.subr.mxu0 0.0
          %2250 = vmatpush1.msra.mxu0 0.0
          %2251 = vmatprep.subr.mxu0 0.0
          %2252 = vmatpush1.msra.mxu0 0.0
          %2253 = vmatprep.subr.mxu0 0.0
          %2254 = vmatpush1.msra.mxu0 0.0
          %2255 = vmatprep.subr.mxu0 0.0
          %2256 = vmatpush1.msra.mxu0 0.0
          %2257 = vmatprep.subr.mxu0 0.0
          %2258 = vmatpush1.msra.mxu0 0.0
          %2259 = vmatprep.subr.mxu0 0.0
          %2260 = vmatpush1.msra.mxu0 0.0
          %2261 = vmatprep.subr.mxu0 0.0
          %2262 = vmatpush1.msra.mxu0 0.0
          %2263 = vmatprep.subr.mxu0 0.0
          %2264 = vmatpush1.msra.mxu0 0.0
          %2265 = vmatprep.subr.mxu0 0.0
          %2266 = vmatpush1.msra.mxu0 0.0
          %2267 = vmatprep.subr.mxu0 0.0
          %2268 = vmatpush1.msra.mxu0 0.0
          %2269 = vmatprep.subr.mxu0 0.0
          %2270 = vmatpush1.msra.mxu0 0.0
          %2271 = vmatprep.subr.mxu0 0.0
          %2272 = vmatpush1.msra.mxu0 0.0
          %2273 = vmatprep.subr.mxu0 0.0
          %2274 = vmatpush1.msra.mxu0 0.0
          %2275 = vmatprep.subr.mxu0 0.0
          %2276 = vmatpush1.msra.mxu0 0.0
          %2277 = vmatprep.subr.mxu0 0.0
          %2278 = vmatpush1.msra.mxu0 0.0
          %2279 = vmatprep.subr.mxu0 0.0
          %2280 = vmatpush1.msra.mxu0 0.0
          %2281 = vmatprep.subr.mxu0 0.0
          %2282 = vmatpush1.msra.mxu0 0.0
          %2283 = vmatprep.subr.mxu0 0.0
          %2284 = vmatpush1.msra.mxu0 0.0
          %2285 = vmatprep.subr.mxu0 0.0
          %2286 = vmatpush1.msra.mxu0 0.0
          %2287 = vmatprep.subr.mxu0 0.0
          %2288 = vmatpush1.msra.mxu0 0.0
          %2289 = vmatprep.subr.mxu0 0.0
          %2290 = vmatpush1.msra.mxu0 0.0
          %2291 = vmatprep.subr.mxu0 0.0
          %2292 = vmatpush1.msra.mxu0 0.0
          %2293 = vmatprep.subr.mxu0 0.0
          %2294 = vmatpush1.msra.mxu0 0.0
          %2295 = vmatprep.subr.mxu0 0.0
          %2296 = vmatpush1.msra.mxu0 0.0
          %2297 = vmatprep.subr.mxu0 0.0
          %2298 = vmatpush1.msra.mxu0 0.0
          %2299 = vmatprep.subr.mxu0 0.0
          %2300 = vmatpush1.msra.mxu0 0.0
          %2301 = vmatprep.subr.mxu0 0.0
          %2302 = vmatpush1.msra.mxu0 0.0
          %2303 = vmatprep.subr.mxu0 0.0
          %2304 = vmatpush1.msra.mxu0 0.0
          %2305 = vmatprep.subr.mxu0 0.0
          %2306 = vmatpush1.msra.mxu0 0.0
          %2307 = vmatprep.mubr.f32.mxu0 0.0
          %2308 = vmatmul.mubr.f32.gmra.mrb[0].mxu0 %v2241
          %v2309 = vpop.f32.mrb[0].mxu0
          %v2310 = vadd.f32 0.0, %v2309
          %v2311 = vpop.f32.mrb[0].mxu0
          %2312 = vdwg.mxu0
          %v2313 = vmax.f32 %v2310, 1.0
          %v2314 = vrcp.pop %v2313
          %2316 = vset.pattern.permute.xlu0 3
          %2317 = vperm.xlu0 %2316, %v2314
          %v2318 = vpop.permute.xlu0 %2317
          %v2320 = vmul.f32 %v2310, %v2318
          %2321 = vst.msk [vmem:[%s26] sm:$0xff] %vm1458, %v2320
          %v2322 = vld [vmem:[%s21] sm:$0xff]
          %v2323 = vld [vmem:[%s21 + $0x8] sm:$0xff]
          %v2324 = vld [vmem:[%s21 + $0x10] sm:$0xff]
          %v2325 = vld [vmem:[%s21 + $0x18] sm:$0xff]
          %v2326 = vld [vmem:[%s22] sm:$0x1]
          %v2328 = vlaneseq
          %v2329 = vshrl.u32 %v2328, 7
          %v2330 = vsub.s32 0, %v2329
          %v2331 = vrot.slane %v2326, %v2330
          %v2334 = vsel %vm1302, %v1997, 0
          %2336 = vmatprep.subr.mxu0 0.0
          %2337 = vmatpush1.msra.mxu0 %v2322
          %2338 = vmatprep.subr.mxu0 0.0
          %2339 = vmatpush1.msra.mxu0 %v2323
          %2340 = vmatprep.subr.mxu0 0.0
          %2341 = vmatpush1.msra.mxu0 %v2324
          %2342 = vmatprep.subr.mxu0 0.0
          %2343 = vmatpush1.msra.mxu0 %v2325
          %2344 = vmatprep.subr.mxu0 0.0
          %2345 = vmatpush1.msra.mxu0 0.0
          %2346 = vmatprep.subr.mxu0 0.0
          %2347 = vmatpush1.msra.mxu0 0.0
          %2348 = vmatprep.subr.mxu0 0.0
          %2349 = vmatpush1.msra.mxu0 0.0
          %2350 = vmatprep.subr.mxu0 0.0
          %2351 = vmatpush1.msra.mxu0 0.0
          %2352 = vmatprep.subr.mxu0 0.0
          %2353 = vmatpush1.msra.mxu0 0.0
          %2354 = vmatprep.subr.mxu0 0.0
          %2355 = vmatpush1.msra.mxu0 0.0
          %2356 = vmatprep.subr.mxu0 0.0
          %2357 = vmatpush1.msra.mxu0 0.0
          %2358 = vmatprep.subr.mxu0 0.0
          %2359 = vmatpush1.msra.mxu0 0.0
          %2360 = vmatprep.subr.mxu0 0.0
          %2361 = vmatpush1.msra.mxu0 0.0
          %2362 = vmatprep.subr.mxu0 0.0
          %2363 = vmatpush1.msra.mxu0 0.0
          %2364 = vmatprep.subr.mxu0 0.0
          %2365 = vmatpush1.msra.mxu0 0.0
          %2366 = vmatprep.subr.mxu0 0.0
          %2367 = vmatpush1.msra.mxu0 0.0
          %2368 = vmatprep.subr.mxu0 0.0
          %2369 = vmatpush1.msra.mxu0 0.0
          %2370 = vmatprep.subr.mxu0 0.0
          %2371 = vmatpush1.msra.mxu0 0.0
          %2372 = vmatprep.subr.mxu0 0.0
          %2373 = vmatpush1.msra.mxu0 0.0
          %2374 = vmatprep.subr.mxu0 0.0
          %2375 = vmatpush1.msra.mxu0 0.0
          %2376 = vmatprep.subr.mxu0 0.0
          %2377 = vmatpush1.msra.mxu0 0.0
          %2378 = vmatprep.subr.mxu0 0.0
          %2379 = vmatpush1.msra.mxu0 0.0
          %2380 = vmatprep.subr.mxu0 0.0
          %2381 = vmatpush1.msra.mxu0 0.0
          %2382 = vmatprep.subr.mxu0 0.0
          %2383 = vmatpush1.msra.mxu0 0.0
          %2384 = vmatprep.subr.mxu0 0.0
          %2385 = vmatpush1.msra.mxu0 0.0
          %2386 = vmatprep.subr.mxu0 0.0
          %2387 = vmatpush1.msra.mxu0 0.0
          %2388 = vmatprep.subr.mxu0 0.0
          %2389 = vmatpush1.msra.mxu0 0.0
          %2390 = vmatprep.subr.mxu0 0.0
          %2391 = vmatpush1.msra.mxu0 0.0
          %2392 = vmatprep.subr.mxu0 0.0
          %2393 = vmatpush1.msra.mxu0 0.0
          %2394 = vmatprep.subr.mxu0 0.0
          %2395 = vmatpush1.msra.mxu0 0.0
          %2396 = vmatprep.subr.mxu0 0.0
          %2397 = vmatpush1.msra.mxu0 0.0
          %2398 = vmatprep.subr.mxu0 0.0
          %2399 = vmatpush1.msra.mxu0 0.0
          %2400 = vmatprep.mubr.f32.mxu0 0.0
          %2401 = vmatmul.mubr.f32.gmra.mrb[0].mxu0 %v2334
          %v2402 = vpop.f32.mrb[0].mxu0
          %v2403 = vadd.f32 %v2331, %v2402
          %v2404 = vpop.f32.mrb[0].mxu0
          %2405 = vdwg.mxu0
          %v2406 = vsub.f32 0.0, %v2403
          %v2407 = vmul.f32 %v2406, 1.442695
          %v2408 = vpow.pop %v2407
          %v2409 = vadd.f32 %v2408, 1.0
          %v2410 = vrcp.pop %v2409
          %v2411 = vmul.f32 %v2403, %v2410
          %v2412 = vld [vmem:[%s23] sm:$0xff]
          %v2413 = vld [vmem:[%s23 + $0x8] sm:$0xff]
          %v2414 = vld [vmem:[%s23 + $0x10] sm:$0xff]
          %v2415 = vld [vmem:[%s23 + $0x18] sm:$0xff]
          %v2416 = vld [vmem:[#allocation5] sm:$0x1]
          %v2418 = vlaneseq
          %v2419 = vshrl.u32 %v2418, 7
          %v2420 = vsub.s32 0, %v2419
          %v2421 = vrot.slane %v2416, %v2420
          %v2424 = vsel %vm1302, %v2411, 0
          %2426 = vmatprep.subr.mxu0 0.0
          %2427 = vmatpush1.msra.mxu0 %v2412
          %2428 = vmatprep.subr.mxu0 0.0
          %2429 = vmatpush1.msra.mxu0 %v2413
          %2430 = vmatprep.subr.mxu0 0.0
          %2431 = vmatpush1.msra.mxu0 %v2414
          %2432 = vmatprep.subr.mxu0 0.0
          %2433 = vmatpush1.msra.mxu0 %v2415
          %2434 = vmatprep.subr.mxu0 0.0
          %2435 = vmatpush1.msra.mxu0 0.0
          %2436 = vmatprep.subr.mxu0 0.0
          %2437 = vmatpush1.msra.mxu0 0.0
          %2438 = vmatprep.subr.mxu0 0.0
          %2439 = vmatpush1.msra.mxu0 0.0
          %2440 = vmatprep.subr.mxu0 0.0
          %2441 = vmatpush1.msra.mxu0 0.0
          %2442 = vmatprep.subr.mxu0 0.0
          %2443 = vmatpush1.msra.mxu0 0.0
          %2444 = vmatprep.subr.mxu0 0.0
          %2445 = vmatpush1.msra.mxu0 0.0
          %2446 = vmatprep.subr.mxu0 0.0
          %2447 = vmatpush1.msra.mxu0 0.0
          %2448 = vmatprep.subr.mxu0 0.0
          %2449 = vmatpush1.msra.mxu0 0.0
          %2450 = vmatprep.subr.mxu0 0.0
          %2451 = vmatpush1.msra.mxu0 0.0
          %2452 = vmatprep.subr.mxu0 0.0
          %2453 = vmatpush1.msra.mxu0 0.0
          %2454 = vmatprep.subr.mxu0 0.0
          %2455 = vmatpush1.msra.mxu0 0.0
          %2456 = vmatprep.subr.mxu0 0.0
          %2457 = vmatpush1.msra.mxu0 0.0
          %2458 = vmatprep.subr.mxu0 0.0
          %2459 = vmatpush1.msra.mxu0 0.0
          %2460 = vmatprep.subr.mxu0 0.0
          %2461 = vmatpush1.msra.mxu0 0.0
          %2462 = vmatprep.subr.mxu0 0.0
          %2463 = vmatpush1.msra.mxu0 0.0
          %2464 = vmatprep.subr.mxu0 0.0
          %2465 = vmatpush1.msra.mxu0 0.0
          %2466 = vmatprep.subr.mxu0 0.0
          %2467 = vmatpush1.msra.mxu0 0.0
          %2468 = vmatprep.subr.mxu0 0.0
          %2469 = vmatpush1.msra.mxu0 0.0
          %2470 = vmatprep.subr.mxu0 0.0
          %2471 = vmatpush1.msra.mxu0 0.0
          %2472 = vmatprep.subr.mxu0 0.0
          %2473 = vmatpush1.msra.mxu0 0.0
          %2474 = vmatprep.subr.mxu0 0.0
          %2475 = vmatpush1.msra.mxu0 0.0
          %2476 = vmatprep.subr.mxu0 0.0
          %2477 = vmatpush1.msra.mxu0 0.0
          %2478 = vmatprep.subr.mxu0 0.0
          %2479 = vmatpush1.msra.mxu0 0.0
          %2480 = vmatprep.subr.mxu0 0.0
          %2481 = vmatpush1.msra.mxu0 0.0
          %2482 = vmatprep.subr.mxu0 0.0
          %2483 = vmatpush1.msra.mxu0 0.0
          %2484 = vmatprep.subr.mxu0 0.0
          %2485 = vmatpush1.msra.mxu0 0.0
          %2486 = vmatprep.subr.mxu0 0.0
          %2487 = vmatpush1.msra.mxu0 0.0
          %2488 = vmatprep.subr.mxu0 0.0
          %2489 = vmatpush1.msra.mxu0 0.0
          %2490 = vmatprep.mubr.f32.mxu0 0.0
          %2491 = vmatmul.mubr.f32.gmra.mrb[0].mxu0 %v2424
          %v2492 = vpop.f32.mrb[0].mxu0
          %v2493 = vadd.f32 %v2421, %v2492
          %v2494 = vpop.f32.mrb[0].mxu0
          %2495 = vdwg.mxu0
          %v2496 = vld [vmem:[#allocation10] sm:$0x3]
          %vm2497 = vcmask 64512
          %v2499 = vsel %vm2497, %v2496, 0
          %2501 = vmatprep.subr.mxu0 0.0
          %2502 = vmatpush1.msra.mxu0 %v2493
          %2503 = vmatprep.subr.mxu0 0.0
          %2504 = vmatpush1.msra.mxu0 0.0
          %2505 = vmatprep.subr.mxu0 0.0
          %2506 = vmatpush1.msra.mxu0 0.0
          %2507 = vmatprep.subr.mxu0 0.0
          %2508 = vmatpush1.msra.mxu0 0.0
          %2509 = vmatprep.subr.mxu0 0.0
          %2510 = vmatpush1.msra.mxu0 0.0
          %2511 = vmatprep.subr.mxu0 0.0
          %2512 = vmatpush1.msra.mxu0 0.0
          %2513 = vmatprep.subr.mxu0 0.0
          %2514 = vmatpush1.msra.mxu0 0.0
          %2515 = vmatprep.subr.mxu0 0.0
          %2516 = vmatpush1.msra.mxu0 0.0
          %2517 = vmatprep.subr.mxu0 0.0
          %2518 = vmatpush1.msra.mxu0 0.0
          %2519 = vmatprep.subr.mxu0 0.0
          %2520 = vmatpush1.msra.mxu0 0.0
          %2521 = vmatprep.subr.mxu0 0.0
          %2522 = vmatpush1.msra.mxu0 0.0
          %2523 = vmatprep.subr.mxu0 0.0
          %2524 = vmatpush1.msra.mxu0 0.0
          %2525 = vmatprep.subr.mxu0 0.0
          %2526 = vmatpush1.msra.mxu0 0.0
          %2527 = vmatprep.subr.mxu0 0.0
          %2528 = vmatpush1.msra.mxu0 0.0
          %2529 = vmatprep.subr.mxu0 0.0
          %2530 = vmatpush1.msra.mxu0 0.0
          %2531 = vmatprep.subr.mxu0 0.0
          %2532 = vmatpush1.msra.mxu0 0.0
          %2533 = vmatprep.subr.mxu0 0.0
          %2534 = vmatpush1.msra.mxu0 0.0
          %2535 = vmatprep.subr.mxu0 0.0
          %2536 = vmatpush1.msra.mxu0 0.0
          %2537 = vmatprep.subr.mxu0 0.0
          %2538 = vmatpush1.msra.mxu0 0.0
          %2539 = vmatprep.subr.mxu0 0.0
          %2540 = vmatpush1.msra.mxu0 0.0
          %2541 = vmatprep.subr.mxu0 0.0
          %2542 = vmatpush1.msra.mxu0 0.0
          %2543 = vmatprep.subr.mxu0 0.0
          %2544 = vmatpush1.msra.mxu0 0.0
          %2545 = vmatprep.subr.mxu0 0.0
          %2546 = vmatpush1.msra.mxu0 0.0
          %2547 = vmatprep.subr.mxu0 0.0
          %2548 = vmatpush1.msra.mxu0 0.0
          %2549 = vmatprep.subr.mxu0 0.0
          %2550 = vmatpush1.msra.mxu0 0.0
          %2551 = vmatprep.subr.mxu0 0.0
          %2552 = vmatpush1.msra.mxu0 0.0
          %2553 = vmatprep.subr.mxu0 0.0
          %2554 = vmatpush1.msra.mxu0 0.0
          %2555 = vmatprep.subr.mxu0 0.0
          %2556 = vmatpush1.msra.mxu0 0.0
          %2557 = vmatprep.subr.mxu0 0.0
          %2558 = vmatpush1.msra.mxu0 0.0
          %2559 = vmatprep.subr.mxu0 0.0
          %2560 = vmatpush1.msra.mxu0 0.0
          %2561 = vmatprep.subr.mxu0 0.0
          %2562 = vmatpush1.msra.mxu0 0.0
          %2563 = vmatprep.subr.mxu0 0.0
          %2564 = vmatpush1.msra.mxu0 0.0
          %2565 = vmatprep.mubr.f32.mxu0 0.0
          %2566 = vmatmul.mubr.f32.gmra.mrb[0].mxu0 %v2499
          %v2567 = vpop.f32.mrb[0].mxu0
          %v2568 = vadd.f32 0.0, %v2567
          %v2569 = vpop.f32.mrb[0].mxu0
          %2570 = vdwg.mxu0
          %vm2571 = vcmask 1024
          %2572 = vst.msk [vmem:[%s25] sm:$0x3] %vm2571, %v2568
        $region152: #{tpu_custom_call.1} parent=119 // pred_fallthru
          _
        // Predicated region
        $region153: #{tpu_custom_call.1} parent=119 // pred_check
          %p2573 = pneg %p649
        $region154: #{tpu_custom_call.1} parent=119 // pred_check_branch
          %2575 = sbr.rel (%p2573) target = $region156
        $region155: #{tpu_custom_call.1} parent=119 // pred_region
          _
        $region156: #{tpu_custom_call.1} parent=119 // pred_fallthru
          _
        // Predicated region
        $region157: #{tpu_custom_call.1} parent=119 // pred_check
          %p2576 = pneg %p670
        $region158: #{tpu_custom_call.1} parent=119 // pred_check_branch
          %2578 = sbr.rel (%p2576) target = $region160
        $region159: #{tpu_custom_call.1} parent=119 // pred_region
          _
        $region160: #{tpu_custom_call.1} parent=119 // pred_fallthru
          _
        // Predicated region
        $region161: #{tpu_custom_call.1} parent=119 // pred_check
          %p2579 = pneg %p649
        $region162: #{tpu_custom_call.1} parent=119 // pred_check_branch
          %2581 = sbr.rel (%p2579) target = $region164
        $region163: #{tpu_custom_call.1} parent=119 // pred_region
          _
        $region164: #{tpu_custom_call.1} parent=119 // pred_fallthru
          _
        // Predicated region
        $region165: #{tpu_custom_call.1} parent=119 // pred_check
          %p2582 = pneg %p670
        $region166: #{tpu_custom_call.1} parent=119 // pred_check_branch
          %2584 = sbr.rel (%p2582) target = $region168
        $region167: #{tpu_custom_call.1} parent=119 // pred_region
          _
        $region168: #{tpu_custom_call.1} parent=119 // pred_fallthru
          _
      $region120: #{tpu_custom_call.1} parent=5 // pred_fallthru
        _
      %p2585 = scmp.le.s32.totalorder 2, %s41
      // Predicated region
      $region169: #{tpu_custom_call.1} parent=5 // pred_check
        %p2586 = pneg %p2585
      $region170: #{tpu_custom_call.1} parent=5 // pred_check_branch
        %2588 = sbr.rel (%p2586) target = $region172
      $region171: #{tpu_custom_call.1} parent=5 // pred_region
        %s2589 = ssub.s32 %s41, 2
      $region172: #{tpu_custom_call.1} parent=5 // pred_fallthru
        _
    $region6: #{tpu_custom_call.1} parent=1 // loop_footer
      %s45 = sadd.s32 1, %s41
    $region7: #{tpu_custom_call.1} parent=1 // loop_footer_branch
      %40 = sbr.rel target = $region3
    $region8: #{tpu_custom_call.1} parent=1 // loop_exit
      _
    %2590 = vsyncpa [#allocation7], 1
    %s2591 = scalar_lea.sflag [#allocation7], 1
    %2592 = vsyncpa %s2591, 1
    %2593 = vsyncpa [#allocation9], 1
    %2594 = vsyncpa [#allocation12], 1
    %2595 = vsyncpa [#allocation15], 1
    %s2596 = scalar_lea.sflag [#allocation15], 1
    %2597 = vsyncpa %s2596, 1

</llo_original>
